<compile_context>
chip_gen: v5e
topology: v5e:2x2
jax: 0.10.0
libtpu: 0.0.40
codegen_flags: <defaults>
</compile_context>

<pallas_src>
import numpy as np
import jax
import jax.numpy as jnp
from jax.experimental import pallas as pl
from jax.experimental.pallas import tpu as pltpu


# ----------------------------- configuration --------------------------------
P = {
    'batch_size': 2,
    'max_num_nodes': 9,          # 'tie' branch hard-codes 8/9/72/80 -> n must be 9
    'embedding_dim': 4,          # d
    'position_emb': 8,
    'units1': 16,
    'rnn1_layers': 1,
    'bidirectional': True,
    'layer_number': 1,
    'projection_style': 'tie',
    'non-linear': 'tanh',
    'non-linear1': 'tanh',
    'dropout1': 0.0,
    'gat_entity_embedding_dim': 0,
}
MAX_SENT_LEN = 8
VOCAB = 50
WORD_EMB_DIM = 16
N_OUT = 6
N_OUT_PAD = 128                                           # lane-dense padded output width
MAX_EDGES = P['max_num_nodes'] * (P['max_num_nodes'] - 1)  # 72

D = P['embedding_dim']          # 4
TWO_D = 2 * D                   # 8
H = P['units1']                 # 16
G2 = 8 * H                      # 128 : fused fwd+bwd gate width (lane-dense)

assert P['layer_number'] == 1 and P['projection_style'] == 'tie'
assert P['max_num_nodes'] == 9, "this branch hard-codes 8/9/72/80 reshapes"
assert G2 == 128, "fused fwd+bwd gate width must be lane-dense (128)"


def _multi_tensorcore_chip():
    """True on chips with 2 TensorCores per chip (v7x): keep the batch grid parallel there.
    On single-TC chips (v5e/v6e) fold batch into matmul rows instead."""
    try:
        kind = jax.devices()[0].device_kind.lower()
    except Exception:
        return False
    return ('v7' in kind) or ('7x' in kind)


# --------- deterministic reimplementation of the repo helper tensors --------
def make_start_embedding(n, d):
    rows = []
    for i in range(n):
        for j in range(n):
            if i == j:
                continue
            v = np.zeros(2 * n * d, np.float32)
            v[i * 2 * d: i * 2 * d + d] = 1.0                 # head half
            v[j * 2 * d + d: j * 2 * d + 2 * d] = 1.0         # tail half
            rows.append(v)
    return np.stack(rows).reshape(n * (n - 1), 2 * n * d, 1)


def get_head_indices(n, d, bs):
    idx = []
    for i in range(n):
        for j in range(n):
            if i == j:
                continue
            idx.append(list(range(i * 2 * d, i * 2 * d + 2 * d)))
    return np.tile(np.asarray(idx, np.int32)[None], (bs, 1, 1))


def get_tail_indices(n, d, bs):
    idx = []
    for i in range(n):
        for j in range(n):
            if i == j:
                continue
            idx.append(list(range(j * 2 * d, j * 2 * d + 2 * d)))
    return np.tile(np.asarray(idx, np.int32)[None], (bs, 1, 1))


def build_consts(n, d, bs):
    """Constants for the pure-JAX reference AND the fused kernel's analytic shortcut."""
    start = make_start_embedding(n, d)                        # (E, 2nd, 1)
    hidx = get_head_indices(n, d, bs)
    tidx = get_tail_indices(n, d, bs)
    E = n * (n - 1)
    two_d = 2 * d

    # block-half column sums of a flattened (2d,2d) block: Mh sums v<d, Mt sums v>=d
    mh = np.zeros((two_d * two_d, two_d), np.float32)
    mt = np.zeros((two_d * two_d, two_d), np.float32)
    for u in range(two_d):
        for v in range(two_d):
            if v < d:
                mh[u * two_d + v, u] = 1.0
            else:
                mt[u * two_d + v, u] = 1.0
    mht = np.concatenate([mh, mt], axis=1)                    # (4d^2, 4d) = (64, 16)

    # reverse-edge permutation: row e selects edge (j,i) given e <-> (i,j)
    pairs = [(i, j) for i in range(n) for j in range(n) if i != j]
    eidx = {p: k for k, p in enumerate(pairs)}
    perm = np.zeros((E, E), np.float32)
    for e, (i, j) in enumerate(pairs):
        perm[e, eidx[(j, i)]] = 1.0

    return dict(
        start_embedding=jnp.asarray(start),   # reference-only
        head_indices=jnp.asarray(hidx),       # reference-only
        tail_indices=jnp.asarray(tidx),       # reference-only
        mht=jnp.asarray(mht),
        perm=jnp.asarray(perm),
    )


# ------------------------------ parameters -----------------------------------
def init_params(key):
    ks = jax.random.split(key, 12)

    def nrm(k, shape, scale):
        return scale * jax.random.normal(k, shape, jnp.float32)

    d_in = WORD_EMB_DIM + P['position_emb']
    word_emb = nrm(ks[0], (VOCAB, WORD_EMB_DIM), 0.3).at[0].set(0.0)   # padding_idx=0
    return dict(
        word_emb=word_emb,
        pos_emb=nrm(ks[1], (4, P['position_emb']), 0.3),
        # LSTM weights stored transposed: (in, 4H); gate order i, f, g, o (PyTorch).
        wih_f=nrm(ks[2], (d_in, 4 * H), 0.15),
        whh_f=nrm(ks[3], (H, 4 * H), 0.15),
        b_f=nrm(ks[4], (1, 4 * H), 0.05),
        wih_b=nrm(ks[5], (d_in, 4 * H), 0.15),
        whh_b=nrm(ks[6], (H, 4 * H), 0.15),
        b_b=nrm(ks[7], (1, 4 * H), 0.05),
        w_adj=nrm(ks[8], (2 * H, TWO_D * TWO_D), 0.1),
        b_adj=nrm(ks[9], (1, TWO_D * TWO_D), 0.05),
        w3=nrm(ks[10], (TWO_D * P['layer_number'] + 2 * P['gat_entity_embedding_dim'], N_OUT), 0.2),
        b3=nrm(ks[11], (1, N_OUT), 0.05),
        identity=jnp.eye(TWO_D, dtype=jnp.float32),            # identity_transformation
    )


# ------------------------------ fused Pallas kernel ---------------------------
def _recon_fused_kernel(xg_ref, wts_ref, slab_ref, perm_ref, out_ref):
    """LSTM recurrence + representation_to_adj + graph propagation + linear3.

    xg_ref  : (1, T, R, 128) f32   gate-packed, bias-included, time-pre-flipped LSTM inputs
    wts_ref : (64, 128)      bf16  rows 0:32 packed recurrent weights (block-diag fwd/bwd),
                                   rows 32:64 representation_to_adj weight (lane-padded)
    slab_ref: (88, 128)      f32   packed constants: mht | bht | b_adj | w3 | b3
    perm_ref: (R, R)         f32   (block-diagonal) reverse-edge permutation
    out_ref : (1, R, 128)    f32   linear3 output (lanes N_OUT: are zero padding)
    """
    T = xg_ref.shape[1]
    R = xg_ref.shape[2]

    whh = wts_ref[0:2 * H, :]                          # (32, 128) bf16
    wadj = wts_ref[2 * H:4 * H, 0:TWO_D * TWO_D]       # (32, 64)  bf16

    # ---- bidirectional LSTM: 8-step serial chain, one bf16 (R,32)@(32,128) per step ----
    # gate column order: [i_f,i_b | f_f,f_b | o_f,o_b | g_f,g_b]
    h = jnp.zeros((R, 2 * H), jnp.float32)             # [h_fwd | h_bwd]
    c = jnp.zeros((R, 2 * H), jnp.float32)
    for s in range(T):                                 # static unroll (T = 8)
        gates = jnp.dot(h.astype(jnp.bfloat16), whh,
                        preferred_element_type=jnp.float32) + xg_ref[0, s]
        sig = jax.nn.sigmoid(gates[:, :6 * H])         # one contiguous 96-lane EUP pass
        g = jnp.tanh(gates[:, 6 * H:])                 # one contiguous 32-lane tanh
        i = sig[:, 0:2 * H]
        f = sig[:, 2 * H:4 * H]
        o = sig[:, 4 * H:6 * H]
        c = f * c + i * g
        h = o * jnp.tanh(c)
    # h == cat([fwd h at t=T-1, bwd h at t=0]) == rnn_result (dropout2: identity)

    # ---- representation_to_adj + graph propagation (adjacency never materialized) ----
    mht = slab_ref[0:64, 0:2 * TWO_D]                  # (64, 16) block-half column sums
    bht = slab_ref[64:65, 0:2 * TWO_D]                 # (1, 16)  identity-block contribution
    badj = slab_ref[65:66, 0:TWO_D * TWO_D]            # (1, 64)
    w3 = slab_ref[72:80, :]                            # (8, 128) lanes N_OUT: are zero
    b3 = slab_ref[80:81, :]                            # (1, 128)

    proj = jnp.tanh(jnp.dot(h.astype(jnp.bfloat16), wadj,
                            preferred_element_type=jnp.float32) + badj)         # (R, 64)
    th = jnp.tanh(jnp.dot(proj, mht, preferred_element_type=jnp.float32) + bht)  # (R, 16)
    heads = th[:, TWO_D:]
    tails = jnp.dot(perm_ref[...], th[:, :TWO_D],      # reverse-edge gather as matmul
                    preferred_element_type=jnp.float32)
    rel = heads * tails                                                          # (R, 8)
    out_ref[0] = jnp.dot(rel, w3, preferred_element_type=jnp.float32) + b3       # (R, 128)


# ------------------------------ forward pass ----------------------------------
def recon_eac_kggat_forward(params, consts, sentence_input, entity_markers, fold_batch=None):
    # TODO(synk): EntityEmbedding sub-module and context_utils.make_start_entity_embeddings
    # are evaluated by the PyTorch forward but only consumed on the layer_number>1 /
    # projection_style!='tie' branch; they are dead on this configuration.
    if fold_batch is None:
        fold_batch = not _multi_tensorcore_chip()

    bs, T = sentence_input.shape
    E = MAX_EDGES
    We = WORD_EMB_DIM

    # ---- pack BiLSTM gate columns: [i_f,i_b | f_f,f_b | o_f,o_b | g_f,g_b] ----
    # sigmoid gates are one contiguous 96-lane span, tanh gates the last 32 lanes, and the
    # fwd/bwd halves of each gate are adjacent so the cell update is aligned elementwise.
    def pack_cols(wf, wb):
        def g(w, k):
            return w[..., k * H:(k + 1) * H]
        return jnp.concatenate([g(wf, 0), g(wb, 0), g(wf, 1), g(wb, 1),
                                g(wf, 3), g(wb, 3), g(wf, 2), g(wb, 2)], axis=-1)

    wih = pack_cols(params['wih_f'], params['wih_b'])                 # (24, 128)
    bias = pack_cols(params['b_f'], params['b_b'])                    # (1, 128)
    zh = jnp.zeros_like(params['whh_f'])
    whh_bd = jnp.concatenate([pack_cols(params['whh_f'], zh),         # h_fwd rows
                              pack_cols(zh, params['whh_b'])], axis=0)  # (32, 128)

    # ---- fold embedding tables into the input projection (weight-side transforms) ----
    word_tab = params['word_emb'] @ wih[:We] + bias                   # (VOCAB, 128), bias folded
    pos_tab = params['pos_emb'] @ wih[We:]                            # (4, 128)

    wordg = word_tab[sentence_input]                                  # (bs, T, 128)
    posg = pos_tab[jnp.transpose(entity_markers, (0, 2, 1))]          # (bs, T, E, 128)
    xg = posg + wordg[:, :, None, :]                                  # (bs, T, E, 128)
    # pre-flip the backward-direction gate lanes in time so the kernel reads one contiguous
    # lane-dense (rows,128) slab per step: row s = [fwd inputs @ t=s | bwd inputs @ t=T-1-s]
    is_bwd = jnp.tile(jnp.repeat(jnp.array([False, True]), H), 4)     # (128,) lane mask
    xg = jnp.where(is_bwd, xg[:, ::-1], xg)
    # dropout1 / dropout2: eval-mode identity

    # ---- constant slabs (2 lane-dense DMAs instead of 11 tiny operands) ----
    wadj_pad = jnp.pad(params['w_adj'], ((0, 0), (0, G2 - params['w_adj'].shape[1])))
    wts = jnp.concatenate([whh_bd, wadj_pad], axis=0).astype(jnp.bfloat16)   # (64, 128) bf16

    # identity_transformation block-half row sums (== [tvec | hvec] at its eye() init value)
    ident = params['identity']
    bht_vec = jnp.concatenate([ident[:, D:].sum(axis=1), ident[:, :D].sum(axis=1)])   # (16,)

    slab = jnp.zeros((88, 128), jnp.float32)
    slab = slab.at[0:64, 0:2 * TWO_D].set(consts['mht'])
    slab = slab.at[64, 0:2 * TWO_D].set(bht_vec)
    slab = slab.at[65, 0:TWO_D * TWO_D].set(params['b_adj'][0])
    slab = slab.at[72:80, 0:N_OUT].set(params['w3'])
    slab = slab.at[80, 0:N_OUT].set(params['b3'][0])

    # ---- grid layout: fold batch into rows on single-TC chips, batch-parallel on v7x ----
    if fold_batch:
        xg_k = jnp.transpose(xg, (1, 0, 2, 3)).reshape(1, T, bs * E, G2)
        perm_k = jnp.kron(jnp.eye(bs, dtype=jnp.float32), consts['perm'])
        nb, rows = 1, bs * E
    else:
        xg_k, perm_k, nb, rows = xg, consts['perm'], bs, E

    out = pl.pallas_call(
        _recon_fused_kernel,
        out_shape=jax.ShapeDtypeStruct((nb, rows, N_OUT_PAD), jnp.float32),
        grid=(nb,),
        in_specs=[
            pl.BlockSpec((1, T, rows, G2), lambda b: (b, 0, 0, 0)),
            pl.BlockSpec(wts.shape, lambda b: (0, 0)),
            pl.BlockSpec(slab.shape, lambda b: (0, 0)),
            pl.BlockSpec(perm_k.shape, lambda b: (0, 0)),
        ],
        out_specs=pl.BlockSpec((1, rows, N_OUT_PAD), lambda b: (b, 0, 0)),
        compiler_params=pltpu.CompilerParams(dimension_semantics=("parallel",)),
    )(xg_k, wts, slab, perm_k)

    return out.reshape(bs * E, N_OUT_PAD)[:, :N_OUT]


# --------------------------- pure-JAX reference -------------------------------
# Mirrors the PyTorch forward literally (full adjacency assembly + gathers), all f32.
def recon_eac_kggat_reference(params, consts, sentence_input, entity_markers):
    bs, T = sentence_input.shape
    n = P['max_num_nodes']
    E = MAX_EDGES

    word_e = params['word_emb'][sentence_input]
    word_e = jnp.broadcast_to(word_e[:, None], (bs, E, T, word_e.shape[-1]))
    pos_e = params['pos_emb'][entity_markers]
    x = jnp.concatenate([word_e, pos_e], axis=-1).reshape(bs * E, T, -1)

    def lstm(x, wih, whh, b, reverse):
        N = x.shape[0]
        h = jnp.zeros((N, H), jnp.float32)
        c = jnp.zeros((N, H), jnp.float32)
        ts = range(T - 1, -1, -1) if reverse else range(T)
        for t in ts:
            g = x[:, t] @ wih + h @ whh + b
            i = jax.nn.sigmoid(g[:, :H]); f = jax.nn.sigmoid(g[:, H:2 * H])
            gg = jnp.tanh(g[:, 2 * H:3 * H]); o = jax.nn.sigmoid(g[:, 3 * H:])
            c = f * c + i * gg
            h = o * jnp.tanh(c)
        return h

    hf = lstm(x, params['wih_f'], params['whh_f'], params['b_f'], False)
    hb = lstm(x, params['wih_b'], params['whh_b'], params['b_b'], True)
    rnn_result = jnp.concatenate([hf, hb], axis=1)
    proj = jnp.tanh(rnn_result @ params['w_adj'] + params['b_adj'])
    proj = proj.reshape(bs, n - 1, n, TWO_D * TWO_D)
    eye_flat = params['identity'].reshape(-1)
    id1 = jnp.broadcast_to(eye_flat, (bs, n - 1, 1, TWO_D * TWO_D))
    r = jnp.concatenate([id1, proj], axis=2).reshape(bs, n * n - 1, TWO_D * TWO_D)
    id2 = jnp.broadcast_to(eye_flat, (bs, 1, TWO_D * TWO_D))
    adj = jnp.concatenate([r, id2], axis=1).reshape(bs, n, n, TWO_D, TWO_D)
    adj = adj.transpose(0, 1, 3, 2, 4).reshape(bs, 2 * n * D, 2 * n * D)
    layer1 = jnp.tanh(jnp.matmul(adj[:, None], consts['start_embedding'][None])[..., 0])
    heads = jnp.take_along_axis(layer1, consts['head_indices'], axis=2)
    tails = jnp.take_along_axis(layer1, consts['tail_indices'], axis=2)
    rel = heads * tails
    out = rel @ params['w3'] + params['b3']
    return out.reshape(bs * E, N_OUT)


# ---------------------------------- main --------------------------------------
if __name__ == "__main__":
    key = jax.random.PRNGKey(0)
    kp, k1, k2 = jax.random.split(key, 3)
    params = init_params(kp)
    consts = build_consts(P['max_num_nodes'], D, P['batch_size'])

    bs = P['batch_size']
    sentence_input = jax.random.randint(k1, (bs, MAX_SENT_LEN), 1, VOCAB, dtype=jnp.int32)
    entity_markers = jax.random.randint(k2, (bs, MAX_EDGES, MAX_SENT_LEN), 0, 4, dtype=jnp.int32)

    fwd = jax.jit(recon_eac_kggat_forward)
    main_output = jax.block_until_ready(fwd(params, consts, sentence_input, entity_markers))

    assert main_output.shape == (bs * MAX_EDGES, N_OUT), main_output.shape

    # Tolerance relaxed from 5e-3 to 1e-2: the kernel now uses bf16 MXU operands on the
    # 8-step recurrence and on representation_to_adj (per the perf review); observed error
    # vs. the literal f32 reference is ~1e-3 level, this just gives headroom.
    ref = recon_eac_kggat_reference(params, consts, sentence_input, entity_markers)
    np.testing.assert_allclose(np.asarray(main_output), np.asarray(ref),
                               rtol=1e-2, atol=1e-2)
    print("KERNEL_OK")
</pallas_src>

<mosaic_0001>
module attributes {stable_mosaic.version = 11 : i64} {
  func.func @_recon_fused_kernel(%arg0: i32, %arg1: memref<1x8x144x128xf32, #tpu.memory_space<vmem>>, %arg2: memref<64x128xbf16, #tpu.memory_space<vmem>>, %arg3: memref<88x128xf32, #tpu.memory_space<vmem>>, %arg4: memref<144x144xf32, #tpu.memory_space<vmem>>, %arg5: memref<1x144x128xf32, #tpu.memory_space<vmem>>) attributes {dimension_semantics = [#tpu.dimension_semantics<parallel>], iteration_bounds = array<i64: 1>, scalar_prefetch = 0 : i64, scratch_operands = 0 : i64, tpu.core_type = #tpu.core_type<tc>, window_params = [{transform_indices = @transform_0, window_bounds = array<i64: 1, 8, 144, 128>}, {pipeline_mode = #tpu.pipeline_mode<synchronous>, transform_indices = @transform_1, window_bounds = array<i64: 64, 128>}, {pipeline_mode = #tpu.pipeline_mode<synchronous>, transform_indices = @transform_2, window_bounds = array<i64: 88, 128>}, {pipeline_mode = #tpu.pipeline_mode<synchronous>, transform_indices = @transform_3, window_bounds = array<i64: 144, 144>}, {transform_indices = @transform_4, window_bounds = array<i64: 1, 144, 128>}]} {
    %c0 = arith.constant 0 : index
    %c0_0 = arith.constant 0 : index
    %0 = vector.load %arg2[%c0, %c0_0] : memref<64x128xbf16, #tpu.memory_space<vmem>>, vector<32x128xbf16>
    %c32 = arith.constant 32 : index
    %c0_1 = arith.constant 0 : index
    %1 = vector.load %arg2[%c32, %c0_1] : memref<64x128xbf16, #tpu.memory_space<vmem>>, vector<32x64xbf16>
    %cst = arith.constant 0.000000e+00 : f32
    %2 = vector.broadcast %cst : f32 to vector<144x32xf32>
    %cst_2 = arith.constant 0.000000e+00 : f32
    %3 = vector.broadcast %cst_2 : f32 to vector<144x32xf32>
    %4 = arith.truncf %2 : vector<144x32xf32> to vector<144x32xbf16>
    %cst_3 = arith.constant dense<0.000000e+00> : vector<144x128xf32>
    %5 = tpu.matmul %4, %0, %cst_3 {dimension_numbers = #tpu.dot_dimension_numbers<[1], [0], [0], [1], [0, 0, 1, 1], [], []>} : vector<144x32xbf16>, vector<32x128xbf16>, vector<144x128xf32> -> vector<144x128xf32>
    %c0_4 = arith.constant 0 : index
    %c0_5 = arith.constant 0 : index
    %c0_6 = arith.constant 0 : index
    %c0_7 = arith.constant 0 : index
    %6 = vector.load %arg1[%c0_4, %c0_5, %c0_6, %c0_7] : memref<1x8x144x128xf32, #tpu.memory_space<vmem>>, vector<1x1x144x128xf32>
    %7 = vector.shape_cast %6 : vector<1x1x144x128xf32> to vector<144x128xf32>
    %8 = arith.addf %5, %7 : vector<144x128xf32>
    %9 = vector.extract_strided_slice %8 {offsets = [0, 0], sizes = [144, 96], strides = [1, 1]} : vector<144x128xf32> to vector<144x96xf32>
    %10 = arith.negf %9 : vector<144x96xf32>
    %11 = math.exp %10 : vector<144x96xf32>
    %cst_8 = arith.constant 1.000000e+00 : f32
    %12 = vector.broadcast %cst_8 : f32 to vector<144x96xf32>
    %13 = arith.addf %12, %11 : vector<144x96xf32>
    %14 = arith.divf %12, %13 : vector<144x96xf32>
    %15 = vector.extract_strided_slice %8 {offsets = [0, 96], sizes = [144, 32], strides = [1, 1]} : vector<144x128xf32> to vector<144x32xf32>
    %16 = math.tanh %15 : vector<144x32xf32>
    %17 = vector.extract_strided_slice %14 {offsets = [0, 0], sizes = [144, 32], strides = [1, 1]} : vector<144x96xf32> to vector<144x32xf32>
    %18 = vector.extract_strided_slice %14 {offsets = [0, 32], sizes = [144, 32], strides = [1, 1]} : vector<144x96xf32> to vector<144x32xf32>
    %19 = vector.extract_strided_slice %14 {offsets = [0, 64], sizes = [144, 32], strides = [1, 1]} : vector<144x96xf32> to vector<144x32xf32>
    %20 = arith.mulf %18, %3 : vector<144x32xf32>
    %21 = arith.mulf %17, %16 : vector<144x32xf32>
    %22 = arith.addf %20, %21 : vector<144x32xf32>
    %23 = math.tanh %22 : vector<144x32xf32>
    %24 = arith.mulf %19, %23 : vector<144x32xf32>
    %25 = arith.truncf %24 : vector<144x32xf32> to vector<144x32xbf16>
    %cst_9 = arith.constant dense<0.000000e+00> : vector<144x128xf32>
    %26 = tpu.matmul %25, %0, %cst_9 {dimension_numbers = #tpu.dot_dimension_numbers<[1], [0], [0], [1], [0, 0, 1, 1], [], []>} : vector<144x32xbf16>, vector<32x128xbf16>, vector<144x128xf32> -> vector<144x128xf32>
    %c0_10 = arith.constant 0 : index
    %c1 = arith.constant 1 : index
    %c0_11 = arith.constant 0 : index
    %c0_12 = arith.constant 0 : index
    %27 = vector.load %arg1[%c0_10, %c1, %c0_11, %c0_12] : memref<1x8x144x128xf32, #tpu.memory_space<vmem>>, vector<1x1x144x128xf32>
    %28 = vector.shape_cast %27 : vector<1x1x144x128xf32> to vector<144x128xf32>
    %29 = arith.addf %26, %28 : vector<144x128xf32>
    %30 = vector.extract_strided_slice %29 {offsets = [0, 0], sizes = [144, 96], strides = [1, 1]} : vector<144x128xf32> to vector<144x96xf32>
    %31 = arith.negf %30 : vector<144x96xf32>
    %32 = math.exp %31 : vector<144x96xf32>
    %cst_13 = arith.constant 1.000000e+00 : f32
    %33 = vector.broadcast %cst_13 : f32 to vector<144x96xf32>
    %34 = arith.addf %33, %32 : vector<144x96xf32>
    %35 = arith.divf %33, %34 : vector<144x96xf32>
    %36 = vector.extract_strided_slice %29 {offsets = [0, 96], sizes = [144, 32], strides = [1, 1]} : vector<144x128xf32> to vector<144x32xf32>
    %37 = math.tanh %36 : vector<144x32xf32>
    %38 = vector.extract_strided_slice %35 {offsets = [0, 0], sizes = [144, 32], strides = [1, 1]} : vector<144x96xf32> to vector<144x32xf32>
    %39 = vector.extract_strided_slice %35 {offsets = [0, 32], sizes = [144, 32], strides = [1, 1]} : vector<144x96xf32> to vector<144x32xf32>
    %40 = vector.extract_strided_slice %35 {offsets = [0, 64], sizes = [144, 32], strides = [1, 1]} : vector<144x96xf32> to vector<144x32xf32>
    %41 = arith.mulf %39, %22 : vector<144x32xf32>
    %42 = arith.mulf %38, %37 : vector<144x32xf32>
    %43 = arith.addf %41, %42 : vector<144x32xf32>
    %44 = math.tanh %43 : vector<144x32xf32>
    %45 = arith.mulf %40, %44 : vector<144x32xf32>
    %46 = arith.truncf %45 : vector<144x32xf32> to vector<144x32xbf16>
    %cst_14 = arith.constant dense<0.000000e+00> : vector<144x128xf32>
    %47 = tpu.matmul %46, %0, %cst_14 {dimension_numbers = #tpu.dot_dimension_numbers<[1], [0], [0], [1], [0, 0, 1, 1], [], []>} : vector<144x32xbf16>, vector<32x128xbf16>, vector<144x128xf32> -> vector<144x128xf32>
    %c0_15 = arith.constant 0 : index
    %c2 = arith.constant 2 : index
    %c0_16 = arith.constant 0 : index
    %c0_17 = arith.constant 0 : index
    %48 = vector.load %arg1[%c0_15, %c2, %c0_16, %c0_17] : memref<1x8x144x128xf32, #tpu.memory_space<vmem>>, vector<1x1x144x128xf32>
    %49 = vector.shape_cast %48 : vector<1x1x144x128xf32> to vector<144x128xf32>
    %50 = arith.addf %47, %49 : vector<144x128xf32>
    %51 = vector.extract_strided_slice %50 {offsets = [0, 0], sizes = [144, 96], strides = [1, 1]} : vector<144x128xf32> to vector<144x96xf32>
    %52 = arith.negf %51 : vector<144x96xf32>
    %53 = math.exp %52 : vector<144x96xf32>
    %cst_18 = arith.constant 1.000000e+00 : f32
    %54 = vector.broadcast %cst_18 : f32 to vector<144x96xf32>
    %55 = arith.addf %54, %53 : vector<144x96xf32>
    %56 = arith.divf %54, %55 : vector<144x96xf32>
    %57 = vector.extract_strided_slice %50 {offsets = [0, 96], sizes = [144, 32], strides = [1, 1]} : vector<144x128xf32> to vector<144x32xf32>
    %58 = math.tanh %57 : vector<144x32xf32>
    %59 = vector.extract_strided_slice %56 {offsets = [0, 0], sizes = [144, 32], strides = [1, 1]} : vector<144x96xf32> to vector<144x32xf32>
    %60 = vector.extract_strided_slice %56 {offsets = [0, 32], sizes = [144, 32], strides = [1, 1]} : vector<144x96xf32> to vector<144x32xf32>
    %61 = vector.extract_strided_slice %56 {offsets = [0, 64], sizes = [144, 32], strides = [1, 1]} : vector<144x96xf32> to vector<144x32xf32>
    %62 = arith.mulf %60, %43 : vector<144x32xf32>
    %63 = arith.mulf %59, %58 : vector<144x32xf32>
    %64 = arith.addf %62, %63 : vector<144x32xf32>
    %65 = math.tanh %64 : vector<144x32xf32>
    %66 = arith.mulf %61, %65 : vector<144x32xf32>
    %67 = arith.truncf %66 : vector<144x32xf32> to vector<144x32xbf16>
    %cst_19 = arith.constant dense<0.000000e+00> : vector<144x128xf32>
    %68 = tpu.matmul %67, %0, %cst_19 {dimension_numbers = #tpu.dot_dimension_numbers<[1], [0], [0], [1], [0, 0, 1, 1], [], []>} : vector<144x32xbf16>, vector<32x128xbf16>, vector<144x128xf32> -> vector<144x128xf32>
    %c0_20 = arith.constant 0 : index
    %c3 = arith.constant 3 : index
    %c0_21 = arith.constant 0 : index
    %c0_22 = arith.constant 0 : index
    %69 = vector.load %arg1[%c0_20, %c3, %c0_21, %c0_22] : memref<1x8x144x128xf32, #tpu.memory_space<vmem>>, vector<1x1x144x128xf32>
    %70 = vector.shape_cast %69 : vector<1x1x144x128xf32> to vector<144x128xf32>
    %71 = arith.addf %68, %70 : vector<144x128xf32>
    %72 = vector.extract_strided_slice %71 {offsets = [0, 0], sizes = [144, 96], strides = [1, 1]} : vector<144x128xf32> to vector<144x96xf32>
    %73 = arith.negf %72 : vector<144x96xf32>
    %74 = math.exp %73 : vector<144x96xf32>
    %cst_23 = arith.constant 1.000000e+00 : f32
    %75 = vector.broadcast %cst_23 : f32 to vector<144x96xf32>
    %76 = arith.addf %75, %74 : vector<144x96xf32>
    %77 = arith.divf %75, %76 : vector<144x96xf32>
    %78 = vector.extract_strided_slice %71 {offsets = [0, 96], sizes = [144, 32], strides = [1, 1]} : vector<144x128xf32> to vector<144x32xf32>
    %79 = math.tanh %78 : vector<144x32xf32>
    %80 = vector.extract_strided_slice %77 {offsets = [0, 0], sizes = [144, 32], strides = [1, 1]} : vector<144x96xf32> to vector<144x32xf32>
    %81 = vector.extract_strided_slice %77 {offsets = [0, 32], sizes = [144, 32], strides = [1, 1]} : vector<144x96xf32> to vector<144x32xf32>
    %82 = vector.extract_strided_slice %77 {offsets = [0, 64], sizes = [144, 32], strides = [1, 1]} : vector<144x96xf32> to vector<144x32xf32>
    %83 = arith.mulf %81, %64 : vector<144x32xf32>
    %84 = arith.mulf %80, %79 : vector<144x32xf32>
    %85 = arith.addf %83, %84 : vector<144x32xf32>
    %86 = math.tanh %85 : vector<144x32xf32>
    %87 = arith.mulf %82, %86 : vector<144x32xf32>
    %88 = arith.truncf %87 : vector<144x32xf32> to vector<144x32xbf16>
    %cst_24 = arith.constant dense<0.000000e+00> : vector<144x128xf32>
    %89 = tpu.matmul %88, %0, %cst_24 {dimension_numbers = #tpu.dot_dimension_numbers<[1], [0], [0], [1], [0, 0, 1, 1], [], []>} : vector<144x32xbf16>, vector<32x128xbf16>, vector<144x128xf32> -> vector<144x128xf32>
    %c0_25 = arith.constant 0 : index
    %c4 = arith.constant 4 : index
    %c0_26 = arith.constant 0 : index
    %c0_27 = arith.constant 0 : index
    %90 = vector.load %arg1[%c0_25, %c4, %c0_26, %c0_27] : memref<1x8x144x128xf32, #tpu.memory_space<vmem>>, vector<1x1x144x128xf32>
    %91 = vector.shape_cast %90 : vector<1x1x144x128xf32> to vector<144x128xf32>
    %92 = arith.addf %89, %91 : vector<144x128xf32>
    %93 = vector.extract_strided_slice %92 {offsets = [0, 0], sizes = [144, 96], strides = [1, 1]} : vector<144x128xf32> to vector<144x96xf32>
    %94 = arith.negf %93 : vector<144x96xf32>
    %95 = math.exp %94 : vector<144x96xf32>
    %cst_28 = arith.constant 1.000000e+00 : f32
    %96 = vector.broadcast %cst_28 : f32 to vector<144x96xf32>
    %97 = arith.addf %96, %95 : vector<144x96xf32>
    %98 = arith.divf %96, %97 : vector<144x96xf32>
    %99 = vector.extract_strided_slice %92 {offsets = [0, 96], sizes = [144, 32], strides = [1, 1]} : vector<144x128xf32> to vector<144x32xf32>
    %100 = math.tanh %99 : vector<144x32xf32>
    %101 = vector.extract_strided_slice %98 {offsets = [0, 0], sizes = [144, 32], strides = [1, 1]} : vector<144x96xf32> to vector<144x32xf32>
    %102 = vector.extract_strided_slice %98 {offsets = [0, 32], sizes = [144, 32], strides = [1, 1]} : vector<144x96xf32> to vector<144x32xf32>
    %103 = vector.extract_strided_slice %98 {offsets = [0, 64], sizes = [144, 32], strides = [1, 1]} : vector<144x96xf32> to vector<144x32xf32>
    %104 = arith.mulf %102, %85 : vector<144x32xf32>
    %105 = arith.mulf %101, %100 : vector<144x32xf32>
    %106 = arith.addf %104, %105 : vector<144x32xf32>
    %107 = math.tanh %106 : vector<144x32xf32>
    %108 = arith.mulf %103, %107 : vector<144x32xf32>
    %109 = arith.truncf %108 : vector<144x32xf32> to vector<144x32xbf16>
    %cst_29 = arith.constant dense<0.000000e+00> : vector<144x128xf32>
    %110 = tpu.matmul %109, %0, %cst_29 {dimension_numbers = #tpu.dot_dimension_numbers<[1], [0], [0], [1], [0, 0, 1, 1], [], []>} : vector<144x32xbf16>, vector<32x128xbf16>, vector<144x128xf32> -> vector<144x128xf32>
    %c0_30 = arith.constant 0 : index
    %c5 = arith.constant 5 : index
    %c0_31 = arith.constant 0 : index
    %c0_32 = arith.constant 0 : index
    %111 = vector.load %arg1[%c0_30, %c5, %c0_31, %c0_32] : memref<1x8x144x128xf32, #tpu.memory_space<vmem>>, vector<1x1x144x128xf32>
    %112 = vector.shape_cast %111 : vector<1x1x144x128xf32> to vector<144x128xf32>
    %113 = arith.addf %110, %112 : vector<144x128xf32>
    %114 = vector.extract_strided_slice %113 {offsets = [0, 0], sizes = [144, 96], strides = [1, 1]} : vector<144x128xf32> to vector<144x96xf32>
    %115 = arith.negf %114 : vector<144x96xf32>
    %116 = math.exp %115 : vector<144x96xf32>
    %cst_33 = arith.constant 1.000000e+00 : f32
    %117 = vector.broadcast %cst_33 : f32 to vector<144x96xf32>
    %118 = arith.addf %117, %116 : vector<144x96xf32>
    %119 = arith.divf %117, %118 : vector<144x96xf32>
    %120 = vector.extract_strided_slice %113 {offsets = [0, 96], sizes = [144, 32], strides = [1, 1]} : vector<144x128xf32> to vector<144x32xf32>
    %121 = math.tanh %120 : vector<144x32xf32>
    %122 = vector.extract_strided_slice %119 {offsets = [0, 0], sizes = [144, 32], strides = [1, 1]} : vector<144x96xf32> to vector<144x32xf32>
    %123 = vector.extract_strided_slice %119 {offsets = [0, 32], sizes = [144, 32], strides = [1, 1]} : vector<144x96xf32> to vector<144x32xf32>
    %124 = vector.extract_strided_slice %119 {offsets = [0, 64], sizes = [144, 32], strides = [1, 1]} : vector<144x96xf32> to vector<144x32xf32>
    %125 = arith.mulf %123, %106 : vector<144x32xf32>
    %126 = arith.mulf %122, %121 : vector<144x32xf32>
    %127 = arith.addf %125, %126 : vector<144x32xf32>
    %128 = math.tanh %127 : vector<144x32xf32>
    %129 = arith.mulf %124, %128 : vector<144x32xf32>
    %130 = arith.truncf %129 : vector<144x32xf32> to vector<144x32xbf16>
    %cst_34 = arith.constant dense<0.000000e+00> : vector<144x128xf32>
    %131 = tpu.matmul %130, %0, %cst_34 {dimension_numbers = #tpu.dot_dimension_numbers<[1], [0], [0], [1], [0, 0, 1, 1], [], []>} : vector<144x32xbf16>, vector<32x128xbf16>, vector<144x128xf32> -> vector<144x128xf32>
    %c0_35 = arith.constant 0 : index
    %c6 = arith.constant 6 : index
    %c0_36 = arith.constant 0 : index
    %c0_37 = arith.constant 0 : index
    %132 = vector.load %arg1[%c0_35, %c6, %c0_36, %c0_37] : memref<1x8x144x128xf32, #tpu.memory_space<vmem>>, vector<1x1x144x128xf32>
    %133 = vector.shape_cast %132 : vector<1x1x144x128xf32> to vector<144x128xf32>
    %134 = arith.addf %131, %133 : vector<144x128xf32>
    %135 = vector.extract_strided_slice %134 {offsets = [0, 0], sizes = [144, 96], strides = [1, 1]} : vector<144x128xf32> to vector<144x96xf32>
    %136 = arith.negf %135 : vector<144x96xf32>
    %137 = math.exp %136 : vector<144x96xf32>
    %cst_38 = arith.constant 1.000000e+00 : f32
    %138 = vector.broadcast %cst_38 : f32 to vector<144x96xf32>
    %139 = arith.addf %138, %137 : vector<144x96xf32>
    %140 = arith.divf %138, %139 : vector<144x96xf32>
    %141 = vector.extract_strided_slice %134 {offsets = [0, 96], sizes = [144, 32], strides = [1, 1]} : vector<144x128xf32> to vector<144x32xf32>
    %142 = math.tanh %141 : vector<144x32xf32>
    %143 = vector.extract_strided_slice %140 {offsets = [0, 0], sizes = [144, 32], strides = [1, 1]} : vector<144x96xf32> to vector<144x32xf32>
    %144 = vector.extract_strided_slice %140 {offsets = [0, 32], sizes = [144, 32], strides = [1, 1]} : vector<144x96xf32> to vector<144x32xf32>
    %145 = vector.extract_strided_slice %140 {offsets = [0, 64], sizes = [144, 32], strides = [1, 1]} : vector<144x96xf32> to vector<144x32xf32>
    %146 = arith.mulf %144, %127 : vector<144x32xf32>
    %147 = arith.mulf %143, %142 : vector<144x32xf32>
    %148 = arith.addf %146, %147 : vector<144x32xf32>
    %149 = math.tanh %148 : vector<144x32xf32>
    %150 = arith.mulf %145, %149 : vector<144x32xf32>
    %151 = arith.truncf %150 : vector<144x32xf32> to vector<144x32xbf16>
    %cst_39 = arith.constant dense<0.000000e+00> : vector<144x128xf32>
    %152 = tpu.matmul %151, %0, %cst_39 {dimension_numbers = #tpu.dot_dimension_numbers<[1], [0], [0], [1], [0, 0, 1, 1], [], []>} : vector<144x32xbf16>, vector<32x128xbf16>, vector<144x128xf32> -> vector<144x128xf32>
    %c0_40 = arith.constant 0 : index
    %c7 = arith.constant 7 : index
    %c0_41 = arith.constant 0 : index
    %c0_42 = arith.constant 0 : index
    %153 = vector.load %arg1[%c0_40, %c7, %c0_41, %c0_42] : memref<1x8x144x128xf32, #tpu.memory_space<vmem>>, vector<1x1x144x128xf32>
    %154 = vector.shape_cast %153 : vector<1x1x144x128xf32> to vector<144x128xf32>
    %155 = arith.addf %152, %154 : vector<144x128xf32>
    %156 = vector.extract_strided_slice %155 {offsets = [0, 0], sizes = [144, 96], strides = [1, 1]} : vector<144x128xf32> to vector<144x96xf32>
    %157 = arith.negf %156 : vector<144x96xf32>
    %158 = math.exp %157 : vector<144x96xf32>
    %cst_43 = arith.constant 1.000000e+00 : f32
    %159 = vector.broadcast %cst_43 : f32 to vector<144x96xf32>
    %160 = arith.addf %159, %158 : vector<144x96xf32>
    %161 = arith.divf %159, %160 : vector<144x96xf32>
    %162 = vector.extract_strided_slice %155 {offsets = [0, 96], sizes = [144, 32], strides = [1, 1]} : vector<144x128xf32> to vector<144x32xf32>
    %163 = math.tanh %162 : vector<144x32xf32>
    %164 = vector.extract_strided_slice %161 {offsets = [0, 0], sizes = [144, 32], strides = [1, 1]} : vector<144x96xf32> to vector<144x32xf32>
    %165 = vector.extract_strided_slice %161 {offsets = [0, 32], sizes = [144, 32], strides = [1, 1]} : vector<144x96xf32> to vector<144x32xf32>
    %166 = vector.extract_strided_slice %161 {offsets = [0, 64], sizes = [144, 32], strides = [1, 1]} : vector<144x96xf32> to vector<144x32xf32>
    %167 = arith.mulf %165, %148 : vector<144x32xf32>
    %168 = arith.mulf %164, %163 : vector<144x32xf32>
    %169 = arith.addf %167, %168 : vector<144x32xf32>
    %170 = math.tanh %169 : vector<144x32xf32>
    %171 = arith.mulf %166, %170 : vector<144x32xf32>
    %c0_44 = arith.constant 0 : index
    %c0_45 = arith.constant 0 : index
    %172 = vector.load %arg3[%c0_44, %c0_45] : memref<88x128xf32, #tpu.memory_space<vmem>>, vector<64x16xf32>
    %c64 = arith.constant 64 : index
    %c0_46 = arith.constant 0 : index
    %173 = vector.load %arg3[%c64, %c0_46] : memref<88x128xf32, #tpu.memory_space<vmem>>, vector<1x16xf32>
    %c65 = arith.constant 65 : index
    %c0_47 = arith.constant 0 : index
    %174 = vector.load %arg3[%c65, %c0_47] : memref<88x128xf32, #tpu.memory_space<vmem>>, vector<1x64xf32>
    %c72 = arith.constant 72 : index
    %c0_48 = arith.constant 0 : index
    %175 = vector.load %arg3[%c72, %c0_48] : memref<88x128xf32, #tpu.memory_space<vmem>>, vector<8x128xf32>
    %c80 = arith.constant 80 : index
    %c0_49 = arith.constant 0 : index
    %176 = vector.load %arg3[%c80, %c0_49] : memref<88x128xf32, #tpu.memory_space<vmem>>, vector<1x128xf32>
    %177 = arith.truncf %171 : vector<144x32xf32> to vector<144x32xbf16>
    %cst_50 = arith.constant dense<0.000000e+00> : vector<144x64xf32>
    %178 = tpu.matmul %177, %1, %cst_50 {dimension_numbers = #tpu.dot_dimension_numbers<[1], [0], [0], [1], [0, 0, 1, 1], [], []>} : vector<144x32xbf16>, vector<32x64xbf16>, vector<144x64xf32> -> vector<144x64xf32>
    %179 = vector.broadcast %174 : vector<1x64xf32> to vector<144x64xf32>
    %180 = arith.addf %178, %179 : vector<144x64xf32>
    %181 = math.tanh %180 : vector<144x64xf32>
    %cst_51 = arith.constant dense<0.000000e+00> : vector<144x16xf32>
    %182 = tpu.matmul %181, %172, %cst_51 {dimension_numbers = #tpu.dot_dimension_numbers<[1], [0], [0], [1], [0, 0, 1, 1], [], []>} : vector<144x64xf32>, vector<64x16xf32>, vector<144x16xf32> -> vector<144x16xf32>
    %183 = vector.broadcast %173 : vector<1x16xf32> to vector<144x16xf32>
    %184 = arith.addf %182, %183 : vector<144x16xf32>
    %185 = math.tanh %184 : vector<144x16xf32>
    %186 = vector.extract_strided_slice %185 {offsets = [0, 8], sizes = [144, 8], strides = [1, 1]} : vector<144x16xf32> to vector<144x8xf32>
    %c0_52 = arith.constant 0 : index
    %c0_53 = arith.constant 0 : index
    %187 = vector.load %arg4[%c0_52, %c0_53] : memref<144x144xf32, #tpu.memory_space<vmem>>, vector<144x144xf32>
    %188 = vector.extract_strided_slice %185 {offsets = [0, 0], sizes = [144, 8], strides = [1, 1]} : vector<144x16xf32> to vector<144x8xf32>
    %cst_54 = arith.constant dense<0.000000e+00> : vector<144x8xf32>
    %189 = tpu.matmul %187, %188, %cst_54 {dimension_numbers = #tpu.dot_dimension_numbers<[1], [0], [0], [1], [0, 0, 1, 1], [], []>} : vector<144x144xf32>, vector<144x8xf32>, vector<144x8xf32> -> vector<144x8xf32>
    %190 = arith.mulf %186, %189 : vector<144x8xf32>
    %cst_55 = arith.constant dense<0.000000e+00> : vector<144x128xf32>
    %191 = tpu.matmul %190, %175, %cst_55 {dimension_numbers = #tpu.dot_dimension_numbers<[1], [0], [0], [1], [0, 0, 1, 1], [], []>} : vector<144x8xf32>, vector<8x128xf32>, vector<144x128xf32> -> vector<144x128xf32>
    %192 = vector.broadcast %176 : vector<1x128xf32> to vector<144x128xf32>
    %193 = arith.addf %191, %192 : vector<144x128xf32>
    %c0_56 = arith.constant 0 : index
    %c0_57 = arith.constant 0 : index
    %c0_58 = arith.constant 0 : index
    %194 = vector.load %arg5[%c0_56, %c0_57, %c0_58] : memref<1x144x128xf32, #tpu.memory_space<vmem>>, vector<1x144x128xf32>
    %195 = vector.shape_cast %194 : vector<1x144x128xf32> to vector<144x128xf32>
    %196 = vector.shape_cast %193 : vector<144x128xf32> to vector<1x144x128xf32>
    tpu.vector_store %arg5[%c0_56, %c0_57, %c0_58], %196 {strides = array<i32>} : memref<1x144x128xf32, #tpu.memory_space<vmem>>, vector<1x144x128xf32>,
    return
  }
  func.func @transform_0(%arg0: i32) -> (i32, i32, i32, i32) {
    %c0_i32 = arith.constant 0 : i32
    %c0_i32_0 = arith.constant 0 : i32
    %c0_i32_1 = arith.constant 0 : i32
    %c0_i32_2 = arith.constant 0 : i32
    return %arg0, %c0_i32, %c0_i32_0, %c0_i32_1 : i32, i32, i32, i32
  }
  func.func @transform_1(%arg0: i32) -> (i32, i32) {
    %c0_i32 = arith.constant 0 : i32
    %c0_i32_0 = arith.constant 0 : i32
    %c0_i32_1 = arith.constant 0 : i32
    return %c0_i32, %c0_i32_0 : i32, i32
  }
  func.func @transform_2(%arg0: i32) -> (i32, i32) {
    %c0_i32 = arith.constant 0 : i32
    %c0_i32_0 = arith.constant 0 : i32
    %c0_i32_1 = arith.constant 0 : i32
    return %c0_i32, %c0_i32_0 : i32, i32
  }
  func.func @transform_3(%arg0: i32) -> (i32, i32) {
    %c0_i32 = arith.constant 0 : i32
    %c0_i32_0 = arith.constant 0 : i32
    %c0_i32_1 = arith.constant 0 : i32
    return %c0_i32, %c0_i32_0 : i32, i32
  }
  func.func @transform_4(%arg0: i32) -> (i32, i32, i32) {
    %c0_i32 = arith.constant 0 : i32
    %c0_i32_0 = arith.constant 0 : i32
    %c0_i32_1 = arith.constant 0 : i32
    return %arg0, %c0_i32, %c0_i32_0 : i32, i32, i32
  }
}

</mosaic_0001>

<llo_original>
// kernel: tile.5
$region0: #{tile.5}
  %s0 = inlined_call_operand.vmem [shape: pred[2,16], index: 0, kind: input, shape index: {}]
  %s1 = inlined_call_operand.vmem [shape: pred[32], index: 1, kind: output, shape index: {}]
  $region1: #{tile.5} parent=0
    #allocation0 [shape = 'u8[4096]{0}', space=vmem, size = 0x1000, scoped, tag = 'scoped mem for output reshape']
    #allocation1 [shape = 'u8[4096]{0}', space=vmem, size = 0x1000, scoped, tag = 'scoped mem for input reshape']
    %s3 = ssub.s32 16, 1
    %s4 = sand.u32 %s3, 15
    %p5 = scmp.ne.s32.totalorder %s4, 0
    %s6 = scalar_select %p5, 1, 0
    %s7 = sand.u32 %s3, 240
    %p8 = scmp.ne.s32.totalorder %s7, 0
    %s9 = scalar_select %p8, 2, 0
    %s10 = sor.u32 %s6, %s9
    %v11 = vld [vmem:[%s0] sm:%s10]
    %v12 = vunpack.c.0.s8 %v11
    %v13 = vunpack.c.1.s8 %v11
    %v14 = vunpack.c.2.s8 %v11
    %v15 = vunpack.c.3.s8 %v11
    %16 = vst [vmem:[#allocation1] sm:%s3] %v12
    %v17 = vld [vmem:[#allocation1] sm:$0x1]
    %vm18 = vcmask 130048
    %19 = vst.msk [vmem:[#allocation0] sm:$0x1] %vm18, %v17
    %s20 = scalar_lea.vmem [#allocation1], 1
    %v21 = vld [vmem:[%s20] sm:$0x1]
    %22 = vrot.lane.b32.xlu0 %v21, 16
    %v23 = vpop.permute.xlu0 %22
    %vm24 = vcmask 261248
    %25 = vst.msk [vmem:[#allocation0] sm:$0x1] %vm24, %v23
    %s27 = ssub.s32 16, 1
    %v28 = vld [vmem:[#allocation0] sm:%s27]
    %s30 = ssub.s32 2, 1
    %v31 = vpack.c.b16 0, %v28
    %v32 = vpack.c.b8 0, %v31
    %33 = vst [vmem:[%s1] sm:%s30] %v32

// kernel: tile.6
$region0: #{tile.6}
  #allocation0 [shape = 's32[1]{0}', space=sflag, size = 0x4, scoped, tag = 'scoped memory for tile.6']
  %s0 = inlined_call_operand.vmem [shape: pred[32], index: 0, kind: input, shape index: {}]
  %s1 = inlined_call_operand.vmem [shape: pred[4,32], index: 1, kind: output, shape index: {}]
  // Predicated region
  $region2: #{tile.6} parent=0 // pred_check
    _
  $region3: #{tile.6} parent=0 // pred_check_branch
    %3 = sbr.rel (0) target = $region5
  $region4: #{tile.6} parent=0 // pred_region
    _
  $region5: #{tile.6} parent=0 // pred_fallthru
    _
  %v4 = vld [vmem:[%s0] ss:$0 sm:$0xff]
  %v6 = vshra.s32 %v4, 0
  %v7 = vand.u32 %v6, 255
  %v8 = vpack.c.b16 0, %v7
  %v9 = vpack.c.b8 0, %v8
  %s11 = ssub.s32 2, 1
  %12 = vst [vmem:[%s1] sm:%s11] %v9

// kernel: tile.7
$region0: #{tile.7}
  %s0 = inlined_call_operand.vmem [shape: pred[4,32], index: 0, kind: input, shape index: {}]
  %s1 = inlined_call_operand.vmem [shape: pred[128], index: 1, kind: output, shape index: {}]
  $region1: #{tile.7} parent=0
    #allocation0 [shape = 'u8[4096]{0}', space=vmem, size = 0x1000, scoped, tag = 'scoped mem for output reshape']
    #allocation1 [shape = 'u8[4096]{0}', space=vmem, size = 0x1000, scoped, tag = 'scoped mem for input reshape']
    %s3 = ssub.s32 16, 1
    %s4 = sand.u32 %s3, 15
    %p5 = scmp.ne.s32.totalorder %s4, 0
    %s6 = scalar_select %p5, 1, 0
    %s7 = sand.u32 %s3, 240
    %p8 = scmp.ne.s32.totalorder %s7, 0
    %s9 = scalar_select %p8, 2, 0
    %s10 = sor.u32 %s6, %s9
    %v11 = vld [vmem:[%s0] sm:%s10]
    %v12 = vunpack.c.0.s8 %v11
    %v13 = vunpack.c.1.s8 %v11
    %v14 = vunpack.c.2.s8 %v11
    %v15 = vunpack.c.3.s8 %v11
    %16 = vst [vmem:[#allocation1] sm:%s3] %v12
    %v17 = vld [vmem:[#allocation1] sm:$0x1]
    %vm18 = vcmask 261120
    %19 = vst.msk [vmem:[#allocation0] sm:$0x1] %vm18, %v17
    %s20 = scalar_lea.vmem [#allocation1], 3
    %v21 = vld [vmem:[%s20] sm:$0x1]
    %22 = vrot.lane.b32.xlu0 %v21, 96
    %v23 = vpop.permute.xlu0 %22
    %vm24 = vcmask 1048320
    %25 = vst.msk [vmem:[#allocation0] sm:$0x1] %vm24, %v23
    %s26 = scalar_lea.vmem [#allocation1], 2
    %v27 = vld [vmem:[%s26] sm:$0x1]
    %28 = vrot.lane.b32.xlu0 %v27, 64
    %v29 = vpop.permute.xlu0 %28
    %vm30 = vcmask 785920
    %31 = vst.msk [vmem:[#allocation0] sm:$0x1] %vm30, %v29
    %s32 = scalar_lea.vmem [#allocation1], 1
    %v33 = vld [vmem:[%s32] sm:$0x1]
    %34 = vrot.lane.b32.xlu0 %v33, 32
    %v35 = vpop.permute.xlu0 %34
    %vm36 = vcmask 523520
    %37 = vst.msk [vmem:[#allocation0] sm:$0x1] %vm36, %v35
    %s39 = ssub.s32 16, 1
    %v40 = vld [vmem:[#allocation0] sm:%s39]
    %s42 = ssub.s32 2, 1
    %v43 = vpack.c.b16 0, %v40
    %v44 = vpack.c.b8 0, %v43
    %45 = vst [vmem:[%s1] sm:%s42] %v44

// kernel: recon_eac_kggat_forward.1
$region0: #{recon_eac_kggat_forward.1}
  #allocation0 [shape = 'u32[]', space=smem, size = 0x4, offset = 0x4, fixed_abs, tag = 'smem constant byte address 0x4 - core index']
  #allocation1 [shape = 'u32[72,128]{1,0:T(1,128)}', space=vmem, size = 0x9000, scoped, tag = 'internal scratch']
  %s0 = inlined_call_operand.vmem [shape: f32[1,8,144,128], index: 0, kind: input, shape index: {}]
  %s1 = inlined_call_operand.vmem [shape: bf16[64,128], index: 1, kind: input, shape index: {}]
  %s2 = inlined_call_operand.vmem [shape: f32[88,128], index: 2, kind: input, shape index: {}]
  %s3 = inlined_call_operand.vmem [shape: f32[144,144], index: 3, kind: input, shape index: {}]
  %s4 = inlined_call_operand.vmem [shape: f32[1,144,128], index: 4, kind: output, shape index: {}]
  %s5 = sld [smem:[#allocation0]]
  $region26: #{recon_eac_kggat_forward.1} parent=0
    _
  %s7 = ssub.s32 1, %s5
  %s8 = scalar_select 0, %s7, %s5
  // Predicated region
  $region2: #{recon_eac_kggat_forward.1} parent=0 // pred_check
    _
  $region3: #{recon_eac_kggat_forward.1} parent=0 // pred_check_branch
    %10 = sbr.rel (0) target = $region5
  $region4: #{recon_eac_kggat_forward.1} parent=0 // pred_region
    _
  $region5: #{recon_eac_kggat_forward.1} parent=0 // pred_fallthru
    _
  // Predicated region
  $region6: #{recon_eac_kggat_forward.1} parent=0 // pred_check
    _
  $region7: #{recon_eac_kggat_forward.1} parent=0 // pred_check_branch
    %12 = sbr.rel (0) target = $region9
  $region8: #{recon_eac_kggat_forward.1} parent=0 // pred_region
    _
  $region9: #{recon_eac_kggat_forward.1} parent=0 // pred_fallthru
    _
  // Predicated region
  $region10: #{recon_eac_kggat_forward.1} parent=0 // pred_check
    _
  $region11: #{recon_eac_kggat_forward.1} parent=0 // pred_check_branch
    %14 = sbr.rel (0) target = $region13
  $region12: #{recon_eac_kggat_forward.1} parent=0 // pred_region
    _
  $region13: #{recon_eac_kggat_forward.1} parent=0 // pred_fallthru
    _
  // Predicated region
  $region14: #{recon_eac_kggat_forward.1} parent=0 // pred_check
    _
  $region15: #{recon_eac_kggat_forward.1} parent=0 // pred_check_branch
    %16 = sbr.rel (0) target = $region17
  $region16: #{recon_eac_kggat_forward.1} parent=0 // pred_region
    _
  $region17: #{recon_eac_kggat_forward.1} parent=0 // pred_fallthru
    _
  %v18 = vld [vmem:[%s1] sm:$0xf]
  %v19 = vld [vmem:[%s1 + $0x4] sm:$0xf]
  %v20 = vld [vmem:[%s1 + $0x8] sm:$0xf]
  %v21 = vld [vmem:[%s1 + $0xc] sm:$0xf]
  %v22 = vld [vmem:[%s1 + $0x10] sm:$0xf]
  %v23 = vld [vmem:[%s1 + $0x14] sm:$0xf]
  %v24 = vld [vmem:[%s1 + $0x18] sm:$0xf]
  %v25 = vld [vmem:[%s1 + $0x1c] sm:$0xf]
  %v26 = vld [vmem:[%s0] sm:$0xff]
  %v27 = vld [vmem:[%s0 + $0x8] sm:$0xff]
  %v28 = vld [vmem:[%s0 + $0x10] sm:$0xff]
  %v29 = vld [vmem:[%s0 + $0x18] sm:$0xff]
  %v30 = vld [vmem:[%s0 + $0x20] sm:$0xff]
  %v31 = vld [vmem:[%s0 + $0x28] sm:$0xff]
  %v32 = vld [vmem:[%s0 + $0x30] sm:$0xff]
  %v33 = vld [vmem:[%s0 + $0x38] sm:$0xff]
  %v34 = vld [vmem:[%s0 + $0x40] sm:$0xff]
  %v35 = vld [vmem:[%s0 + $0x48] sm:$0xff]
  %v36 = vld [vmem:[%s0 + $0x50] sm:$0xff]
  %v37 = vld [vmem:[%s0 + $0x58] sm:$0xff]
  %v38 = vld [vmem:[%s0 + $0x60] sm:$0xff]
  %v39 = vld [vmem:[%s0 + $0x68] sm:$0xff]
  %v40 = vld [vmem:[%s0 + $0x70] sm:$0xff]
  %v41 = vld [vmem:[%s0 + $0x78] sm:$0xff]
  %v42 = vld [vmem:[%s0 + $0x80] sm:$0xff]
  %v43 = vld [vmem:[%s0 + $0x88] sm:$0xff]
  %v48 = vunpack.c.l.b16 %v18
  %v49 = vunpack.c.l.b16 %v19
  %v50 = vunpack.c.l.b16 %v20
  %v51 = vunpack.c.l.b16 %v21
  %v52 = vpack.c.b16 %v49, %v48
  %v53 = vpack.c.b16 %v51, %v50
  %vm56 = vcmask 261120
  %v58 = vsel %vm56, 0, 0
  %60 = vmatpush.bf16.msra.mxu0 0
  %61 = vmatpush.bf16.msra.mxu0 0
  %62 = vmatpush.bf16.msra.mxu0 0
  %63 = vmatpush.bf16.msra.mxu0 0
  %64 = vmatpush.bf16.msra.mxu0 0
  %65 = vmatpush.bf16.msra.mxu0 0
  %66 = vmatpush.bf16.msra.mxu0 %v53
  %67 = vmatpush.bf16.msra.mxu0 %v52
  %68 = vmatmul.bf16.gmra.mxu0 %v58
  %v69 = vpop.f32.mrf.mxu0
  %v70 = vadd.f32 %v26, %v69
  %v71 = vpop.f32.mrf.mxu0
  %v72 = vadd.f32 %v27, %v71
  %73 = vmatmul.bf16.gmra.mxu0 %v58
  %v74 = vpop.f32.mrf.mxu0
  %v75 = vadd.f32 %v28, %v74
  %v76 = vpop.f32.mrf.mxu0
  %v77 = vadd.f32 %v29, %v76
  %78 = vmatmul.bf16.gmra.mxu0 %v58
  %v79 = vpop.f32.mrf.mxu0
  %v80 = vadd.f32 %v30, %v79
  %v81 = vpop.f32.mrf.mxu0
  %v82 = vadd.f32 %v31, %v81
  %83 = vmatmul.bf16.gmra.mxu0 %v58
  %v84 = vpop.f32.mrf.mxu0
  %v85 = vadd.f32 %v32, %v84
  %v86 = vpop.f32.mrf.mxu0
  %v87 = vadd.f32 %v33, %v86
  %88 = vmatmul.bf16.gmra.mxu0 %v58
  %v89 = vpop.f32.mrf.mxu0
  %v90 = vadd.f32 %v34, %v89
  %v91 = vpop.f32.mrf.mxu0
  %v92 = vadd.f32 %v35, %v91
  %93 = vmatmul.bf16.gmra.mxu0 %v58
  %v94 = vpop.f32.mrf.mxu0
  %v95 = vadd.f32 %v36, %v94
  %v96 = vpop.f32.mrf.mxu0
  %v97 = vadd.f32 %v37, %v96
  %98 = vmatmul.bf16.gmra.mxu0 %v58
  %v99 = vpop.f32.mrf.mxu0
  %v100 = vadd.f32 %v38, %v99
  %v101 = vpop.f32.mrf.mxu0
  %v102 = vadd.f32 %v39, %v101
  %103 = vmatmul.bf16.gmra.mxu0 %v58
  %v104 = vpop.f32.mrf.mxu0
  %v105 = vadd.f32 %v40, %v104
  %v106 = vpop.f32.mrf.mxu0
  %v107 = vadd.f32 %v41, %v106
  %108 = vmatmul.bf16.gmra.mxu0 %v58
  %v109 = vpop.f32.mrf.mxu0
  %v110 = vadd.f32 %v42, %v109
  %v111 = vpop.f32.mrf.mxu0
  %v112 = vadd.f32 %v43, %v111
  %113 = vdwg.mxu0
  %v114 = vxor.u32 %v70, 2147483648
  %v115 = vxor.u32 %v72, 2147483648
  %v116 = vxor.u32 %v75, 2147483648
  %v117 = vxor.u32 %v77, 2147483648
  %v118 = vxor.u32 %v80, 2147483648
  %v119 = vxor.u32 %v82, 2147483648
  %v120 = vxor.u32 %v85, 2147483648
  %v121 = vxor.u32 %v87, 2147483648
  %v122 = vxor.u32 %v90, 2147483648
  %v123 = vxor.u32 %v92, 2147483648
  %v124 = vxor.u32 %v95, 2147483648
  %v125 = vxor.u32 %v97, 2147483648
  %v126 = vxor.u32 %v100, 2147483648
  %v127 = vxor.u32 %v102, 2147483648
  %v128 = vxor.u32 %v105, 2147483648
  %v129 = vxor.u32 %v107, 2147483648
  %v130 = vxor.u32 %v110, 2147483648
  %v131 = vxor.u32 %v112, 2147483648
  %v132 = vmul.f32 %v114, 1.442695
  %v133 = vpow.pop %v132
  %v134 = vmul.f32 %v115, 1.442695
  %v135 = vpow.pop %v134
  %v136 = vmul.f32 %v116, 1.442695
  %v137 = vpow.pop %v136
  %v138 = vmul.f32 %v117, 1.442695
  %v139 = vpow.pop %v138
  %v140 = vmul.f32 %v118, 1.442695
  %v141 = vpow.pop %v140
  %v142 = vmul.f32 %v119, 1.442695
  %v143 = vpow.pop %v142
  %v144 = vmul.f32 %v120, 1.442695
  %v145 = vpow.pop %v144
  %v146 = vmul.f32 %v121, 1.442695
  %v147 = vpow.pop %v146
  %v148 = vmul.f32 %v122, 1.442695
  %v149 = vpow.pop %v148
  %v150 = vmul.f32 %v123, 1.442695
  %v151 = vpow.pop %v150
  %v152 = vmul.f32 %v124, 1.442695
  %v153 = vpow.pop %v152
  %v154 = vmul.f32 %v125, 1.442695
  %v155 = vpow.pop %v154
  %v156 = vmul.f32 %v126, 1.442695
  %v157 = vpow.pop %v156
  %v158 = vmul.f32 %v127, 1.442695
  %v159 = vpow.pop %v158
  %v160 = vmul.f32 %v128, 1.442695
  %v161 = vpow.pop %v160
  %v162 = vmul.f32 %v129, 1.442695
  %v163 = vpow.pop %v162
  %v164 = vmul.f32 %v130, 1.442695
  %v165 = vpow.pop %v164
  %v166 = vmul.f32 %v131, 1.442695
  %v167 = vpow.pop %v166
  %v168 = vadd.f32 %v133, 1.0
  %v169 = vadd.f32 %v135, 1.0
  %v170 = vadd.f32 %v137, 1.0
  %v171 = vadd.f32 %v139, 1.0
  %v172 = vadd.f32 %v141, 1.0
  %v173 = vadd.f32 %v143, 1.0
  %v174 = vadd.f32 %v145, 1.0
  %v175 = vadd.f32 %v147, 1.0
  %v176 = vadd.f32 %v149, 1.0
  %v177 = vadd.f32 %v151, 1.0
  %v178 = vadd.f32 %v153, 1.0
  %v179 = vadd.f32 %v155, 1.0
  %v180 = vadd.f32 %v157, 1.0
  %v181 = vadd.f32 %v159, 1.0
  %v182 = vadd.f32 %v161, 1.0
  %v183 = vadd.f32 %v163, 1.0
  %v184 = vadd.f32 %v165, 1.0
  %v185 = vadd.f32 %v167, 1.0
  %v186 = vrcp.pop %v168
  %v187 = vmul.f32 %v168, %v186
  %v188 = vsub.f32 1.0, %v187
  %v189 = vmul.f32 %v186, %v188
  %v190 = vadd.f32 %v186, %v189
  %vm191 = vweird.f32 %v168
  %vm192 = vweird.f32 %v186
  %vm193 = vmor %vm191, %vm192
  %v194 = vsel %vm193, %v186, %v190
  %v195 = vand.u32 2147483647, %v168
  %vm196 = vcmp.eq.f32.partialorder %v195, 8.507059e+37
  %v197 = vand.u32 %v168, 2147483648
  %v198 = vor.u32 1.1754944e-38, %v197
  %v199 = vsel %vm196, %v198, %v194
  %v200 = vmul.f32 1.0, %v199
  %v201 = vrcp.pop %v169
  %v202 = vmul.f32 %v169, %v201
  %v203 = vsub.f32 1.0, %v202
  %v204 = vmul.f32 %v201, %v203
  %v205 = vadd.f32 %v201, %v204
  %vm206 = vweird.f32 %v169
  %vm207 = vweird.f32 %v201
  %vm208 = vmor %vm206, %vm207
  %v209 = vsel %vm208, %v201, %v205
  %v210 = vand.u32 2147483647, %v169
  %vm211 = vcmp.eq.f32.partialorder %v210, 8.507059e+37
  %v212 = vand.u32 %v169, 2147483648
  %v213 = vor.u32 1.1754944e-38, %v212
  %v214 = vsel %vm211, %v213, %v209
  %v215 = vmul.f32 1.0, %v214
  %v216 = vrcp.pop %v170
  %v217 = vmul.f32 %v170, %v216
  %v218 = vsub.f32 1.0, %v217
  %v219 = vmul.f32 %v216, %v218
  %v220 = vadd.f32 %v216, %v219
  %vm221 = vweird.f32 %v170
  %vm222 = vweird.f32 %v216
  %vm223 = vmor %vm221, %vm222
  %v224 = vsel %vm223, %v216, %v220
  %v225 = vand.u32 2147483647, %v170
  %vm226 = vcmp.eq.f32.partialorder %v225, 8.507059e+37
  %v227 = vand.u32 %v170, 2147483648
  %v228 = vor.u32 1.1754944e-38, %v227
  %v229 = vsel %vm226, %v228, %v224
  %v230 = vmul.f32 1.0, %v229
  %v231 = vrcp.pop %v171
  %v232 = vmul.f32 %v171, %v231
  %v233 = vsub.f32 1.0, %v232
  %v234 = vmul.f32 %v231, %v233
  %v235 = vadd.f32 %v231, %v234
  %vm236 = vweird.f32 %v171
  %vm237 = vweird.f32 %v231
  %vm238 = vmor %vm236, %vm237
  %v239 = vsel %vm238, %v231, %v235
  %v240 = vand.u32 2147483647, %v171
  %vm241 = vcmp.eq.f32.partialorder %v240, 8.507059e+37
  %v242 = vand.u32 %v171, 2147483648
  %v243 = vor.u32 1.1754944e-38, %v242
  %v244 = vsel %vm241, %v243, %v239
  %v245 = vmul.f32 1.0, %v244
  %v246 = vrcp.pop %v172
  %v247 = vmul.f32 %v172, %v246
  %v248 = vsub.f32 1.0, %v247
  %v249 = vmul.f32 %v246, %v248
  %v250 = vadd.f32 %v246, %v249
  %vm251 = vweird.f32 %v172
  %vm252 = vweird.f32 %v246
  %vm253 = vmor %vm251, %vm252
  %v254 = vsel %vm253, %v246, %v250
  %v255 = vand.u32 2147483647, %v172
  %vm256 = vcmp.eq.f32.partialorder %v255, 8.507059e+37
  %v257 = vand.u32 %v172, 2147483648
  %v258 = vor.u32 1.1754944e-38, %v257
  %v259 = vsel %vm256, %v258, %v254
  %v260 = vmul.f32 1.0, %v259
  %v261 = vrcp.pop %v173
  %v262 = vmul.f32 %v173, %v261
  %v263 = vsub.f32 1.0, %v262
  %v264 = vmul.f32 %v261, %v263
  %v265 = vadd.f32 %v261, %v264
  %vm266 = vweird.f32 %v173
  %vm267 = vweird.f32 %v261
  %vm268 = vmor %vm266, %vm267
  %v269 = vsel %vm268, %v261, %v265
  %v270 = vand.u32 2147483647, %v173
  %vm271 = vcmp.eq.f32.partialorder %v270, 8.507059e+37
  %v272 = vand.u32 %v173, 2147483648
  %v273 = vor.u32 1.1754944e-38, %v272
  %v274 = vsel %vm271, %v273, %v269
  %v275 = vmul.f32 1.0, %v274
  %v276 = vrcp.pop %v174
  %v277 = vmul.f32 %v174, %v276
  %v278 = vsub.f32 1.0, %v277
  %v279 = vmul.f32 %v276, %v278
  %v280 = vadd.f32 %v276, %v279
  %vm281 = vweird.f32 %v174
  %vm282 = vweird.f32 %v276
  %vm283 = vmor %vm281, %vm282
  %v284 = vsel %vm283, %v276, %v280
  %v285 = vand.u32 2147483647, %v174
  %vm286 = vcmp.eq.f32.partialorder %v285, 8.507059e+37
  %v287 = vand.u32 %v174, 2147483648
  %v288 = vor.u32 1.1754944e-38, %v287
  %v289 = vsel %vm286, %v288, %v284
  %v290 = vmul.f32 1.0, %v289
  %v291 = vrcp.pop %v175
  %v292 = vmul.f32 %v175, %v291
  %v293 = vsub.f32 1.0, %v292
  %v294 = vmul.f32 %v291, %v293
  %v295 = vadd.f32 %v291, %v294
  %vm296 = vweird.f32 %v175
  %vm297 = vweird.f32 %v291
  %vm298 = vmor %vm296, %vm297
  %v299 = vsel %vm298, %v291, %v295
  %v300 = vand.u32 2147483647, %v175
  %vm301 = vcmp.eq.f32.partialorder %v300, 8.507059e+37
  %v302 = vand.u32 %v175, 2147483648
  %v303 = vor.u32 1.1754944e-38, %v302
  %v304 = vsel %vm301, %v303, %v299
  %v305 = vmul.f32 1.0, %v304
  %v306 = vrcp.pop %v176
  %v307 = vmul.f32 %v176, %v306
  %v308 = vsub.f32 1.0, %v307
  %v309 = vmul.f32 %v306, %v308
  %v310 = vadd.f32 %v306, %v309
  %vm311 = vweird.f32 %v176
  %vm312 = vweird.f32 %v306
  %vm313 = vmor %vm311, %vm312
  %v314 = vsel %vm313, %v306, %v310
  %v315 = vand.u32 2147483647, %v176
  %vm316 = vcmp.eq.f32.partialorder %v315, 8.507059e+37
  %v317 = vand.u32 %v176, 2147483648
  %v318 = vor.u32 1.1754944e-38, %v317
  %v319 = vsel %vm316, %v318, %v314
  %v320 = vmul.f32 1.0, %v319
  %v321 = vrcp.pop %v177
  %v322 = vmul.f32 %v177, %v321
  %v323 = vsub.f32 1.0, %v322
  %v324 = vmul.f32 %v321, %v323
  %v325 = vadd.f32 %v321, %v324
  %vm326 = vweird.f32 %v177
  %vm327 = vweird.f32 %v321
  %vm328 = vmor %vm326, %vm327
  %v329 = vsel %vm328, %v321, %v325
  %v330 = vand.u32 2147483647, %v177
  %vm331 = vcmp.eq.f32.partialorder %v330, 8.507059e+37
  %v332 = vand.u32 %v177, 2147483648
  %v333 = vor.u32 1.1754944e-38, %v332
  %v334 = vsel %vm331, %v333, %v329
  %v335 = vmul.f32 1.0, %v334
  %v336 = vrcp.pop %v178
  %v337 = vmul.f32 %v178, %v336
  %v338 = vsub.f32 1.0, %v337
  %v339 = vmul.f32 %v336, %v338
  %v340 = vadd.f32 %v336, %v339
  %vm341 = vweird.f32 %v178
  %vm342 = vweird.f32 %v336
  %vm343 = vmor %vm341, %vm342
  %v344 = vsel %vm343, %v336, %v340
  %v345 = vand.u32 2147483647, %v178
  %vm346 = vcmp.eq.f32.partialorder %v345, 8.507059e+37
  %v347 = vand.u32 %v178, 2147483648
  %v348 = vor.u32 1.1754944e-38, %v347
  %v349 = vsel %vm346, %v348, %v344
  %v350 = vmul.f32 1.0, %v349
  %v351 = vrcp.pop %v179
  %v352 = vmul.f32 %v179, %v351
  %v353 = vsub.f32 1.0, %v352
  %v354 = vmul.f32 %v351, %v353
  %v355 = vadd.f32 %v351, %v354
  %vm356 = vweird.f32 %v179
  %vm357 = vweird.f32 %v351
  %vm358 = vmor %vm356, %vm357
  %v359 = vsel %vm358, %v351, %v355
  %v360 = vand.u32 2147483647, %v179
  %vm361 = vcmp.eq.f32.partialorder %v360, 8.507059e+37
  %v362 = vand.u32 %v179, 2147483648
  %v363 = vor.u32 1.1754944e-38, %v362
  %v364 = vsel %vm361, %v363, %v359
  %v365 = vmul.f32 1.0, %v364
  %v366 = vrcp.pop %v180
  %v367 = vmul.f32 %v180, %v366
  %v368 = vsub.f32 1.0, %v367
  %v369 = vmul.f32 %v366, %v368
  %v370 = vadd.f32 %v366, %v369
  %vm371 = vweird.f32 %v180
  %vm372 = vweird.f32 %v366
  %vm373 = vmor %vm371, %vm372
  %v374 = vsel %vm373, %v366, %v370
  %v375 = vand.u32 2147483647, %v180
  %vm376 = vcmp.eq.f32.partialorder %v375, 8.507059e+37
  %v377 = vand.u32 %v180, 2147483648
  %v378 = vor.u32 1.1754944e-38, %v377
  %v379 = vsel %vm376, %v378, %v374
  %v380 = vmul.f32 1.0, %v379
  %v381 = vrcp.pop %v181
  %v382 = vmul.f32 %v181, %v381
  %v383 = vsub.f32 1.0, %v382
  %v384 = vmul.f32 %v381, %v383
  %v385 = vadd.f32 %v381, %v384
  %vm386 = vweird.f32 %v181
  %vm387 = vweird.f32 %v381
  %vm388 = vmor %vm386, %vm387
  %v389 = vsel %vm388, %v381, %v385
  %v390 = vand.u32 2147483647, %v181
  %vm391 = vcmp.eq.f32.partialorder %v390, 8.507059e+37
  %v392 = vand.u32 %v181, 2147483648
  %v393 = vor.u32 1.1754944e-38, %v392
  %v394 = vsel %vm391, %v393, %v389
  %v395 = vmul.f32 1.0, %v394
  %v396 = vrcp.pop %v182
  %v397 = vmul.f32 %v182, %v396
  %v398 = vsub.f32 1.0, %v397
  %v399 = vmul.f32 %v396, %v398
  %v400 = vadd.f32 %v396, %v399
  %vm401 = vweird.f32 %v182
  %vm402 = vweird.f32 %v396
  %vm403 = vmor %vm401, %vm402
  %v404 = vsel %vm403, %v396, %v400
  %v405 = vand.u32 2147483647, %v182
  %vm406 = vcmp.eq.f32.partialorder %v405, 8.507059e+37
  %v407 = vand.u32 %v182, 2147483648
  %v408 = vor.u32 1.1754944e-38, %v407
  %v409 = vsel %vm406, %v408, %v404
  %v410 = vmul.f32 1.0, %v409
  %v411 = vrcp.pop %v183
  %v412 = vmul.f32 %v183, %v411
  %v413 = vsub.f32 1.0, %v412
  %v414 = vmul.f32 %v411, %v413
  %v415 = vadd.f32 %v411, %v414
  %vm416 = vweird.f32 %v183
  %vm417 = vweird.f32 %v411
  %vm418 = vmor %vm416, %vm417
  %v419 = vsel %vm418, %v411, %v415
  %v420 = vand.u32 2147483647, %v183
  %vm421 = vcmp.eq.f32.partialorder %v420, 8.507059e+37
  %v422 = vand.u32 %v183, 2147483648
  %v423 = vor.u32 1.1754944e-38, %v422
  %v424 = vsel %vm421, %v423, %v419
  %v425 = vmul.f32 1.0, %v424
  %v426 = vrcp.pop %v184
  %v427 = vmul.f32 %v184, %v426
  %v428 = vsub.f32 1.0, %v427
  %v429 = vmul.f32 %v426, %v428
  %v430 = vadd.f32 %v426, %v429
  %vm431 = vweird.f32 %v184
  %vm432 = vweird.f32 %v426
  %vm433 = vmor %vm431, %vm432
  %v434 = vsel %vm433, %v426, %v430
  %v435 = vand.u32 2147483647, %v184
  %vm436 = vcmp.eq.f32.partialorder %v435, 8.507059e+37
  %v437 = vand.u32 %v184, 2147483648
  %v438 = vor.u32 1.1754944e-38, %v437
  %v439 = vsel %vm436, %v438, %v434
  %v440 = vmul.f32 1.0, %v439
  %v441 = vrcp.pop %v185
  %v442 = vmul.f32 %v185, %v441
  %v443 = vsub.f32 1.0, %v442
  %v444 = vmul.f32 %v441, %v443
  %v445 = vadd.f32 %v441, %v444
  %vm446 = vweird.f32 %v185
  %vm447 = vweird.f32 %v441
  %vm448 = vmor %vm446, %vm447
  %v449 = vsel %vm448, %v441, %v445
  %v450 = vand.u32 2147483647, %v185
  %vm451 = vcmp.eq.f32.partialorder %v450, 8.507059e+37
  %v452 = vand.u32 %v185, 2147483648
  %v453 = vor.u32 1.1754944e-38, %v452
  %v454 = vsel %vm451, %v453, %v449
  %v455 = vmul.f32 1.0, %v454
  %v456 = vtanh.pop %v70
  %v457 = vtanh.pop %v72
  %v458 = vtanh.pop %v75
  %v459 = vtanh.pop %v77
  %v460 = vtanh.pop %v80
  %v461 = vtanh.pop %v82
  %v462 = vtanh.pop %v85
  %v463 = vtanh.pop %v87
  %v464 = vtanh.pop %v90
  %v465 = vtanh.pop %v92
  %v466 = vtanh.pop %v95
  %v467 = vtanh.pop %v97
  %v468 = vtanh.pop %v100
  %v469 = vtanh.pop %v102
  %v470 = vtanh.pop %v105
  %v471 = vtanh.pop %v107
  %v472 = vtanh.pop %v110
  %v473 = vtanh.pop %v112
  %v474 = vmul.f32 %v200, 0.0
  %v475 = vmul.f32 %v215, 0.0
  %v476 = vmul.f32 %v230, 0.0
  %v477 = vmul.f32 %v245, 0.0
  %v478 = vmul.f32 %v260, 0.0
  %v479 = vmul.f32 %v275, 0.0
  %v480 = vmul.f32 %v290, 0.0
  %v481 = vmul.f32 %v305, 0.0
  %v482 = vmul.f32 %v320, 0.0
  %v483 = vmul.f32 %v335, 0.0
  %v484 = vmul.f32 %v350, 0.0
  %v485 = vmul.f32 %v365, 0.0
  %v486 = vmul.f32 %v380, 0.0
  %v487 = vmul.f32 %v395, 0.0
  %v488 = vmul.f32 %v410, 0.0
  %v489 = vmul.f32 %v425, 0.0
  %v490 = vmul.f32 %v440, 0.0
  %v491 = vmul.f32 %v455, 0.0
  %510 = vrot.lane.b32.xlu0 %v456, 32
  %v511 = vpop.permute.xlu0 %510
  %512 = vrot.lane.b32.xlu0 %v457, 32
  %v513 = vpop.permute.xlu0 %512
  %514 = vrot.lane.b32.xlu0 %v458, 32
  %v515 = vpop.permute.xlu0 %514
  %516 = vrot.lane.b32.xlu0 %v459, 32
  %v517 = vpop.permute.xlu0 %516
  %518 = vrot.lane.b32.xlu0 %v460, 32
  %v519 = vpop.permute.xlu0 %518
  %520 = vrot.lane.b32.xlu0 %v461, 32
  %v521 = vpop.permute.xlu0 %520
  %522 = vrot.lane.b32.xlu0 %v462, 32
  %v523 = vpop.permute.xlu0 %522
  %524 = vrot.lane.b32.xlu0 %v463, 32
  %v525 = vpop.permute.xlu0 %524
  %526 = vrot.lane.b32.xlu0 %v464, 32
  %v527 = vpop.permute.xlu0 %526
  %528 = vrot.lane.b32.xlu0 %v465, 32
  %v529 = vpop.permute.xlu0 %528
  %530 = vrot.lane.b32.xlu0 %v466, 32
  %v531 = vpop.permute.xlu0 %530
  %532 = vrot.lane.b32.xlu0 %v467, 32
  %v533 = vpop.permute.xlu0 %532
  %534 = vrot.lane.b32.xlu0 %v468, 32
  %v535 = vpop.permute.xlu0 %534
  %536 = vrot.lane.b32.xlu0 %v469, 32
  %v537 = vpop.permute.xlu0 %536
  %538 = vrot.lane.b32.xlu0 %v470, 32
  %v539 = vpop.permute.xlu0 %538
  %540 = vrot.lane.b32.xlu0 %v471, 32
  %v541 = vpop.permute.xlu0 %540
  %542 = vrot.lane.b32.xlu0 %v472, 32
  %v543 = vpop.permute.xlu0 %542
  %544 = vrot.lane.b32.xlu0 %v473, 32
  %v545 = vpop.permute.xlu0 %544
  %v564 = vmul.f32 %v200, %v511
  %v565 = vmul.f32 %v215, %v513
  %v566 = vmul.f32 %v230, %v515
  %v567 = vmul.f32 %v245, %v517
  %v568 = vmul.f32 %v260, %v519
  %v569 = vmul.f32 %v275, %v521
  %v570 = vmul.f32 %v290, %v523
  %v571 = vmul.f32 %v305, %v525
  %v572 = vmul.f32 %v320, %v527
  %v573 = vmul.f32 %v335, %v529
  %v574 = vmul.f32 %v350, %v531
  %v575 = vmul.f32 %v365, %v533
  %v576 = vmul.f32 %v380, %v535
  %v577 = vmul.f32 %v395, %v537
  %v578 = vmul.f32 %v410, %v539
  %v579 = vmul.f32 %v425, %v541
  %v580 = vmul.f32 %v440, %v543
  %v581 = vmul.f32 %v455, %v545
  %600 = vrot.lane.b32.xlu0 %v564, 32
  %v601 = vpop.permute.xlu0 %600
  %602 = vrot.lane.b32.xlu0 %v565, 32
  %v603 = vpop.permute.xlu0 %602
  %604 = vrot.lane.b32.xlu0 %v566, 32
  %v605 = vpop.permute.xlu0 %604
  %606 = vrot.lane.b32.xlu0 %v567, 32
  %v607 = vpop.permute.xlu0 %606
  %608 = vrot.lane.b32.xlu0 %v568, 32
  %v609 = vpop.permute.xlu0 %608
  %610 = vrot.lane.b32.xlu0 %v569, 32
  %v611 = vpop.permute.xlu0 %610
  %612 = vrot.lane.b32.xlu0 %v570, 32
  %v613 = vpop.permute.xlu0 %612
  %614 = vrot.lane.b32.xlu0 %v571, 32
  %v615 = vpop.permute.xlu0 %614
  %616 = vrot.lane.b32.xlu0 %v572, 32
  %v617 = vpop.permute.xlu0 %616
  %618 = vrot.lane.b32.xlu0 %v573, 32
  %v619 = vpop.permute.xlu0 %618
  %620 = vrot.lane.b32.xlu0 %v574, 32
  %v621 = vpop.permute.xlu0 %620
  %622 = vrot.lane.b32.xlu0 %v575, 32
  %v623 = vpop.permute.xlu0 %622
  %624 = vrot.lane.b32.xlu0 %v576, 32
  %v625 = vpop.permute.xlu0 %624
  %626 = vrot.lane.b32.xlu0 %v577, 32
  %v627 = vpop.permute.xlu0 %626
  %628 = vrot.lane.b32.xlu0 %v578, 32
  %v629 = vpop.permute.xlu0 %628
  %630 = vrot.lane.b32.xlu0 %v579, 32
  %v631 = vpop.permute.xlu0 %630
  %632 = vrot.lane.b32.xlu0 %v580, 32
  %v633 = vpop.permute.xlu0 %632
  %634 = vrot.lane.b32.xlu0 %v581, 32
  %v635 = vpop.permute.xlu0 %634
  %v654 = vadd.f32 %v474, %v601
  %v655 = vadd.f32 %v475, %v603
  %v656 = vadd.f32 %v476, %v605
  %v657 = vadd.f32 %v477, %v607
  %v658 = vadd.f32 %v478, %v609
  %v659 = vadd.f32 %v479, %v611
  %v660 = vadd.f32 %v480, %v613
  %v661 = vadd.f32 %v481, %v615
  %v662 = vadd.f32 %v482, %v617
  %v663 = vadd.f32 %v483, %v619
  %v664 = vadd.f32 %v484, %v621
  %v665 = vadd.f32 %v485, %v623
  %v666 = vadd.f32 %v486, %v625
  %v667 = vadd.f32 %v487, %v627
  %v668 = vadd.f32 %v488, %v629
  %v669 = vadd.f32 %v489, %v631
  %v670 = vadd.f32 %v490, %v633
  %v671 = vadd.f32 %v491, %v635
  %v672 = vtanh.pop %v654
  %v673 = vtanh.pop %v655
  %v674 = vtanh.pop %v656
  %v675 = vtanh.pop %v657
  %v676 = vtanh.pop %v658
  %v677 = vtanh.pop %v659
  %v678 = vtanh.pop %v660
  %v679 = vtanh.pop %v661
  %v680 = vtanh.pop %v662
  %v681 = vtanh.pop %v663
  %v682 = vtanh.pop %v664
  %v683 = vtanh.pop %v665
  %v684 = vtanh.pop %v666
  %v685 = vtanh.pop %v667
  %v686 = vtanh.pop %v668
  %v687 = vtanh.pop %v669
  %v688 = vtanh.pop %v670
  %v689 = vtanh.pop %v671
  %708 = vrot.lane.b32.xlu0 %v672, 32
  %v709 = vpop.permute.xlu0 %708
  %710 = vrot.lane.b32.xlu0 %v673, 32
  %v711 = vpop.permute.xlu0 %710
  %712 = vrot.lane.b32.xlu0 %v674, 32
  %v713 = vpop.permute.xlu0 %712
  %714 = vrot.lane.b32.xlu0 %v675, 32
  %v715 = vpop.permute.xlu0 %714
  %716 = vrot.lane.b32.xlu0 %v676, 32
  %v717 = vpop.permute.xlu0 %716
  %718 = vrot.lane.b32.xlu0 %v677, 32
  %v719 = vpop.permute.xlu0 %718
  %720 = vrot.lane.b32.xlu0 %v678, 32
  %v721 = vpop.permute.xlu0 %720
  %722 = vrot.lane.b32.xlu0 %v679, 32
  %v723 = vpop.permute.xlu0 %722
  %724 = vrot.lane.b32.xlu0 %v680, 32
  %v725 = vpop.permute.xlu0 %724
  %726 = vrot.lane.b32.xlu0 %v681, 32
  %v727 = vpop.permute.xlu0 %726
  %728 = vrot.lane.b32.xlu0 %v682, 32
  %v729 = vpop.permute.xlu0 %728
  %730 = vrot.lane.b32.xlu0 %v683, 32
  %v731 = vpop.permute.xlu0 %730
  %732 = vrot.lane.b32.xlu0 %v684, 32
  %v733 = vpop.permute.xlu0 %732
  %734 = vrot.lane.b32.xlu0 %v685, 32
  %v735 = vpop.permute.xlu0 %734
  %736 = vrot.lane.b32.xlu0 %v686, 32
  %v737 = vpop.permute.xlu0 %736
  %738 = vrot.lane.b32.xlu0 %v687, 32
  %v739 = vpop.permute.xlu0 %738
  %740 = vrot.lane.b32.xlu0 %v688, 32
  %v741 = vpop.permute.xlu0 %740
  %742 = vrot.lane.b32.xlu0 %v689, 32
  %v743 = vpop.permute.xlu0 %742
  %v762 = vmul.f32 %v200, %v709
  %v763 = vmul.f32 %v215, %v711
  %v764 = vmul.f32 %v230, %v713
  %v765 = vmul.f32 %v245, %v715
  %v766 = vmul.f32 %v260, %v717
  %v767 = vmul.f32 %v275, %v719
  %v768 = vmul.f32 %v290, %v721
  %v769 = vmul.f32 %v305, %v723
  %v770 = vmul.f32 %v320, %v725
  %v771 = vmul.f32 %v335, %v727
  %v772 = vmul.f32 %v350, %v729
  %v773 = vmul.f32 %v365, %v731
  %v774 = vmul.f32 %v380, %v733
  %v775 = vmul.f32 %v395, %v735
  %v776 = vmul.f32 %v410, %v737
  %v777 = vmul.f32 %v425, %v739
  %v778 = vmul.f32 %v440, %v741
  %v779 = vmul.f32 %v455, %v743
  %v780 = vpack.c.bf16 %v763, %v762
  %v781 = vpack.c.bf16 %v765, %v764
  %v782 = vpack.c.bf16 %v767, %v766
  %v783 = vpack.c.bf16 %v769, %v768
  %v784 = vpack.c.bf16 %v771, %v770
  %v785 = vpack.c.bf16 %v773, %v772
  %v786 = vpack.c.bf16 %v775, %v774
  %v787 = vpack.c.bf16 %v777, %v776
  %v788 = vpack.c.bf16 %v779, %v778
  %s789 = scalar_lea.vmem %s0, 144
  %v790 = vld [vmem:[%s789] sm:$0xff]
  %v791 = vld [vmem:[%s789 + $0x8] sm:$0xff]
  %v792 = vld [vmem:[%s789 + $0x10] sm:$0xff]
  %v793 = vld [vmem:[%s789 + $0x18] sm:$0xff]
  %v794 = vld [vmem:[%s789 + $0x20] sm:$0xff]
  %v795 = vld [vmem:[%s789 + $0x28] sm:$0xff]
  %v796 = vld [vmem:[%s789 + $0x30] sm:$0xff]
  %v797 = vld [vmem:[%s789 + $0x38] sm:$0xff]
  %v798 = vld [vmem:[%s789 + $0x40] sm:$0xff]
  %v799 = vld [vmem:[%s789 + $0x48] sm:$0xff]
  %v800 = vld [vmem:[%s789 + $0x50] sm:$0xff]
  %v801 = vld [vmem:[%s789 + $0x58] sm:$0xff]
  %v802 = vld [vmem:[%s789 + $0x60] sm:$0xff]
  %v803 = vld [vmem:[%s789 + $0x68] sm:$0xff]
  %v804 = vld [vmem:[%s789 + $0x70] sm:$0xff]
  %v805 = vld [vmem:[%s789 + $0x78] sm:$0xff]
  %v806 = vld [vmem:[%s789 + $0x80] sm:$0xff]
  %v807 = vld [vmem:[%s789 + $0x88] sm:$0xff]
  %817 = vrot.lane.b32.xlu0 %v780, 64
  %v818 = vpop.permute.xlu0 %817
  %819 = vrot.lane.b32.xlu0 %v781, 64
  %v820 = vpop.permute.xlu0 %819
  %821 = vrot.lane.b32.xlu0 %v782, 64
  %v822 = vpop.permute.xlu0 %821
  %823 = vrot.lane.b32.xlu0 %v783, 64
  %v824 = vpop.permute.xlu0 %823
  %825 = vrot.lane.b32.xlu0 %v784, 64
  %v826 = vpop.permute.xlu0 %825
  %827 = vrot.lane.b32.xlu0 %v785, 64
  %v828 = vpop.permute.xlu0 %827
  %829 = vrot.lane.b32.xlu0 %v786, 64
  %v830 = vpop.permute.xlu0 %829
  %831 = vrot.lane.b32.xlu0 %v787, 64
  %v832 = vpop.permute.xlu0 %831
  %833 = vrot.lane.b32.xlu0 %v788, 64
  %v834 = vpop.permute.xlu0 %833
  %v836 = vsel %vm56, %v818, 0
  %v839 = vsel %vm56, %v820, 0
  %v842 = vsel %vm56, %v822, 0
  %v845 = vsel %vm56, %v824, 0
  %v848 = vsel %vm56, %v826, 0
  %v851 = vsel %vm56, %v828, 0
  %v854 = vsel %vm56, %v830, 0
  %v857 = vsel %vm56, %v832, 0
  %v860 = vsel %vm56, %v834, 0
  %862 = vmatpush.bf16.msra.mxu0 0
  %863 = vmatpush.bf16.msra.mxu0 0
  %864 = vmatpush.bf16.msra.mxu0 0
  %865 = vmatpush.bf16.msra.mxu0 0
  %866 = vmatpush.bf16.msra.mxu0 0
  %867 = vmatpush.bf16.msra.mxu0 0
  %868 = vmatpush.bf16.msra.mxu0 %v53
  %869 = vmatpush.bf16.msra.mxu0 %v52
  %870 = vmatmul.bf16.gmra.mxu0 %v836
  %v871 = vpop.f32.mrf.mxu0
  %v872 = vadd.f32 %v790, %v871
  %v873 = vpop.f32.mrf.mxu0
  %v874 = vadd.f32 %v791, %v873
  %875 = vmatmul.bf16.gmra.mxu0 %v839
  %v876 = vpop.f32.mrf.mxu0
  %v877 = vadd.f32 %v792, %v876
  %v878 = vpop.f32.mrf.mxu0
  %v879 = vadd.f32 %v793, %v878
  %880 = vmatmul.bf16.gmra.mxu0 %v842
  %v881 = vpop.f32.mrf.mxu0
  %v882 = vadd.f32 %v794, %v881
  %v883 = vpop.f32.mrf.mxu0
  %v884 = vadd.f32 %v795, %v883
  %885 = vmatmul.bf16.gmra.mxu0 %v845
  %v886 = vpop.f32.mrf.mxu0
  %v887 = vadd.f32 %v796, %v886
  %v888 = vpop.f32.mrf.mxu0
  %v889 = vadd.f32 %v797, %v888
  %890 = vmatmul.bf16.gmra.mxu0 %v848
  %v891 = vpop.f32.mrf.mxu0
  %v892 = vadd.f32 %v798, %v891
  %v893 = vpop.f32.mrf.mxu0
  %v894 = vadd.f32 %v799, %v893
  %895 = vmatmul.bf16.gmra.mxu0 %v851
  %v896 = vpop.f32.mrf.mxu0
  %v897 = vadd.f32 %v800, %v896
  %v898 = vpop.f32.mrf.mxu0
  %v899 = vadd.f32 %v801, %v898
  %900 = vmatmul.bf16.gmra.mxu0 %v854
  %v901 = vpop.f32.mrf.mxu0
  %v902 = vadd.f32 %v802, %v901
  %v903 = vpop.f32.mrf.mxu0
  %v904 = vadd.f32 %v803, %v903
  %905 = vmatmul.bf16.gmra.mxu0 %v857
  %v906 = vpop.f32.mrf.mxu0
  %v907 = vadd.f32 %v804, %v906
  %v908 = vpop.f32.mrf.mxu0
  %v909 = vadd.f32 %v805, %v908
  %910 = vmatmul.bf16.gmra.mxu0 %v860
  %v911 = vpop.f32.mrf.mxu0
  %v912 = vadd.f32 %v806, %v911
  %v913 = vpop.f32.mrf.mxu0
  %v914 = vadd.f32 %v807, %v913
  %915 = vdwg.mxu0
  %v916 = vxor.u32 %v872, 2147483648
  %v917 = vxor.u32 %v874, 2147483648
  %v918 = vxor.u32 %v877, 2147483648
  %v919 = vxor.u32 %v879, 2147483648
  %v920 = vxor.u32 %v882, 2147483648
  %v921 = vxor.u32 %v884, 2147483648
  %v922 = vxor.u32 %v887, 2147483648
  %v923 = vxor.u32 %v889, 2147483648
  %v924 = vxor.u32 %v892, 2147483648
  %v925 = vxor.u32 %v894, 2147483648
  %v926 = vxor.u32 %v897, 2147483648
  %v927 = vxor.u32 %v899, 2147483648
  %v928 = vxor.u32 %v902, 2147483648
  %v929 = vxor.u32 %v904, 2147483648
  %v930 = vxor.u32 %v907, 2147483648
  %v931 = vxor.u32 %v909, 2147483648
  %v932 = vxor.u32 %v912, 2147483648
  %v933 = vxor.u32 %v914, 2147483648
  %v934 = vmul.f32 %v916, 1.442695
  %v935 = vpow.pop %v934
  %v936 = vmul.f32 %v917, 1.442695
  %v937 = vpow.pop %v936
  %v938 = vmul.f32 %v918, 1.442695
  %v939 = vpow.pop %v938
  %v940 = vmul.f32 %v919, 1.442695
  %v941 = vpow.pop %v940
  %v942 = vmul.f32 %v920, 1.442695
  %v943 = vpow.pop %v942
  %v944 = vmul.f32 %v921, 1.442695
  %v945 = vpow.pop %v944
  %v946 = vmul.f32 %v922, 1.442695
  %v947 = vpow.pop %v946
  %v948 = vmul.f32 %v923, 1.442695
  %v949 = vpow.pop %v948
  %v950 = vmul.f32 %v924, 1.442695
  %v951 = vpow.pop %v950
  %v952 = vmul.f32 %v925, 1.442695
  %v953 = vpow.pop %v952
  %v954 = vmul.f32 %v926, 1.442695
  %v955 = vpow.pop %v954
  %v956 = vmul.f32 %v927, 1.442695
  %v957 = vpow.pop %v956
  %v958 = vmul.f32 %v928, 1.442695
  %v959 = vpow.pop %v958
  %v960 = vmul.f32 %v929, 1.442695
  %v961 = vpow.pop %v960
  %v962 = vmul.f32 %v930, 1.442695
  %v963 = vpow.pop %v962
  %v964 = vmul.f32 %v931, 1.442695
  %v965 = vpow.pop %v964
  %v966 = vmul.f32 %v932, 1.442695
  %v967 = vpow.pop %v966
  %v968 = vmul.f32 %v933, 1.442695
  %v969 = vpow.pop %v968
  %v970 = vadd.f32 %v935, 1.0
  %v971 = vadd.f32 %v937, 1.0
  %v972 = vadd.f32 %v939, 1.0
  %v973 = vadd.f32 %v941, 1.0
  %v974 = vadd.f32 %v943, 1.0
  %v975 = vadd.f32 %v945, 1.0
  %v976 = vadd.f32 %v947, 1.0
  %v977 = vadd.f32 %v949, 1.0
  %v978 = vadd.f32 %v951, 1.0
  %v979 = vadd.f32 %v953, 1.0
  %v980 = vadd.f32 %v955, 1.0
  %v981 = vadd.f32 %v957, 1.0
  %v982 = vadd.f32 %v959, 1.0
  %v983 = vadd.f32 %v961, 1.0
  %v984 = vadd.f32 %v963, 1.0
  %v985 = vadd.f32 %v965, 1.0
  %v986 = vadd.f32 %v967, 1.0
  %v987 = vadd.f32 %v969, 1.0
  %v988 = vrcp.pop %v970
  %v989 = vmul.f32 %v970, %v988
  %v990 = vsub.f32 1.0, %v989
  %v991 = vmul.f32 %v988, %v990
  %v992 = vadd.f32 %v988, %v991
  %vm993 = vweird.f32 %v970
  %vm994 = vweird.f32 %v988
  %vm995 = vmor %vm993, %vm994
  %v996 = vsel %vm995, %v988, %v992
  %v997 = vand.u32 2147483647, %v970
  %vm998 = vcmp.eq.f32.partialorder %v997, 8.507059e+37
  %v999 = vand.u32 %v970, 2147483648
  %v1000 = vor.u32 1.1754944e-38, %v999
  %v1001 = vsel %vm998, %v1000, %v996
  %v1002 = vmul.f32 1.0, %v1001
  %v1003 = vrcp.pop %v971
  %v1004 = vmul.f32 %v971, %v1003
  %v1005 = vsub.f32 1.0, %v1004
  %v1006 = vmul.f32 %v1003, %v1005
  %v1007 = vadd.f32 %v1003, %v1006
  %vm1008 = vweird.f32 %v971
  %vm1009 = vweird.f32 %v1003
  %vm1010 = vmor %vm1008, %vm1009
  %v1011 = vsel %vm1010, %v1003, %v1007
  %v1012 = vand.u32 2147483647, %v971
  %vm1013 = vcmp.eq.f32.partialorder %v1012, 8.507059e+37
  %v1014 = vand.u32 %v971, 2147483648
  %v1015 = vor.u32 1.1754944e-38, %v1014
  %v1016 = vsel %vm1013, %v1015, %v1011
  %v1017 = vmul.f32 1.0, %v1016
  %v1018 = vrcp.pop %v972
  %v1019 = vmul.f32 %v972, %v1018
  %v1020 = vsub.f32 1.0, %v1019
  %v1021 = vmul.f32 %v1018, %v1020
  %v1022 = vadd.f32 %v1018, %v1021
  %vm1023 = vweird.f32 %v972
  %vm1024 = vweird.f32 %v1018
  %vm1025 = vmor %vm1023, %vm1024
  %v1026 = vsel %vm1025, %v1018, %v1022
  %v1027 = vand.u32 2147483647, %v972
  %vm1028 = vcmp.eq.f32.partialorder %v1027, 8.507059e+37
  %v1029 = vand.u32 %v972, 2147483648
  %v1030 = vor.u32 1.1754944e-38, %v1029
  %v1031 = vsel %vm1028, %v1030, %v1026
  %v1032 = vmul.f32 1.0, %v1031
  %v1033 = vrcp.pop %v973
  %v1034 = vmul.f32 %v973, %v1033
  %v1035 = vsub.f32 1.0, %v1034
  %v1036 = vmul.f32 %v1033, %v1035
  %v1037 = vadd.f32 %v1033, %v1036
  %vm1038 = vweird.f32 %v973
  %vm1039 = vweird.f32 %v1033
  %vm1040 = vmor %vm1038, %vm1039
  %v1041 = vsel %vm1040, %v1033, %v1037
  %v1042 = vand.u32 2147483647, %v973
  %vm1043 = vcmp.eq.f32.partialorder %v1042, 8.507059e+37
  %v1044 = vand.u32 %v973, 2147483648
  %v1045 = vor.u32 1.1754944e-38, %v1044
  %v1046 = vsel %vm1043, %v1045, %v1041
  %v1047 = vmul.f32 1.0, %v1046
  %v1048 = vrcp.pop %v974
  %v1049 = vmul.f32 %v974, %v1048
  %v1050 = vsub.f32 1.0, %v1049
  %v1051 = vmul.f32 %v1048, %v1050
  %v1052 = vadd.f32 %v1048, %v1051
  %vm1053 = vweird.f32 %v974
  %vm1054 = vweird.f32 %v1048
  %vm1055 = vmor %vm1053, %vm1054
  %v1056 = vsel %vm1055, %v1048, %v1052
  %v1057 = vand.u32 2147483647, %v974
  %vm1058 = vcmp.eq.f32.partialorder %v1057, 8.507059e+37
  %v1059 = vand.u32 %v974, 2147483648
  %v1060 = vor.u32 1.1754944e-38, %v1059
  %v1061 = vsel %vm1058, %v1060, %v1056
  %v1062 = vmul.f32 1.0, %v1061
  %v1063 = vrcp.pop %v975
  %v1064 = vmul.f32 %v975, %v1063
  %v1065 = vsub.f32 1.0, %v1064
  %v1066 = vmul.f32 %v1063, %v1065
  %v1067 = vadd.f32 %v1063, %v1066
  %vm1068 = vweird.f32 %v975
  %vm1069 = vweird.f32 %v1063
  %vm1070 = vmor %vm1068, %vm1069
  %v1071 = vsel %vm1070, %v1063, %v1067
  %v1072 = vand.u32 2147483647, %v975
  %vm1073 = vcmp.eq.f32.partialorder %v1072, 8.507059e+37
  %v1074 = vand.u32 %v975, 2147483648
  %v1075 = vor.u32 1.1754944e-38, %v1074
  %v1076 = vsel %vm1073, %v1075, %v1071
  %v1077 = vmul.f32 1.0, %v1076
  %v1078 = vrcp.pop %v976
  %v1079 = vmul.f32 %v976, %v1078
  %v1080 = vsub.f32 1.0, %v1079
  %v1081 = vmul.f32 %v1078, %v1080
  %v1082 = vadd.f32 %v1078, %v1081
  %vm1083 = vweird.f32 %v976
  %vm1084 = vweird.f32 %v1078
  %vm1085 = vmor %vm1083, %vm1084
  %v1086 = vsel %vm1085, %v1078, %v1082
  %v1087 = vand.u32 2147483647, %v976
  %vm1088 = vcmp.eq.f32.partialorder %v1087, 8.507059e+37
  %v1089 = vand.u32 %v976, 2147483648
  %v1090 = vor.u32 1.1754944e-38, %v1089
  %v1091 = vsel %vm1088, %v1090, %v1086
  %v1092 = vmul.f32 1.0, %v1091
  %v1093 = vrcp.pop %v977
  %v1094 = vmul.f32 %v977, %v1093
  %v1095 = vsub.f32 1.0, %v1094
  %v1096 = vmul.f32 %v1093, %v1095
  %v1097 = vadd.f32 %v1093, %v1096
  %vm1098 = vweird.f32 %v977
  %vm1099 = vweird.f32 %v1093
  %vm1100 = vmor %vm1098, %vm1099
  %v1101 = vsel %vm1100, %v1093, %v1097
  %v1102 = vand.u32 2147483647, %v977
  %vm1103 = vcmp.eq.f32.partialorder %v1102, 8.507059e+37
  %v1104 = vand.u32 %v977, 2147483648
  %v1105 = vor.u32 1.1754944e-38, %v1104
  %v1106 = vsel %vm1103, %v1105, %v1101
  %v1107 = vmul.f32 1.0, %v1106
  %v1108 = vrcp.pop %v978
  %v1109 = vmul.f32 %v978, %v1108
  %v1110 = vsub.f32 1.0, %v1109
  %v1111 = vmul.f32 %v1108, %v1110
  %v1112 = vadd.f32 %v1108, %v1111
  %vm1113 = vweird.f32 %v978
  %vm1114 = vweird.f32 %v1108
  %vm1115 = vmor %vm1113, %vm1114
  %v1116 = vsel %vm1115, %v1108, %v1112
  %v1117 = vand.u32 2147483647, %v978
  %vm1118 = vcmp.eq.f32.partialorder %v1117, 8.507059e+37
  %v1119 = vand.u32 %v978, 2147483648
  %v1120 = vor.u32 1.1754944e-38, %v1119
  %v1121 = vsel %vm1118, %v1120, %v1116
  %v1122 = vmul.f32 1.0, %v1121
  %v1123 = vrcp.pop %v979
  %v1124 = vmul.f32 %v979, %v1123
  %v1125 = vsub.f32 1.0, %v1124
  %v1126 = vmul.f32 %v1123, %v1125
  %v1127 = vadd.f32 %v1123, %v1126
  %vm1128 = vweird.f32 %v979
  %vm1129 = vweird.f32 %v1123
  %vm1130 = vmor %vm1128, %vm1129
  %v1131 = vsel %vm1130, %v1123, %v1127
  %v1132 = vand.u32 2147483647, %v979
  %vm1133 = vcmp.eq.f32.partialorder %v1132, 8.507059e+37
  %v1134 = vand.u32 %v979, 2147483648
  %v1135 = vor.u32 1.1754944e-38, %v1134
  %v1136 = vsel %vm1133, %v1135, %v1131
  %v1137 = vmul.f32 1.0, %v1136
  %v1138 = vrcp.pop %v980
  %v1139 = vmul.f32 %v980, %v1138
  %v1140 = vsub.f32 1.0, %v1139
  %v1141 = vmul.f32 %v1138, %v1140
  %v1142 = vadd.f32 %v1138, %v1141
  %vm1143 = vweird.f32 %v980
  %vm1144 = vweird.f32 %v1138
  %vm1145 = vmor %vm1143, %vm1144
  %v1146 = vsel %vm1145, %v1138, %v1142
  %v1147 = vand.u32 2147483647, %v980
  %vm1148 = vcmp.eq.f32.partialorder %v1147, 8.507059e+37
  %v1149 = vand.u32 %v980, 2147483648
  %v1150 = vor.u32 1.1754944e-38, %v1149
  %v1151 = vsel %vm1148, %v1150, %v1146
  %v1152 = vmul.f32 1.0, %v1151
  %v1153 = vrcp.pop %v981
  %v1154 = vmul.f32 %v981, %v1153
  %v1155 = vsub.f32 1.0, %v1154
  %v1156 = vmul.f32 %v1153, %v1155
  %v1157 = vadd.f32 %v1153, %v1156
  %vm1158 = vweird.f32 %v981
  %vm1159 = vweird.f32 %v1153
  %vm1160 = vmor %vm1158, %vm1159
  %v1161 = vsel %vm1160, %v1153, %v1157
  %v1162 = vand.u32 2147483647, %v981
  %vm1163 = vcmp.eq.f32.partialorder %v1162, 8.507059e+37
  %v1164 = vand.u32 %v981, 2147483648
  %v1165 = vor.u32 1.1754944e-38, %v1164
  %v1166 = vsel %vm1163, %v1165, %v1161
  %v1167 = vmul.f32 1.0, %v1166
  %v1168 = vrcp.pop %v982
  %v1169 = vmul.f32 %v982, %v1168
  %v1170 = vsub.f32 1.0, %v1169
  %v1171 = vmul.f32 %v1168, %v1170
  %v1172 = vadd.f32 %v1168, %v1171
  %vm1173 = vweird.f32 %v982
  %vm1174 = vweird.f32 %v1168
  %vm1175 = vmor %vm1173, %vm1174
  %v1176 = vsel %vm1175, %v1168, %v1172
  %v1177 = vand.u32 2147483647, %v982
  %vm1178 = vcmp.eq.f32.partialorder %v1177, 8.507059e+37
  %v1179 = vand.u32 %v982, 2147483648
  %v1180 = vor.u32 1.1754944e-38, %v1179
  %v1181 = vsel %vm1178, %v1180, %v1176
  %v1182 = vmul.f32 1.0, %v1181
  %v1183 = vrcp.pop %v983
  %v1184 = vmul.f32 %v983, %v1183
  %v1185 = vsub.f32 1.0, %v1184
  %v1186 = vmul.f32 %v1183, %v1185
  %v1187 = vadd.f32 %v1183, %v1186
  %vm1188 = vweird.f32 %v983
  %vm1189 = vweird.f32 %v1183
  %vm1190 = vmor %vm1188, %vm1189
  %v1191 = vsel %vm1190, %v1183, %v1187
  %v1192 = vand.u32 2147483647, %v983
  %vm1193 = vcmp.eq.f32.partialorder %v1192, 8.507059e+37
  %v1194 = vand.u32 %v983, 2147483648
  %v1195 = vor.u32 1.1754944e-38, %v1194
  %v1196 = vsel %vm1193, %v1195, %v1191
  %v1197 = vmul.f32 1.0, %v1196
  %v1198 = vrcp.pop %v984
  %v1199 = vmul.f32 %v984, %v1198
  %v1200 = vsub.f32 1.0, %v1199
  %v1201 = vmul.f32 %v1198, %v1200
  %v1202 = vadd.f32 %v1198, %v1201
  %vm1203 = vweird.f32 %v984
  %vm1204 = vweird.f32 %v1198
  %vm1205 = vmor %vm1203, %vm1204
  %v1206 = vsel %vm1205, %v1198, %v1202
  %v1207 = vand.u32 2147483647, %v984
  %vm1208 = vcmp.eq.f32.partialorder %v1207, 8.507059e+37
  %v1209 = vand.u32 %v984, 2147483648
  %v1210 = vor.u32 1.1754944e-38, %v1209
  %v1211 = vsel %vm1208, %v1210, %v1206
  %v1212 = vmul.f32 1.0, %v1211
  %v1213 = vrcp.pop %v985
  %v1214 = vmul.f32 %v985, %v1213
  %v1215 = vsub.f32 1.0, %v1214
  %v1216 = vmul.f32 %v1213, %v1215
  %v1217 = vadd.f32 %v1213, %v1216
  %vm1218 = vweird.f32 %v985
  %vm1219 = vweird.f32 %v1213
  %vm1220 = vmor %vm1218, %vm1219
  %v1221 = vsel %vm1220, %v1213, %v1217
  %v1222 = vand.u32 2147483647, %v985
  %vm1223 = vcmp.eq.f32.partialorder %v1222, 8.507059e+37
  %v1224 = vand.u32 %v985, 2147483648
  %v1225 = vor.u32 1.1754944e-38, %v1224
  %v1226 = vsel %vm1223, %v1225, %v1221
  %v1227 = vmul.f32 1.0, %v1226
  %v1228 = vrcp.pop %v986
  %v1229 = vmul.f32 %v986, %v1228
  %v1230 = vsub.f32 1.0, %v1229
  %v1231 = vmul.f32 %v1228, %v1230
  %v1232 = vadd.f32 %v1228, %v1231
  %vm1233 = vweird.f32 %v986
  %vm1234 = vweird.f32 %v1228
  %vm1235 = vmor %vm1233, %vm1234
  %v1236 = vsel %vm1235, %v1228, %v1232
  %v1237 = vand.u32 2147483647, %v986
  %vm1238 = vcmp.eq.f32.partialorder %v1237, 8.507059e+37
  %v1239 = vand.u32 %v986, 2147483648
  %v1240 = vor.u32 1.1754944e-38, %v1239
  %v1241 = vsel %vm1238, %v1240, %v1236
  %v1242 = vmul.f32 1.0, %v1241
  %v1243 = vrcp.pop %v987
  %v1244 = vmul.f32 %v987, %v1243
  %v1245 = vsub.f32 1.0, %v1244
  %v1246 = vmul.f32 %v1243, %v1245
  %v1247 = vadd.f32 %v1243, %v1246
  %vm1248 = vweird.f32 %v987
  %vm1249 = vweird.f32 %v1243
  %vm1250 = vmor %vm1248, %vm1249
  %v1251 = vsel %vm1250, %v1243, %v1247
  %v1252 = vand.u32 2147483647, %v987
  %vm1253 = vcmp.eq.f32.partialorder %v1252, 8.507059e+37
  %v1254 = vand.u32 %v987, 2147483648
  %v1255 = vor.u32 1.1754944e-38, %v1254
  %v1256 = vsel %vm1253, %v1255, %v1251
  %v1257 = vmul.f32 1.0, %v1256
  %v1258 = vtanh.pop %v872
  %v1259 = vtanh.pop %v874
  %v1260 = vtanh.pop %v877
  %v1261 = vtanh.pop %v879
  %v1262 = vtanh.pop %v882
  %v1263 = vtanh.pop %v884
  %v1264 = vtanh.pop %v887
  %v1265 = vtanh.pop %v889
  %v1266 = vtanh.pop %v892
  %v1267 = vtanh.pop %v894
  %v1268 = vtanh.pop %v897
  %v1269 = vtanh.pop %v899
  %v1270 = vtanh.pop %v902
  %v1271 = vtanh.pop %v904
  %v1272 = vtanh.pop %v907
  %v1273 = vtanh.pop %v909
  %v1274 = vtanh.pop %v912
  %v1275 = vtanh.pop %v914
  %v1276 = vmul.f32 %v1002, %v654
  %v1277 = vmul.f32 %v1017, %v655
  %v1278 = vmul.f32 %v1032, %v656
  %v1279 = vmul.f32 %v1047, %v657
  %v1280 = vmul.f32 %v1062, %v658
  %v1281 = vmul.f32 %v1077, %v659
  %v1282 = vmul.f32 %v1092, %v660
  %v1283 = vmul.f32 %v1107, %v661
  %v1284 = vmul.f32 %v1122, %v662
  %v1285 = vmul.f32 %v1137, %v663
  %v1286 = vmul.f32 %v1152, %v664
  %v1287 = vmul.f32 %v1167, %v665
  %v1288 = vmul.f32 %v1182, %v666
  %v1289 = vmul.f32 %v1197, %v667
  %v1290 = vmul.f32 %v1212, %v668
  %v1291 = vmul.f32 %v1227, %v669
  %v1292 = vmul.f32 %v1242, %v670
  %v1293 = vmul.f32 %v1257, %v671
  %1312 = vrot.lane.b32.xlu0 %v1258, 32
  %v1313 = vpop.permute.xlu0 %1312
  %1314 = vrot.lane.b32.xlu0 %v1259, 32
  %v1315 = vpop.permute.xlu0 %1314
  %1316 = vrot.lane.b32.xlu0 %v1260, 32
  %v1317 = vpop.permute.xlu0 %1316
  %1318 = vrot.lane.b32.xlu0 %v1261, 32
  %v1319 = vpop.permute.xlu0 %1318
  %1320 = vrot.lane.b32.xlu0 %v1262, 32
  %v1321 = vpop.permute.xlu0 %1320
  %1322 = vrot.lane.b32.xlu0 %v1263, 32
  %v1323 = vpop.permute.xlu0 %1322
  %1324 = vrot.lane.b32.xlu0 %v1264, 32
  %v1325 = vpop.permute.xlu0 %1324
  %1326 = vrot.lane.b32.xlu0 %v1265, 32
  %v1327 = vpop.permute.xlu0 %1326
  %1328 = vrot.lane.b32.xlu0 %v1266, 32
  %v1329 = vpop.permute.xlu0 %1328
  %1330 = vrot.lane.b32.xlu0 %v1267, 32
  %v1331 = vpop.permute.xlu0 %1330
  %1332 = vrot.lane.b32.xlu0 %v1268, 32
  %v1333 = vpop.permute.xlu0 %1332
  %1334 = vrot.lane.b32.xlu0 %v1269, 32
  %v1335 = vpop.permute.xlu0 %1334
  %1336 = vrot.lane.b32.xlu0 %v1270, 32
  %v1337 = vpop.permute.xlu0 %1336
  %1338 = vrot.lane.b32.xlu0 %v1271, 32
  %v1339 = vpop.permute.xlu0 %1338
  %1340 = vrot.lane.b32.xlu0 %v1272, 32
  %v1341 = vpop.permute.xlu0 %1340
  %1342 = vrot.lane.b32.xlu0 %v1273, 32
  %v1343 = vpop.permute.xlu0 %1342
  %1344 = vrot.lane.b32.xlu0 %v1274, 32
  %v1345 = vpop.permute.xlu0 %1344
  %1346 = vrot.lane.b32.xlu0 %v1275, 32
  %v1347 = vpop.permute.xlu0 %1346
  %v1366 = vmul.f32 %v1002, %v1313
  %v1367 = vmul.f32 %v1017, %v1315
  %v1368 = vmul.f32 %v1032, %v1317
  %v1369 = vmul.f32 %v1047, %v1319
  %v1370 = vmul.f32 %v1062, %v1321
  %v1371 = vmul.f32 %v1077, %v1323
  %v1372 = vmul.f32 %v1092, %v1325
  %v1373 = vmul.f32 %v1107, %v1327
  %v1374 = vmul.f32 %v1122, %v1329
  %v1375 = vmul.f32 %v1137, %v1331
  %v1376 = vmul.f32 %v1152, %v1333
  %v1377 = vmul.f32 %v1167, %v1335
  %v1378 = vmul.f32 %v1182, %v1337
  %v1379 = vmul.f32 %v1197, %v1339
  %v1380 = vmul.f32 %v1212, %v1341
  %v1381 = vmul.f32 %v1227, %v1343
  %v1382 = vmul.f32 %v1242, %v1345
  %v1383 = vmul.f32 %v1257, %v1347
  %1402 = vrot.lane.b32.xlu0 %v1366, 32
  %v1403 = vpop.permute.xlu0 %1402
  %1404 = vrot.lane.b32.xlu0 %v1367, 32
  %v1405 = vpop.permute.xlu0 %1404
  %1406 = vrot.lane.b32.xlu0 %v1368, 32
  %v1407 = vpop.permute.xlu0 %1406
  %1408 = vrot.lane.b32.xlu0 %v1369, 32
  %v1409 = vpop.permute.xlu0 %1408
  %1410 = vrot.lane.b32.xlu0 %v1370, 32
  %v1411 = vpop.permute.xlu0 %1410
  %1412 = vrot.lane.b32.xlu0 %v1371, 32
  %v1413 = vpop.permute.xlu0 %1412
  %1414 = vrot.lane.b32.xlu0 %v1372, 32
  %v1415 = vpop.permute.xlu0 %1414
  %1416 = vrot.lane.b32.xlu0 %v1373, 32
  %v1417 = vpop.permute.xlu0 %1416
  %1418 = vrot.lane.b32.xlu0 %v1374, 32
  %v1419 = vpop.permute.xlu0 %1418
  %1420 = vrot.lane.b32.xlu0 %v1375, 32
  %v1421 = vpop.permute.xlu0 %1420
  %1422 = vrot.lane.b32.xlu0 %v1376, 32
  %v1423 = vpop.permute.xlu0 %1422
  %1424 = vrot.lane.b32.xlu0 %v1377, 32
  %v1425 = vpop.permute.xlu0 %1424
  %1426 = vrot.lane.b32.xlu0 %v1378, 32
  %v1427 = vpop.permute.xlu0 %1426
  %1428 = vrot.lane.b32.xlu0 %v1379, 32
  %v1429 = vpop.permute.xlu0 %1428
  %1430 = vrot.lane.b32.xlu0 %v1380, 32
  %v1431 = vpop.permute.xlu0 %1430
  %1432 = vrot.lane.b32.xlu0 %v1381, 32
  %v1433 = vpop.permute.xlu0 %1432
  %1434 = vrot.lane.b32.xlu0 %v1382, 32
  %v1435 = vpop.permute.xlu0 %1434
  %1436 = vrot.lane.b32.xlu0 %v1383, 32
  %v1437 = vpop.permute.xlu0 %1436
  %v1456 = vadd.f32 %v1276, %v1403
  %v1457 = vadd.f32 %v1277, %v1405
  %v1458 = vadd.f32 %v1278, %v1407
  %v1459 = vadd.f32 %v1279, %v1409
  %v1460 = vadd.f32 %v1280, %v1411
  %v1461 = vadd.f32 %v1281, %v1413
  %v1462 = vadd.f32 %v1282, %v1415
  %v1463 = vadd.f32 %v1283, %v1417
  %v1464 = vadd.f32 %v1284, %v1419
  %v1465 = vadd.f32 %v1285, %v1421
  %v1466 = vadd.f32 %v1286, %v1423
  %v1467 = vadd.f32 %v1287, %v1425
  %v1468 = vadd.f32 %v1288, %v1427
  %v1469 = vadd.f32 %v1289, %v1429
  %v1470 = vadd.f32 %v1290, %v1431
  %v1471 = vadd.f32 %v1291, %v1433
  %v1472 = vadd.f32 %v1292, %v1435
  %v1473 = vadd.f32 %v1293, %v1437
  %v1474 = vtanh.pop %v1456
  %v1475 = vtanh.pop %v1457
  %v1476 = vtanh.pop %v1458
  %v1477 = vtanh.pop %v1459
  %v1478 = vtanh.pop %v1460
  %v1479 = vtanh.pop %v1461
  %v1480 = vtanh.pop %v1462
  %v1481 = vtanh.pop %v1463
  %v1482 = vtanh.pop %v1464
  %v1483 = vtanh.pop %v1465
  %v1484 = vtanh.pop %v1466
  %v1485 = vtanh.pop %v1467
  %v1486 = vtanh.pop %v1468
  %v1487 = vtanh.pop %v1469
  %v1488 = vtanh.pop %v1470
  %v1489 = vtanh.pop %v1471
  %v1490 = vtanh.pop %v1472
  %v1491 = vtanh.pop %v1473
  %1510 = vrot.lane.b32.xlu0 %v1474, 32
  %v1511 = vpop.permute.xlu0 %1510
  %1512 = vrot.lane.b32.xlu0 %v1475, 32
  %v1513 = vpop.permute.xlu0 %1512
  %1514 = vrot.lane.b32.xlu0 %v1476, 32
  %v1515 = vpop.permute.xlu0 %1514
  %1516 = vrot.lane.b32.xlu0 %v1477, 32
  %v1517 = vpop.permute.xlu0 %1516
  %1518 = vrot.lane.b32.xlu0 %v1478, 32
  %v1519 = vpop.permute.xlu0 %1518
  %1520 = vrot.lane.b32.xlu0 %v1479, 32
  %v1521 = vpop.permute.xlu0 %1520
  %1522 = vrot.lane.b32.xlu0 %v1480, 32
  %v1523 = vpop.permute.xlu0 %1522
  %1524 = vrot.lane.b32.xlu0 %v1481, 32
  %v1525 = vpop.permute.xlu0 %1524
  %1526 = vrot.lane.b32.xlu0 %v1482, 32
  %v1527 = vpop.permute.xlu0 %1526
  %1528 = vrot.lane.b32.xlu0 %v1483, 32
  %v1529 = vpop.permute.xlu0 %1528
  %1530 = vrot.lane.b32.xlu0 %v1484, 32
  %v1531 = vpop.permute.xlu0 %1530
  %1532 = vrot.lane.b32.xlu0 %v1485, 32
  %v1533 = vpop.permute.xlu0 %1532
  %1534 = vrot.lane.b32.xlu0 %v1486, 32
  %v1535 = vpop.permute.xlu0 %1534
  %1536 = vrot.lane.b32.xlu0 %v1487, 32
  %v1537 = vpop.permute.xlu0 %1536
  %1538 = vrot.lane.b32.xlu0 %v1488, 32
  %v1539 = vpop.permute.xlu0 %1538
  %1540 = vrot.lane.b32.xlu0 %v1489, 32
  %v1541 = vpop.permute.xlu0 %1540
  %1542 = vrot.lane.b32.xlu0 %v1490, 32
  %v1543 = vpop.permute.xlu0 %1542
  %1544 = vrot.lane.b32.xlu0 %v1491, 32
  %v1545 = vpop.permute.xlu0 %1544
  %v1564 = vmul.f32 %v1002, %v1511
  %v1565 = vmul.f32 %v1017, %v1513
  %v1566 = vmul.f32 %v1032, %v1515
  %v1567 = vmul.f32 %v1047, %v1517
  %v1568 = vmul.f32 %v1062, %v1519
  %v1569 = vmul.f32 %v1077, %v1521
  %v1570 = vmul.f32 %v1092, %v1523
  %v1571 = vmul.f32 %v1107, %v1525
  %v1572 = vmul.f32 %v1122, %v1527
  %v1573 = vmul.f32 %v1137, %v1529
  %v1574 = vmul.f32 %v1152, %v1531
  %v1575 = vmul.f32 %v1167, %v1533
  %v1576 = vmul.f32 %v1182, %v1535
  %v1577 = vmul.f32 %v1197, %v1537
  %v1578 = vmul.f32 %v1212, %v1539
  %v1579 = vmul.f32 %v1227, %v1541
  %v1580 = vmul.f32 %v1242, %v1543
  %v1581 = vmul.f32 %v1257, %v1545
  %v1582 = vpack.c.bf16 %v1565, %v1564
  %v1583 = vpack.c.bf16 %v1567, %v1566
  %v1584 = vpack.c.bf16 %v1569, %v1568
  %v1585 = vpack.c.bf16 %v1571, %v1570
  %v1586 = vpack.c.bf16 %v1573, %v1572
  %v1587 = vpack.c.bf16 %v1575, %v1574
  %v1588 = vpack.c.bf16 %v1577, %v1576
  %v1589 = vpack.c.bf16 %v1579, %v1578
  %v1590 = vpack.c.bf16 %v1581, %v1580
  %s1591 = scalar_lea.vmem %s0, 288
  %v1592 = vld [vmem:[%s1591] sm:$0xff]
  %v1593 = vld [vmem:[%s1591 + $0x8] sm:$0xff]
  %v1594 = vld [vmem:[%s1591 + $0x10] sm:$0xff]
  %v1595 = vld [vmem:[%s1591 + $0x18] sm:$0xff]
  %v1596 = vld [vmem:[%s1591 + $0x20] sm:$0xff]
  %v1597 = vld [vmem:[%s1591 + $0x28] sm:$0xff]
  %v1598 = vld [vmem:[%s1591 + $0x30] sm:$0xff]
  %v1599 = vld [vmem:[%s1591 + $0x38] sm:$0xff]
  %v1600 = vld [vmem:[%s1591 + $0x40] sm:$0xff]
  %v1601 = vld [vmem:[%s1591 + $0x48] sm:$0xff]
  %v1602 = vld [vmem:[%s1591 + $0x50] sm:$0xff]
  %v1603 = vld [vmem:[%s1591 + $0x58] sm:$0xff]
  %v1604 = vld [vmem:[%s1591 + $0x60] sm:$0xff]
  %v1605 = vld [vmem:[%s1591 + $0x68] sm:$0xff]
  %v1606 = vld [vmem:[%s1591 + $0x70] sm:$0xff]
  %v1607 = vld [vmem:[%s1591 + $0x78] sm:$0xff]
  %v1608 = vld [vmem:[%s1591 + $0x80] sm:$0xff]
  %v1609 = vld [vmem:[%s1591 + $0x88] sm:$0xff]
  %1619 = vrot.lane.b32.xlu0 %v1582, 64
  %v1620 = vpop.permute.xlu0 %1619
  %1621 = vrot.lane.b32.xlu0 %v1583, 64
  %v1622 = vpop.permute.xlu0 %1621
  %1623 = vrot.lane.b32.xlu0 %v1584, 64
  %v1624 = vpop.permute.xlu0 %1623
  %1625 = vrot.lane.b32.xlu0 %v1585, 64
  %v1626 = vpop.permute.xlu0 %1625
  %1627 = vrot.lane.b32.xlu0 %v1586, 64
  %v1628 = vpop.permute.xlu0 %1627
  %1629 = vrot.lane.b32.xlu0 %v1587, 64
  %v1630 = vpop.permute.xlu0 %1629
  %1631 = vrot.lane.b32.xlu0 %v1588, 64
  %v1632 = vpop.permute.xlu0 %1631
  %1633 = vrot.lane.b32.xlu0 %v1589, 64
  %v1634 = vpop.permute.xlu0 %1633
  %1635 = vrot.lane.b32.xlu0 %v1590, 64
  %v1636 = vpop.permute.xlu0 %1635
  %v1638 = vsel %vm56, %v1620, 0
  %v1641 = vsel %vm56, %v1622, 0
  %v1644 = vsel %vm56, %v1624, 0
  %v1647 = vsel %vm56, %v1626, 0
  %v1650 = vsel %vm56, %v1628, 0
  %v1653 = vsel %vm56, %v1630, 0
  %v1656 = vsel %vm56, %v1632, 0
  %v1659 = vsel %vm56, %v1634, 0
  %v1662 = vsel %vm56, %v1636, 0
  %1664 = vmatpush.bf16.msra.mxu0 0
  %1665 = vmatpush.bf16.msra.mxu0 0
  %1666 = vmatpush.bf16.msra.mxu0 0
  %1667 = vmatpush.bf16.msra.mxu0 0
  %1668 = vmatpush.bf16.msra.mxu0 0
  %1669 = vmatpush.bf16.msra.mxu0 0
  %1670 = vmatpush.bf16.msra.mxu0 %v53
  %1671 = vmatpush.bf16.msra.mxu0 %v52
  %1672 = vmatmul.bf16.gmra.mxu0 %v1638
  %v1673 = vpop.f32.mrf.mxu0
  %v1674 = vadd.f32 %v1592, %v1673
  %v1675 = vpop.f32.mrf.mxu0
  %v1676 = vadd.f32 %v1593, %v1675
  %1677 = vmatmul.bf16.gmra.mxu0 %v1641
  %v1678 = vpop.f32.mrf.mxu0
  %v1679 = vadd.f32 %v1594, %v1678
  %v1680 = vpop.f32.mrf.mxu0
  %v1681 = vadd.f32 %v1595, %v1680
  %1682 = vmatmul.bf16.gmra.mxu0 %v1644
  %v1683 = vpop.f32.mrf.mxu0
  %v1684 = vadd.f32 %v1596, %v1683
  %v1685 = vpop.f32.mrf.mxu0
  %v1686 = vadd.f32 %v1597, %v1685
  %1687 = vmatmul.bf16.gmra.mxu0 %v1647
  %v1688 = vpop.f32.mrf.mxu0
  %v1689 = vadd.f32 %v1598, %v1688
  %v1690 = vpop.f32.mrf.mxu0
  %v1691 = vadd.f32 %v1599, %v1690
  %1692 = vmatmul.bf16.gmra.mxu0 %v1650
  %v1693 = vpop.f32.mrf.mxu0
  %v1694 = vadd.f32 %v1600, %v1693
  %v1695 = vpop.f32.mrf.mxu0
  %v1696 = vadd.f32 %v1601, %v1695
  %1697 = vmatmul.bf16.gmra.mxu0 %v1653
  %v1698 = vpop.f32.mrf.mxu0
  %v1699 = vadd.f32 %v1602, %v1698
  %v1700 = vpop.f32.mrf.mxu0
  %v1701 = vadd.f32 %v1603, %v1700
  %1702 = vmatmul.bf16.gmra.mxu0 %v1656
  %v1703 = vpop.f32.mrf.mxu0
  %v1704 = vadd.f32 %v1604, %v1703
  %v1705 = vpop.f32.mrf.mxu0
  %v1706 = vadd.f32 %v1605, %v1705
  %1707 = vmatmul.bf16.gmra.mxu0 %v1659
  %v1708 = vpop.f32.mrf.mxu0
  %v1709 = vadd.f32 %v1606, %v1708
  %v1710 = vpop.f32.mrf.mxu0
  %v1711 = vadd.f32 %v1607, %v1710
  %1712 = vmatmul.bf16.gmra.mxu0 %v1662
  %v1713 = vpop.f32.mrf.mxu0
  %v1714 = vadd.f32 %v1608, %v1713
  %v1715 = vpop.f32.mrf.mxu0
  %v1716 = vadd.f32 %v1609, %v1715
  %1717 = vdwg.mxu0
  %v1718 = vxor.u32 %v1674, 2147483648
  %v1719 = vxor.u32 %v1676, 2147483648
  %v1720 = vxor.u32 %v1679, 2147483648
  %v1721 = vxor.u32 %v1681, 2147483648
  %v1722 = vxor.u32 %v1684, 2147483648
  %v1723 = vxor.u32 %v1686, 2147483648
  %v1724 = vxor.u32 %v1689, 2147483648
  %v1725 = vxor.u32 %v1691, 2147483648
  %v1726 = vxor.u32 %v1694, 2147483648
  %v1727 = vxor.u32 %v1696, 2147483648
  %v1728 = vxor.u32 %v1699, 2147483648
  %v1729 = vxor.u32 %v1701, 2147483648
  %v1730 = vxor.u32 %v1704, 2147483648
  %v1731 = vxor.u32 %v1706, 2147483648
  %v1732 = vxor.u32 %v1709, 2147483648
  %v1733 = vxor.u32 %v1711, 2147483648
  %v1734 = vxor.u32 %v1714, 2147483648
  %v1735 = vxor.u32 %v1716, 2147483648
  %v1736 = vmul.f32 %v1718, 1.442695
  %v1737 = vpow.pop %v1736
  %v1738 = vmul.f32 %v1719, 1.442695
  %v1739 = vpow.pop %v1738
  %v1740 = vmul.f32 %v1720, 1.442695
  %v1741 = vpow.pop %v1740
  %v1742 = vmul.f32 %v1721, 1.442695
  %v1743 = vpow.pop %v1742
  %v1744 = vmul.f32 %v1722, 1.442695
  %v1745 = vpow.pop %v1744
  %v1746 = vmul.f32 %v1723, 1.442695
  %v1747 = vpow.pop %v1746
  %v1748 = vmul.f32 %v1724, 1.442695
  %v1749 = vpow.pop %v1748
  %v1750 = vmul.f32 %v1725, 1.442695
  %v1751 = vpow.pop %v1750
  %v1752 = vmul.f32 %v1726, 1.442695
  %v1753 = vpow.pop %v1752
  %v1754 = vmul.f32 %v1727, 1.442695
  %v1755 = vpow.pop %v1754
  %v1756 = vmul.f32 %v1728, 1.442695
  %v1757 = vpow.pop %v1756
  %v1758 = vmul.f32 %v1729, 1.442695
  %v1759 = vpow.pop %v1758
  %v1760 = vmul.f32 %v1730, 1.442695
  %v1761 = vpow.pop %v1760
  %v1762 = vmul.f32 %v1731, 1.442695
  %v1763 = vpow.pop %v1762
  %v1764 = vmul.f32 %v1732, 1.442695
  %v1765 = vpow.pop %v1764
  %v1766 = vmul.f32 %v1733, 1.442695
  %v1767 = vpow.pop %v1766
  %v1768 = vmul.f32 %v1734, 1.442695
  %v1769 = vpow.pop %v1768
  %v1770 = vmul.f32 %v1735, 1.442695
  %v1771 = vpow.pop %v1770
  %v1772 = vadd.f32 %v1737, 1.0
  %v1773 = vadd.f32 %v1739, 1.0
  %v1774 = vadd.f32 %v1741, 1.0
  %v1775 = vadd.f32 %v1743, 1.0
  %v1776 = vadd.f32 %v1745, 1.0
  %v1777 = vadd.f32 %v1747, 1.0
  %v1778 = vadd.f32 %v1749, 1.0
  %v1779 = vadd.f32 %v1751, 1.0
  %v1780 = vadd.f32 %v1753, 1.0
  %v1781 = vadd.f32 %v1755, 1.0
  %v1782 = vadd.f32 %v1757, 1.0
  %v1783 = vadd.f32 %v1759, 1.0
  %v1784 = vadd.f32 %v1761, 1.0
  %v1785 = vadd.f32 %v1763, 1.0
  %v1786 = vadd.f32 %v1765, 1.0
  %v1787 = vadd.f32 %v1767, 1.0
  %v1788 = vadd.f32 %v1769, 1.0
  %v1789 = vadd.f32 %v1771, 1.0
  %v1790 = vrcp.pop %v1772
  %v1791 = vmul.f32 %v1772, %v1790
  %v1792 = vsub.f32 1.0, %v1791
  %v1793 = vmul.f32 %v1790, %v1792
  %v1794 = vadd.f32 %v1790, %v1793
  %vm1795 = vweird.f32 %v1772
  %vm1796 = vweird.f32 %v1790
  %vm1797 = vmor %vm1795, %vm1796
  %v1798 = vsel %vm1797, %v1790, %v1794
  %v1799 = vand.u32 2147483647, %v1772
  %vm1800 = vcmp.eq.f32.partialorder %v1799, 8.507059e+37
  %v1801 = vand.u32 %v1772, 2147483648
  %v1802 = vor.u32 1.1754944e-38, %v1801
  %v1803 = vsel %vm1800, %v1802, %v1798
  %v1804 = vmul.f32 1.0, %v1803
  %v1805 = vrcp.pop %v1773
  %v1806 = vmul.f32 %v1773, %v1805
  %v1807 = vsub.f32 1.0, %v1806
  %v1808 = vmul.f32 %v1805, %v1807
  %v1809 = vadd.f32 %v1805, %v1808
  %vm1810 = vweird.f32 %v1773
  %vm1811 = vweird.f32 %v1805
  %vm1812 = vmor %vm1810, %vm1811
  %v1813 = vsel %vm1812, %v1805, %v1809
  %v1814 = vand.u32 2147483647, %v1773
  %vm1815 = vcmp.eq.f32.partialorder %v1814, 8.507059e+37
  %v1816 = vand.u32 %v1773, 2147483648
  %v1817 = vor.u32 1.1754944e-38, %v1816
  %v1818 = vsel %vm1815, %v1817, %v1813
  %v1819 = vmul.f32 1.0, %v1818
  %v1820 = vrcp.pop %v1774
  %v1821 = vmul.f32 %v1774, %v1820
  %v1822 = vsub.f32 1.0, %v1821
  %v1823 = vmul.f32 %v1820, %v1822
  %v1824 = vadd.f32 %v1820, %v1823
  %vm1825 = vweird.f32 %v1774
  %vm1826 = vweird.f32 %v1820
  %vm1827 = vmor %vm1825, %vm1826
  %v1828 = vsel %vm1827, %v1820, %v1824
  %v1829 = vand.u32 2147483647, %v1774
  %vm1830 = vcmp.eq.f32.partialorder %v1829, 8.507059e+37
  %v1831 = vand.u32 %v1774, 2147483648
  %v1832 = vor.u32 1.1754944e-38, %v1831
  %v1833 = vsel %vm1830, %v1832, %v1828
  %v1834 = vmul.f32 1.0, %v1833
  %v1835 = vrcp.pop %v1775
  %v1836 = vmul.f32 %v1775, %v1835
  %v1837 = vsub.f32 1.0, %v1836
  %v1838 = vmul.f32 %v1835, %v1837
  %v1839 = vadd.f32 %v1835, %v1838
  %vm1840 = vweird.f32 %v1775
  %vm1841 = vweird.f32 %v1835
  %vm1842 = vmor %vm1840, %vm1841
  %v1843 = vsel %vm1842, %v1835, %v1839
  %v1844 = vand.u32 2147483647, %v1775
  %vm1845 = vcmp.eq.f32.partialorder %v1844, 8.507059e+37
  %v1846 = vand.u32 %v1775, 2147483648
  %v1847 = vor.u32 1.1754944e-38, %v1846
  %v1848 = vsel %vm1845, %v1847, %v1843
  %v1849 = vmul.f32 1.0, %v1848
  %v1850 = vrcp.pop %v1776
  %v1851 = vmul.f32 %v1776, %v1850
  %v1852 = vsub.f32 1.0, %v1851
  %v1853 = vmul.f32 %v1850, %v1852
  %v1854 = vadd.f32 %v1850, %v1853
  %vm1855 = vweird.f32 %v1776
  %vm1856 = vweird.f32 %v1850
  %vm1857 = vmor %vm1855, %vm1856
  %v1858 = vsel %vm1857, %v1850, %v1854
  %v1859 = vand.u32 2147483647, %v1776
  %vm1860 = vcmp.eq.f32.partialorder %v1859, 8.507059e+37
  %v1861 = vand.u32 %v1776, 2147483648
  %v1862 = vor.u32 1.1754944e-38, %v1861
  %v1863 = vsel %vm1860, %v1862, %v1858
  %v1864 = vmul.f32 1.0, %v1863
  %v1865 = vrcp.pop %v1777
  %v1866 = vmul.f32 %v1777, %v1865
  %v1867 = vsub.f32 1.0, %v1866
  %v1868 = vmul.f32 %v1865, %v1867
  %v1869 = vadd.f32 %v1865, %v1868
  %vm1870 = vweird.f32 %v1777
  %vm1871 = vweird.f32 %v1865
  %vm1872 = vmor %vm1870, %vm1871
  %v1873 = vsel %vm1872, %v1865, %v1869
  %v1874 = vand.u32 2147483647, %v1777
  %vm1875 = vcmp.eq.f32.partialorder %v1874, 8.507059e+37
  %v1876 = vand.u32 %v1777, 2147483648
  %v1877 = vor.u32 1.1754944e-38, %v1876
  %v1878 = vsel %vm1875, %v1877, %v1873
  %v1879 = vmul.f32 1.0, %v1878
  %v1880 = vrcp.pop %v1778
  %v1881 = vmul.f32 %v1778, %v1880
  %v1882 = vsub.f32 1.0, %v1881
  %v1883 = vmul.f32 %v1880, %v1882
  %v1884 = vadd.f32 %v1880, %v1883
  %vm1885 = vweird.f32 %v1778
  %vm1886 = vweird.f32 %v1880
  %vm1887 = vmor %vm1885, %vm1886
  %v1888 = vsel %vm1887, %v1880, %v1884
  %v1889 = vand.u32 2147483647, %v1778
  %vm1890 = vcmp.eq.f32.partialorder %v1889, 8.507059e+37
  %v1891 = vand.u32 %v1778, 2147483648
  %v1892 = vor.u32 1.1754944e-38, %v1891
  %v1893 = vsel %vm1890, %v1892, %v1888
  %v1894 = vmul.f32 1.0, %v1893
  %v1895 = vrcp.pop %v1779
  %v1896 = vmul.f32 %v1779, %v1895
  %v1897 = vsub.f32 1.0, %v1896
  %v1898 = vmul.f32 %v1895, %v1897
  %v1899 = vadd.f32 %v1895, %v1898
  %vm1900 = vweird.f32 %v1779
  %vm1901 = vweird.f32 %v1895
  %vm1902 = vmor %vm1900, %vm1901
  %v1903 = vsel %vm1902, %v1895, %v1899
  %v1904 = vand.u32 2147483647, %v1779
  %vm1905 = vcmp.eq.f32.partialorder %v1904, 8.507059e+37
  %v1906 = vand.u32 %v1779, 2147483648
  %v1907 = vor.u32 1.1754944e-38, %v1906
  %v1908 = vsel %vm1905, %v1907, %v1903
  %v1909 = vmul.f32 1.0, %v1908
  %v1910 = vrcp.pop %v1780
  %v1911 = vmul.f32 %v1780, %v1910
  %v1912 = vsub.f32 1.0, %v1911
  %v1913 = vmul.f32 %v1910, %v1912
  %v1914 = vadd.f32 %v1910, %v1913
  %vm1915 = vweird.f32 %v1780
  %vm1916 = vweird.f32 %v1910
  %vm1917 = vmor %vm1915, %vm1916
  %v1918 = vsel %vm1917, %v1910, %v1914
  %v1919 = vand.u32 2147483647, %v1780
  %vm1920 = vcmp.eq.f32.partialorder %v1919, 8.507059e+37
  %v1921 = vand.u32 %v1780, 2147483648
  %v1922 = vor.u32 1.1754944e-38, %v1921
  %v1923 = vsel %vm1920, %v1922, %v1918
  %v1924 = vmul.f32 1.0, %v1923
  %v1925 = vrcp.pop %v1781
  %v1926 = vmul.f32 %v1781, %v1925
  %v1927 = vsub.f32 1.0, %v1926
  %v1928 = vmul.f32 %v1925, %v1927
  %v1929 = vadd.f32 %v1925, %v1928
  %vm1930 = vweird.f32 %v1781
  %vm1931 = vweird.f32 %v1925
  %vm1932 = vmor %vm1930, %vm1931
  %v1933 = vsel %vm1932, %v1925, %v1929
  %v1934 = vand.u32 2147483647, %v1781
  %vm1935 = vcmp.eq.f32.partialorder %v1934, 8.507059e+37
  %v1936 = vand.u32 %v1781, 2147483648
  %v1937 = vor.u32 1.1754944e-38, %v1936
  %v1938 = vsel %vm1935, %v1937, %v1933
  %v1939 = vmul.f32 1.0, %v1938
  %v1940 = vrcp.pop %v1782
  %v1941 = vmul.f32 %v1782, %v1940
  %v1942 = vsub.f32 1.0, %v1941
  %v1943 = vmul.f32 %v1940, %v1942
  %v1944 = vadd.f32 %v1940, %v1943
  %vm1945 = vweird.f32 %v1782
  %vm1946 = vweird.f32 %v1940
  %vm1947 = vmor %vm1945, %vm1946
  %v1948 = vsel %vm1947, %v1940, %v1944
  %v1949 = vand.u32 2147483647, %v1782
  %vm1950 = vcmp.eq.f32.partialorder %v1949, 8.507059e+37
  %v1951 = vand.u32 %v1782, 2147483648
  %v1952 = vor.u32 1.1754944e-38, %v1951
  %v1953 = vsel %vm1950, %v1952, %v1948
  %v1954 = vmul.f32 1.0, %v1953
  %v1955 = vrcp.pop %v1783
  %v1956 = vmul.f32 %v1783, %v1955
  %v1957 = vsub.f32 1.0, %v1956
  %v1958 = vmul.f32 %v1955, %v1957
  %v1959 = vadd.f32 %v1955, %v1958
  %vm1960 = vweird.f32 %v1783
  %vm1961 = vweird.f32 %v1955
  %vm1962 = vmor %vm1960, %vm1961
  %v1963 = vsel %vm1962, %v1955, %v1959
  %v1964 = vand.u32 2147483647, %v1783
  %vm1965 = vcmp.eq.f32.partialorder %v1964, 8.507059e+37
  %v1966 = vand.u32 %v1783, 2147483648
  %v1967 = vor.u32 1.1754944e-38, %v1966
  %v1968 = vsel %vm1965, %v1967, %v1963
  %v1969 = vmul.f32 1.0, %v1968
  %v1970 = vrcp.pop %v1784
  %v1971 = vmul.f32 %v1784, %v1970
  %v1972 = vsub.f32 1.0, %v1971
  %v1973 = vmul.f32 %v1970, %v1972
  %v1974 = vadd.f32 %v1970, %v1973
  %vm1975 = vweird.f32 %v1784
  %vm1976 = vweird.f32 %v1970
  %vm1977 = vmor %vm1975, %vm1976
  %v1978 = vsel %vm1977, %v1970, %v1974
  %v1979 = vand.u32 2147483647, %v1784
  %vm1980 = vcmp.eq.f32.partialorder %v1979, 8.507059e+37
  %v1981 = vand.u32 %v1784, 2147483648
  %v1982 = vor.u32 1.1754944e-38, %v1981
  %v1983 = vsel %vm1980, %v1982, %v1978
  %v1984 = vmul.f32 1.0, %v1983
  %v1985 = vrcp.pop %v1785
  %v1986 = vmul.f32 %v1785, %v1985
  %v1987 = vsub.f32 1.0, %v1986
  %v1988 = vmul.f32 %v1985, %v1987
  %v1989 = vadd.f32 %v1985, %v1988
  %vm1990 = vweird.f32 %v1785
  %vm1991 = vweird.f32 %v1985
  %vm1992 = vmor %vm1990, %vm1991
  %v1993 = vsel %vm1992, %v1985, %v1989
  %v1994 = vand.u32 2147483647, %v1785
  %vm1995 = vcmp.eq.f32.partialorder %v1994, 8.507059e+37
  %v1996 = vand.u32 %v1785, 2147483648
  %v1997 = vor.u32 1.1754944e-38, %v1996
  %v1998 = vsel %vm1995, %v1997, %v1993
  %v1999 = vmul.f32 1.0, %v1998
  %v2000 = vrcp.pop %v1786
  %v2001 = vmul.f32 %v1786, %v2000
  %v2002 = vsub.f32 1.0, %v2001
  %v2003 = vmul.f32 %v2000, %v2002
  %v2004 = vadd.f32 %v2000, %v2003
  %vm2005 = vweird.f32 %v1786
  %vm2006 = vweird.f32 %v2000
  %vm2007 = vmor %vm2005, %vm2006
  %v2008 = vsel %vm2007, %v2000, %v2004
  %v2009 = vand.u32 2147483647, %v1786
  %vm2010 = vcmp.eq.f32.partialorder %v2009, 8.507059e+37
  %v2011 = vand.u32 %v1786, 2147483648
  %v2012 = vor.u32 1.1754944e-38, %v2011
  %v2013 = vsel %vm2010, %v2012, %v2008
  %v2014 = vmul.f32 1.0, %v2013
  %v2015 = vrcp.pop %v1787
  %v2016 = vmul.f32 %v1787, %v2015
  %v2017 = vsub.f32 1.0, %v2016
  %v2018 = vmul.f32 %v2015, %v2017
  %v2019 = vadd.f32 %v2015, %v2018
  %vm2020 = vweird.f32 %v1787
  %vm2021 = vweird.f32 %v2015
  %vm2022 = vmor %vm2020, %vm2021
  %v2023 = vsel %vm2022, %v2015, %v2019
  %v2024 = vand.u32 2147483647, %v1787
  %vm2025 = vcmp.eq.f32.partialorder %v2024, 8.507059e+37
  %v2026 = vand.u32 %v1787, 2147483648
  %v2027 = vor.u32 1.1754944e-38, %v2026
  %v2028 = vsel %vm2025, %v2027, %v2023
  %v2029 = vmul.f32 1.0, %v2028
  %v2030 = vrcp.pop %v1788
  %v2031 = vmul.f32 %v1788, %v2030
  %v2032 = vsub.f32 1.0, %v2031
  %v2033 = vmul.f32 %v2030, %v2032
  %v2034 = vadd.f32 %v2030, %v2033
  %vm2035 = vweird.f32 %v1788
  %vm2036 = vweird.f32 %v2030
  %vm2037 = vmor %vm2035, %vm2036
  %v2038 = vsel %vm2037, %v2030, %v2034
  %v2039 = vand.u32 2147483647, %v1788
  %vm2040 = vcmp.eq.f32.partialorder %v2039, 8.507059e+37
  %v2041 = vand.u32 %v1788, 2147483648
  %v2042 = vor.u32 1.1754944e-38, %v2041
  %v2043 = vsel %vm2040, %v2042, %v2038
  %v2044 = vmul.f32 1.0, %v2043
  %v2045 = vrcp.pop %v1789
  %v2046 = vmul.f32 %v1789, %v2045
  %v2047 = vsub.f32 1.0, %v2046
  %v2048 = vmul.f32 %v2045, %v2047
  %v2049 = vadd.f32 %v2045, %v2048
  %vm2050 = vweird.f32 %v1789
  %vm2051 = vweird.f32 %v2045
  %vm2052 = vmor %vm2050, %vm2051
  %v2053 = vsel %vm2052, %v2045, %v2049
  %v2054 = vand.u32 2147483647, %v1789
  %vm2055 = vcmp.eq.f32.partialorder %v2054, 8.507059e+37
  %v2056 = vand.u32 %v1789, 2147483648
  %v2057 = vor.u32 1.1754944e-38, %v2056
  %v2058 = vsel %vm2055, %v2057, %v2053
  %v2059 = vmul.f32 1.0, %v2058
  %v2060 = vtanh.pop %v1674
  %v2061 = vtanh.pop %v1676
  %v2062 = vtanh.pop %v1679
  %v2063 = vtanh.pop %v1681
  %v2064 = vtanh.pop %v1684
  %v2065 = vtanh.pop %v1686
  %v2066 = vtanh.pop %v1689
  %v2067 = vtanh.pop %v1691
  %v2068 = vtanh.pop %v1694
  %v2069 = vtanh.pop %v1696
  %v2070 = vtanh.pop %v1699
  %v2071 = vtanh.pop %v1701
  %v2072 = vtanh.pop %v1704
  %v2073 = vtanh.pop %v1706
  %v2074 = vtanh.pop %v1709
  %v2075 = vtanh.pop %v1711
  %v2076 = vtanh.pop %v1714
  %v2077 = vtanh.pop %v1716
  %v2078 = vmul.f32 %v1804, %v1456
  %v2079 = vmul.f32 %v1819, %v1457
  %v2080 = vmul.f32 %v1834, %v1458
  %v2081 = vmul.f32 %v1849, %v1459
  %v2082 = vmul.f32 %v1864, %v1460
  %v2083 = vmul.f32 %v1879, %v1461
  %v2084 = vmul.f32 %v1894, %v1462
  %v2085 = vmul.f32 %v1909, %v1463
  %v2086 = vmul.f32 %v1924, %v1464
  %v2087 = vmul.f32 %v1939, %v1465
  %v2088 = vmul.f32 %v1954, %v1466
  %v2089 = vmul.f32 %v1969, %v1467
  %v2090 = vmul.f32 %v1984, %v1468
  %v2091 = vmul.f32 %v1999, %v1469
  %v2092 = vmul.f32 %v2014, %v1470
  %v2093 = vmul.f32 %v2029, %v1471
  %v2094 = vmul.f32 %v2044, %v1472
  %v2095 = vmul.f32 %v2059, %v1473
  %2114 = vrot.lane.b32.xlu0 %v2060, 32
  %v2115 = vpop.permute.xlu0 %2114
  %2116 = vrot.lane.b32.xlu0 %v2061, 32
  %v2117 = vpop.permute.xlu0 %2116
  %2118 = vrot.lane.b32.xlu0 %v2062, 32
  %v2119 = vpop.permute.xlu0 %2118
  %2120 = vrot.lane.b32.xlu0 %v2063, 32
  %v2121 = vpop.permute.xlu0 %2120
  %2122 = vrot.lane.b32.xlu0 %v2064, 32
  %v2123 = vpop.permute.xlu0 %2122
  %2124 = vrot.lane.b32.xlu0 %v2065, 32
  %v2125 = vpop.permute.xlu0 %2124
  %2126 = vrot.lane.b32.xlu0 %v2066, 32
  %v2127 = vpop.permute.xlu0 %2126
  %2128 = vrot.lane.b32.xlu0 %v2067, 32
  %v2129 = vpop.permute.xlu0 %2128
  %2130 = vrot.lane.b32.xlu0 %v2068, 32
  %v2131 = vpop.permute.xlu0 %2130
  %2132 = vrot.lane.b32.xlu0 %v2069, 32
  %v2133 = vpop.permute.xlu0 %2132
  %2134 = vrot.lane.b32.xlu0 %v2070, 32
  %v2135 = vpop.permute.xlu0 %2134
  %2136 = vrot.lane.b32.xlu0 %v2071, 32
  %v2137 = vpop.permute.xlu0 %2136
  %2138 = vrot.lane.b32.xlu0 %v2072, 32
  %v2139 = vpop.permute.xlu0 %2138
  %2140 = vrot.lane.b32.xlu0 %v2073, 32
  %v2141 = vpop.permute.xlu0 %2140
  %2142 = vrot.lane.b32.xlu0 %v2074, 32
  %v2143 = vpop.permute.xlu0 %2142
  %2144 = vrot.lane.b32.xlu0 %v2075, 32
  %v2145 = vpop.permute.xlu0 %2144
  %2146 = vrot.lane.b32.xlu0 %v2076, 32
  %v2147 = vpop.permute.xlu0 %2146
  %2148 = vrot.lane.b32.xlu0 %v2077, 32
  %v2149 = vpop.permute.xlu0 %2148
  %v2168 = vmul.f32 %v1804, %v2115
  %v2169 = vmul.f32 %v1819, %v2117
  %v2170 = vmul.f32 %v1834, %v2119
  %v2171 = vmul.f32 %v1849, %v2121
  %v2172 = vmul.f32 %v1864, %v2123
  %v2173 = vmul.f32 %v1879, %v2125
  %v2174 = vmul.f32 %v1894, %v2127
  %v2175 = vmul.f32 %v1909, %v2129
  %v2176 = vmul.f32 %v1924, %v2131
  %v2177 = vmul.f32 %v1939, %v2133
  %v2178 = vmul.f32 %v1954, %v2135
  %v2179 = vmul.f32 %v1969, %v2137
  %v2180 = vmul.f32 %v1984, %v2139
  %v2181 = vmul.f32 %v1999, %v2141
  %v2182 = vmul.f32 %v2014, %v2143
  %v2183 = vmul.f32 %v2029, %v2145
  %v2184 = vmul.f32 %v2044, %v2147
  %v2185 = vmul.f32 %v2059, %v2149
  %2204 = vrot.lane.b32.xlu0 %v2168, 32
  %v2205 = vpop.permute.xlu0 %2204
  %2206 = vrot.lane.b32.xlu0 %v2169, 32
  %v2207 = vpop.permute.xlu0 %2206
  %2208 = vrot.lane.b32.xlu0 %v2170, 32
  %v2209 = vpop.permute.xlu0 %2208
  %2210 = vrot.lane.b32.xlu0 %v2171, 32
  %v2211 = vpop.permute.xlu0 %2210
  %2212 = vrot.lane.b32.xlu0 %v2172, 32
  %v2213 = vpop.permute.xlu0 %2212
  %2214 = vrot.lane.b32.xlu0 %v2173, 32
  %v2215 = vpop.permute.xlu0 %2214
  %2216 = vrot.lane.b32.xlu0 %v2174, 32
  %v2217 = vpop.permute.xlu0 %2216
  %2218 = vrot.lane.b32.xlu0 %v2175, 32
  %v2219 = vpop.permute.xlu0 %2218
  %2220 = vrot.lane.b32.xlu0 %v2176, 32
  %v2221 = vpop.permute.xlu0 %2220
  %2222 = vrot.lane.b32.xlu0 %v2177, 32
  %v2223 = vpop.permute.xlu0 %2222
  %2224 = vrot.lane.b32.xlu0 %v2178, 32
  %v2225 = vpop.permute.xlu0 %2224
  %2226 = vrot.lane.b32.xlu0 %v2179, 32
  %v2227 = vpop.permute.xlu0 %2226
  %2228 = vrot.lane.b32.xlu0 %v2180, 32
  %v2229 = vpop.permute.xlu0 %2228
  %2230 = vrot.lane.b32.xlu0 %v2181, 32
  %v2231 = vpop.permute.xlu0 %2230
  %2232 = vrot.lane.b32.xlu0 %v2182, 32
  %v2233 = vpop.permute.xlu0 %2232
  %2234 = vrot.lane.b32.xlu0 %v2183, 32
  %v2235 = vpop.permute.xlu0 %2234
  %2236 = vrot.lane.b32.xlu0 %v2184, 32
  %v2237 = vpop.permute.xlu0 %2236
  %2238 = vrot.lane.b32.xlu0 %v2185, 32
  %v2239 = vpop.permute.xlu0 %2238
  %v2258 = vadd.f32 %v2078, %v2205
  %v2259 = vadd.f32 %v2079, %v2207
  %v2260 = vadd.f32 %v2080, %v2209
  %v2261 = vadd.f32 %v2081, %v2211
  %v2262 = vadd.f32 %v2082, %v2213
  %v2263 = vadd.f32 %v2083, %v2215
  %v2264 = vadd.f32 %v2084, %v2217
  %v2265 = vadd.f32 %v2085, %v2219
  %v2266 = vadd.f32 %v2086, %v2221
  %v2267 = vadd.f32 %v2087, %v2223
  %v2268 = vadd.f32 %v2088, %v2225
  %v2269 = vadd.f32 %v2089, %v2227
  %v2270 = vadd.f32 %v2090, %v2229
  %v2271 = vadd.f32 %v2091, %v2231
  %v2272 = vadd.f32 %v2092, %v2233
  %v2273 = vadd.f32 %v2093, %v2235
  %v2274 = vadd.f32 %v2094, %v2237
  %v2275 = vadd.f32 %v2095, %v2239
  %v2276 = vtanh.pop %v2258
  %v2277 = vtanh.pop %v2259
  %v2278 = vtanh.pop %v2260
  %v2279 = vtanh.pop %v2261
  %v2280 = vtanh.pop %v2262
  %v2281 = vtanh.pop %v2263
  %v2282 = vtanh.pop %v2264
  %v2283 = vtanh.pop %v2265
  %v2284 = vtanh.pop %v2266
  %v2285 = vtanh.pop %v2267
  %v2286 = vtanh.pop %v2268
  %v2287 = vtanh.pop %v2269
  %v2288 = vtanh.pop %v2270
  %v2289 = vtanh.pop %v2271
  %v2290 = vtanh.pop %v2272
  %v2291 = vtanh.pop %v2273
  %v2292 = vtanh.pop %v2274
  %v2293 = vtanh.pop %v2275
  %2312 = vrot.lane.b32.xlu0 %v2276, 32
  %v2313 = vpop.permute.xlu0 %2312
  %2314 = vrot.lane.b32.xlu0 %v2277, 32
  %v2315 = vpop.permute.xlu0 %2314
  %2316 = vrot.lane.b32.xlu0 %v2278, 32
  %v2317 = vpop.permute.xlu0 %2316
  %2318 = vrot.lane.b32.xlu0 %v2279, 32
  %v2319 = vpop.permute.xlu0 %2318
  %2320 = vrot.lane.b32.xlu0 %v2280, 32
  %v2321 = vpop.permute.xlu0 %2320
  %2322 = vrot.lane.b32.xlu0 %v2281, 32
  %v2323 = vpop.permute.xlu0 %2322
  %2324 = vrot.lane.b32.xlu0 %v2282, 32
  %v2325 = vpop.permute.xlu0 %2324
  %2326 = vrot.lane.b32.xlu0 %v2283, 32
  %v2327 = vpop.permute.xlu0 %2326
  %2328 = vrot.lane.b32.xlu0 %v2284, 32
  %v2329 = vpop.permute.xlu0 %2328
  %2330 = vrot.lane.b32.xlu0 %v2285, 32
  %v2331 = vpop.permute.xlu0 %2330
  %2332 = vrot.lane.b32.xlu0 %v2286, 32
  %v2333 = vpop.permute.xlu0 %2332
  %2334 = vrot.lane.b32.xlu0 %v2287, 32
  %v2335 = vpop.permute.xlu0 %2334
  %2336 = vrot.lane.b32.xlu0 %v2288, 32
  %v2337 = vpop.permute.xlu0 %2336
  %2338 = vrot.lane.b32.xlu0 %v2289, 32
  %v2339 = vpop.permute.xlu0 %2338
  %2340 = vrot.lane.b32.xlu0 %v2290, 32
  %v2341 = vpop.permute.xlu0 %2340
  %2342 = vrot.lane.b32.xlu0 %v2291, 32
  %v2343 = vpop.permute.xlu0 %2342
  %2344 = vrot.lane.b32.xlu0 %v2292, 32
  %v2345 = vpop.permute.xlu0 %2344
  %2346 = vrot.lane.b32.xlu0 %v2293, 32
  %v2347 = vpop.permute.xlu0 %2346
  %v2366 = vmul.f32 %v1804, %v2313
  %v2367 = vmul.f32 %v1819, %v2315
  %v2368 = vmul.f32 %v1834, %v2317
  %v2369 = vmul.f32 %v1849, %v2319
  %v2370 = vmul.f32 %v1864, %v2321
  %v2371 = vmul.f32 %v1879, %v2323
  %v2372 = vmul.f32 %v1894, %v2325
  %v2373 = vmul.f32 %v1909, %v2327
  %v2374 = vmul.f32 %v1924, %v2329
  %v2375 = vmul.f32 %v1939, %v2331
  %v2376 = vmul.f32 %v1954, %v2333
  %v2377 = vmul.f32 %v1969, %v2335
  %v2378 = vmul.f32 %v1984, %v2337
  %v2379 = vmul.f32 %v1999, %v2339
  %v2380 = vmul.f32 %v2014, %v2341
  %v2381 = vmul.f32 %v2029, %v2343
  %v2382 = vmul.f32 %v2044, %v2345
  %v2383 = vmul.f32 %v2059, %v2347
  %v2384 = vpack.c.bf16 %v2367, %v2366
  %v2385 = vpack.c.bf16 %v2369, %v2368
  %v2386 = vpack.c.bf16 %v2371, %v2370
  %v2387 = vpack.c.bf16 %v2373, %v2372
  %v2388 = vpack.c.bf16 %v2375, %v2374
  %v2389 = vpack.c.bf16 %v2377, %v2376
  %v2390 = vpack.c.bf16 %v2379, %v2378
  %v2391 = vpack.c.bf16 %v2381, %v2380
  %v2392 = vpack.c.bf16 %v2383, %v2382
  %s2393 = scalar_lea.vmem %s0, 432
  %v2394 = vld [vmem:[%s2393] sm:$0xff]
  %v2395 = vld [vmem:[%s2393 + $0x8] sm:$0xff]
  %v2396 = vld [vmem:[%s2393 + $0x10] sm:$0xff]
  %v2397 = vld [vmem:[%s2393 + $0x18] sm:$0xff]
  %v2398 = vld [vmem:[%s2393 + $0x20] sm:$0xff]
  %v2399 = vld [vmem:[%s2393 + $0x28] sm:$0xff]
  %v2400 = vld [vmem:[%s2393 + $0x30] sm:$0xff]
  %v2401 = vld [vmem:[%s2393 + $0x38] sm:$0xff]
  %v2402 = vld [vmem:[%s2393 + $0x40] sm:$0xff]
  %v2403 = vld [vmem:[%s2393 + $0x48] sm:$0xff]
  %v2404 = vld [vmem:[%s2393 + $0x50] sm:$0xff]
  %v2405 = vld [vmem:[%s2393 + $0x58] sm:$0xff]
  %v2406 = vld [vmem:[%s2393 + $0x60] sm:$0xff]
  %v2407 = vld [vmem:[%s2393 + $0x68] sm:$0xff]
  %v2408 = vld [vmem:[%s2393 + $0x70] sm:$0xff]
  %v2409 = vld [vmem:[%s2393 + $0x78] sm:$0xff]
  %v2410 = vld [vmem:[%s2393 + $0x80] sm:$0xff]
  %v2411 = vld [vmem:[%s2393 + $0x88] sm:$0xff]
  %2421 = vrot.lane.b32.xlu0 %v2384, 64
  %v2422 = vpop.permute.xlu0 %2421
  %2423 = vrot.lane.b32.xlu0 %v2385, 64
  %v2424 = vpop.permute.xlu0 %2423
  %2425 = vrot.lane.b32.xlu0 %v2386, 64
  %v2426 = vpop.permute.xlu0 %2425
  %2427 = vrot.lane.b32.xlu0 %v2387, 64
  %v2428 = vpop.permute.xlu0 %2427
  %2429 = vrot.lane.b32.xlu0 %v2388, 64
  %v2430 = vpop.permute.xlu0 %2429
  %2431 = vrot.lane.b32.xlu0 %v2389, 64
  %v2432 = vpop.permute.xlu0 %2431
  %2433 = vrot.lane.b32.xlu0 %v2390, 64
  %v2434 = vpop.permute.xlu0 %2433
  %2435 = vrot.lane.b32.xlu0 %v2391, 64
  %v2436 = vpop.permute.xlu0 %2435
  %2437 = vrot.lane.b32.xlu0 %v2392, 64
  %v2438 = vpop.permute.xlu0 %2437
  %v2440 = vsel %vm56, %v2422, 0
  %v2443 = vsel %vm56, %v2424, 0
  %v2446 = vsel %vm56, %v2426, 0
  %v2449 = vsel %vm56, %v2428, 0
  %v2452 = vsel %vm56, %v2430, 0
  %v2455 = vsel %vm56, %v2432, 0
  %v2458 = vsel %vm56, %v2434, 0
  %v2461 = vsel %vm56, %v2436, 0
  %v2464 = vsel %vm56, %v2438, 0
  %2466 = vmatpush.bf16.msra.mxu0 0
  %2467 = vmatpush.bf16.msra.mxu0 0
  %2468 = vmatpush.bf16.msra.mxu0 0
  %2469 = vmatpush.bf16.msra.mxu0 0
  %2470 = vmatpush.bf16.msra.mxu0 0
  %2471 = vmatpush.bf16.msra.mxu0 0
  %2472 = vmatpush.bf16.msra.mxu0 %v53
  %2473 = vmatpush.bf16.msra.mxu0 %v52
  %2474 = vmatmul.bf16.gmra.mxu0 %v2440
  %v2475 = vpop.f32.mrf.mxu0
  %v2476 = vadd.f32 %v2394, %v2475
  %v2477 = vpop.f32.mrf.mxu0
  %v2478 = vadd.f32 %v2395, %v2477
  %2479 = vmatmul.bf16.gmra.mxu0 %v2443
  %v2480 = vpop.f32.mrf.mxu0
  %v2481 = vadd.f32 %v2396, %v2480
  %v2482 = vpop.f32.mrf.mxu0
  %v2483 = vadd.f32 %v2397, %v2482
  %2484 = vmatmul.bf16.gmra.mxu0 %v2446
  %v2485 = vpop.f32.mrf.mxu0
  %v2486 = vadd.f32 %v2398, %v2485
  %v2487 = vpop.f32.mrf.mxu0
  %v2488 = vadd.f32 %v2399, %v2487
  %2489 = vmatmul.bf16.gmra.mxu0 %v2449
  %v2490 = vpop.f32.mrf.mxu0
  %v2491 = vadd.f32 %v2400, %v2490
  %v2492 = vpop.f32.mrf.mxu0
  %v2493 = vadd.f32 %v2401, %v2492
  %2494 = vmatmul.bf16.gmra.mxu0 %v2452
  %v2495 = vpop.f32.mrf.mxu0
  %v2496 = vadd.f32 %v2402, %v2495
  %v2497 = vpop.f32.mrf.mxu0
  %v2498 = vadd.f32 %v2403, %v2497
  %2499 = vmatmul.bf16.gmra.mxu0 %v2455
  %v2500 = vpop.f32.mrf.mxu0
  %v2501 = vadd.f32 %v2404, %v2500
  %v2502 = vpop.f32.mrf.mxu0
  %v2503 = vadd.f32 %v2405, %v2502
  %2504 = vmatmul.bf16.gmra.mxu0 %v2458
  %v2505 = vpop.f32.mrf.mxu0
  %v2506 = vadd.f32 %v2406, %v2505
  %v2507 = vpop.f32.mrf.mxu0
  %v2508 = vadd.f32 %v2407, %v2507
  %2509 = vmatmul.bf16.gmra.mxu0 %v2461
  %v2510 = vpop.f32.mrf.mxu0
  %v2511 = vadd.f32 %v2408, %v2510
  %v2512 = vpop.f32.mrf.mxu0
  %v2513 = vadd.f32 %v2409, %v2512
  %2514 = vmatmul.bf16.gmra.mxu0 %v2464
  %v2515 = vpop.f32.mrf.mxu0
  %v2516 = vadd.f32 %v2410, %v2515
  %v2517 = vpop.f32.mrf.mxu0
  %v2518 = vadd.f32 %v2411, %v2517
  %2519 = vdwg.mxu0
  %v2520 = vxor.u32 %v2476, 2147483648
  %v2521 = vxor.u32 %v2478, 2147483648
  %v2522 = vxor.u32 %v2481, 2147483648
  %v2523 = vxor.u32 %v2483, 2147483648
  %v2524 = vxor.u32 %v2486, 2147483648
  %v2525 = vxor.u32 %v2488, 2147483648
  %v2526 = vxor.u32 %v2491, 2147483648
  %v2527 = vxor.u32 %v2493, 2147483648
  %v2528 = vxor.u32 %v2496, 2147483648
  %v2529 = vxor.u32 %v2498, 2147483648
  %v2530 = vxor.u32 %v2501, 2147483648
  %v2531 = vxor.u32 %v2503, 2147483648
  %v2532 = vxor.u32 %v2506, 2147483648
  %v2533 = vxor.u32 %v2508, 2147483648
  %v2534 = vxor.u32 %v2511, 2147483648
  %v2535 = vxor.u32 %v2513, 2147483648
  %v2536 = vxor.u32 %v2516, 2147483648
  %v2537 = vxor.u32 %v2518, 2147483648
  %v2538 = vmul.f32 %v2520, 1.442695
  %v2539 = vpow.pop %v2538
  %v2540 = vmul.f32 %v2521, 1.442695
  %v2541 = vpow.pop %v2540
  %v2542 = vmul.f32 %v2522, 1.442695
  %v2543 = vpow.pop %v2542
  %v2544 = vmul.f32 %v2523, 1.442695
  %v2545 = vpow.pop %v2544
  %v2546 = vmul.f32 %v2524, 1.442695
  %v2547 = vpow.pop %v2546
  %v2548 = vmul.f32 %v2525, 1.442695
  %v2549 = vpow.pop %v2548
  %v2550 = vmul.f32 %v2526, 1.442695
  %v2551 = vpow.pop %v2550
  %v2552 = vmul.f32 %v2527, 1.442695
  %v2553 = vpow.pop %v2552
  %v2554 = vmul.f32 %v2528, 1.442695
  %v2555 = vpow.pop %v2554
  %v2556 = vmul.f32 %v2529, 1.442695
  %v2557 = vpow.pop %v2556
  %v2558 = vmul.f32 %v2530, 1.442695
  %v2559 = vpow.pop %v2558
  %v2560 = vmul.f32 %v2531, 1.442695
  %v2561 = vpow.pop %v2560
  %v2562 = vmul.f32 %v2532, 1.442695
  %v2563 = vpow.pop %v2562
  %v2564 = vmul.f32 %v2533, 1.442695
  %v2565 = vpow.pop %v2564
  %v2566 = vmul.f32 %v2534, 1.442695
  %v2567 = vpow.pop %v2566
  %v2568 = vmul.f32 %v2535, 1.442695
  %v2569 = vpow.pop %v2568
  %v2570 = vmul.f32 %v2536, 1.442695
  %v2571 = vpow.pop %v2570
  %v2572 = vmul.f32 %v2537, 1.442695
  %v2573 = vpow.pop %v2572
  %v2574 = vadd.f32 %v2539, 1.0
  %v2575 = vadd.f32 %v2541, 1.0
  %v2576 = vadd.f32 %v2543, 1.0
  %v2577 = vadd.f32 %v2545, 1.0
  %v2578 = vadd.f32 %v2547, 1.0
  %v2579 = vadd.f32 %v2549, 1.0
  %v2580 = vadd.f32 %v2551, 1.0
  %v2581 = vadd.f32 %v2553, 1.0
  %v2582 = vadd.f32 %v2555, 1.0
  %v2583 = vadd.f32 %v2557, 1.0
  %v2584 = vadd.f32 %v2559, 1.0
  %v2585 = vadd.f32 %v2561, 1.0
  %v2586 = vadd.f32 %v2563, 1.0
  %v2587 = vadd.f32 %v2565, 1.0
  %v2588 = vadd.f32 %v2567, 1.0
  %v2589 = vadd.f32 %v2569, 1.0
  %v2590 = vadd.f32 %v2571, 1.0
  %v2591 = vadd.f32 %v2573, 1.0
  %v2592 = vrcp.pop %v2574
  %v2593 = vmul.f32 %v2574, %v2592
  %v2594 = vsub.f32 1.0, %v2593
  %v2595 = vmul.f32 %v2592, %v2594
  %v2596 = vadd.f32 %v2592, %v2595
  %vm2597 = vweird.f32 %v2574
  %vm2598 = vweird.f32 %v2592
  %vm2599 = vmor %vm2597, %vm2598
  %v2600 = vsel %vm2599, %v2592, %v2596
  %v2601 = vand.u32 2147483647, %v2574
  %vm2602 = vcmp.eq.f32.partialorder %v2601, 8.507059e+37
  %v2603 = vand.u32 %v2574, 2147483648
  %v2604 = vor.u32 1.1754944e-38, %v2603
  %v2605 = vsel %vm2602, %v2604, %v2600
  %v2606 = vmul.f32 1.0, %v2605
  %v2607 = vrcp.pop %v2575
  %v2608 = vmul.f32 %v2575, %v2607
  %v2609 = vsub.f32 1.0, %v2608
  %v2610 = vmul.f32 %v2607, %v2609
  %v2611 = vadd.f32 %v2607, %v2610
  %vm2612 = vweird.f32 %v2575
  %vm2613 = vweird.f32 %v2607
  %vm2614 = vmor %vm2612, %vm2613
  %v2615 = vsel %vm2614, %v2607, %v2611
  %v2616 = vand.u32 2147483647, %v2575
  %vm2617 = vcmp.eq.f32.partialorder %v2616, 8.507059e+37
  %v2618 = vand.u32 %v2575, 2147483648
  %v2619 = vor.u32 1.1754944e-38, %v2618
  %v2620 = vsel %vm2617, %v2619, %v2615
  %v2621 = vmul.f32 1.0, %v2620
  %v2622 = vrcp.pop %v2576
  %v2623 = vmul.f32 %v2576, %v2622
  %v2624 = vsub.f32 1.0, %v2623
  %v2625 = vmul.f32 %v2622, %v2624
  %v2626 = vadd.f32 %v2622, %v2625
  %vm2627 = vweird.f32 %v2576
  %vm2628 = vweird.f32 %v2622
  %vm2629 = vmor %vm2627, %vm2628
  %v2630 = vsel %vm2629, %v2622, %v2626
  %v2631 = vand.u32 2147483647, %v2576
  %vm2632 = vcmp.eq.f32.partialorder %v2631, 8.507059e+37
  %v2633 = vand.u32 %v2576, 2147483648
  %v2634 = vor.u32 1.1754944e-38, %v2633
  %v2635 = vsel %vm2632, %v2634, %v2630
  %v2636 = vmul.f32 1.0, %v2635
  %v2637 = vrcp.pop %v2577
  %v2638 = vmul.f32 %v2577, %v2637
  %v2639 = vsub.f32 1.0, %v2638
  %v2640 = vmul.f32 %v2637, %v2639
  %v2641 = vadd.f32 %v2637, %v2640
  %vm2642 = vweird.f32 %v2577
  %vm2643 = vweird.f32 %v2637
  %vm2644 = vmor %vm2642, %vm2643
  %v2645 = vsel %vm2644, %v2637, %v2641
  %v2646 = vand.u32 2147483647, %v2577
  %vm2647 = vcmp.eq.f32.partialorder %v2646, 8.507059e+37
  %v2648 = vand.u32 %v2577, 2147483648
  %v2649 = vor.u32 1.1754944e-38, %v2648
  %v2650 = vsel %vm2647, %v2649, %v2645
  %v2651 = vmul.f32 1.0, %v2650
  %v2652 = vrcp.pop %v2578
  %v2653 = vmul.f32 %v2578, %v2652
  %v2654 = vsub.f32 1.0, %v2653
  %v2655 = vmul.f32 %v2652, %v2654
  %v2656 = vadd.f32 %v2652, %v2655
  %vm2657 = vweird.f32 %v2578
  %vm2658 = vweird.f32 %v2652
  %vm2659 = vmor %vm2657, %vm2658
  %v2660 = vsel %vm2659, %v2652, %v2656
  %v2661 = vand.u32 2147483647, %v2578
  %vm2662 = vcmp.eq.f32.partialorder %v2661, 8.507059e+37
  %v2663 = vand.u32 %v2578, 2147483648
  %v2664 = vor.u32 1.1754944e-38, %v2663
  %v2665 = vsel %vm2662, %v2664, %v2660
  %v2666 = vmul.f32 1.0, %v2665
  %v2667 = vrcp.pop %v2579
  %v2668 = vmul.f32 %v2579, %v2667
  %v2669 = vsub.f32 1.0, %v2668
  %v2670 = vmul.f32 %v2667, %v2669
  %v2671 = vadd.f32 %v2667, %v2670
  %vm2672 = vweird.f32 %v2579
  %vm2673 = vweird.f32 %v2667
  %vm2674 = vmor %vm2672, %vm2673
  %v2675 = vsel %vm2674, %v2667, %v2671
  %v2676 = vand.u32 2147483647, %v2579
  %vm2677 = vcmp.eq.f32.partialorder %v2676, 8.507059e+37
  %v2678 = vand.u32 %v2579, 2147483648
  %v2679 = vor.u32 1.1754944e-38, %v2678
  %v2680 = vsel %vm2677, %v2679, %v2675
  %v2681 = vmul.f32 1.0, %v2680
  %v2682 = vrcp.pop %v2580
  %v2683 = vmul.f32 %v2580, %v2682
  %v2684 = vsub.f32 1.0, %v2683
  %v2685 = vmul.f32 %v2682, %v2684
  %v2686 = vadd.f32 %v2682, %v2685
  %vm2687 = vweird.f32 %v2580
  %vm2688 = vweird.f32 %v2682
  %vm2689 = vmor %vm2687, %vm2688
  %v2690 = vsel %vm2689, %v2682, %v2686
  %v2691 = vand.u32 2147483647, %v2580
  %vm2692 = vcmp.eq.f32.partialorder %v2691, 8.507059e+37
  %v2693 = vand.u32 %v2580, 2147483648
  %v2694 = vor.u32 1.1754944e-38, %v2693
  %v2695 = vsel %vm2692, %v2694, %v2690
  %v2696 = vmul.f32 1.0, %v2695
  %v2697 = vrcp.pop %v2581
  %v2698 = vmul.f32 %v2581, %v2697
  %v2699 = vsub.f32 1.0, %v2698
  %v2700 = vmul.f32 %v2697, %v2699
  %v2701 = vadd.f32 %v2697, %v2700
  %vm2702 = vweird.f32 %v2581
  %vm2703 = vweird.f32 %v2697
  %vm2704 = vmor %vm2702, %vm2703
  %v2705 = vsel %vm2704, %v2697, %v2701
  %v2706 = vand.u32 2147483647, %v2581
  %vm2707 = vcmp.eq.f32.partialorder %v2706, 8.507059e+37
  %v2708 = vand.u32 %v2581, 2147483648
  %v2709 = vor.u32 1.1754944e-38, %v2708
  %v2710 = vsel %vm2707, %v2709, %v2705
  %v2711 = vmul.f32 1.0, %v2710
  %v2712 = vrcp.pop %v2582
  %v2713 = vmul.f32 %v2582, %v2712
  %v2714 = vsub.f32 1.0, %v2713
  %v2715 = vmul.f32 %v2712, %v2714
  %v2716 = vadd.f32 %v2712, %v2715
  %vm2717 = vweird.f32 %v2582
  %vm2718 = vweird.f32 %v2712
  %vm2719 = vmor %vm2717, %vm2718
  %v2720 = vsel %vm2719, %v2712, %v2716
  %v2721 = vand.u32 2147483647, %v2582
  %vm2722 = vcmp.eq.f32.partialorder %v2721, 8.507059e+37
  %v2723 = vand.u32 %v2582, 2147483648
  %v2724 = vor.u32 1.1754944e-38, %v2723
  %v2725 = vsel %vm2722, %v2724, %v2720
  %v2726 = vmul.f32 1.0, %v2725
  %v2727 = vrcp.pop %v2583
  %v2728 = vmul.f32 %v2583, %v2727
  %v2729 = vsub.f32 1.0, %v2728
  %v2730 = vmul.f32 %v2727, %v2729
  %v2731 = vadd.f32 %v2727, %v2730
  %vm2732 = vweird.f32 %v2583
  %vm2733 = vweird.f32 %v2727
  %vm2734 = vmor %vm2732, %vm2733
  %v2735 = vsel %vm2734, %v2727, %v2731
  %v2736 = vand.u32 2147483647, %v2583
  %vm2737 = vcmp.eq.f32.partialorder %v2736, 8.507059e+37
  %v2738 = vand.u32 %v2583, 2147483648
  %v2739 = vor.u32 1.1754944e-38, %v2738
  %v2740 = vsel %vm2737, %v2739, %v2735
  %v2741 = vmul.f32 1.0, %v2740
  %v2742 = vrcp.pop %v2584
  %v2743 = vmul.f32 %v2584, %v2742
  %v2744 = vsub.f32 1.0, %v2743
  %v2745 = vmul.f32 %v2742, %v2744
  %v2746 = vadd.f32 %v2742, %v2745
  %vm2747 = vweird.f32 %v2584
  %vm2748 = vweird.f32 %v2742
  %vm2749 = vmor %vm2747, %vm2748
  %v2750 = vsel %vm2749, %v2742, %v2746
  %v2751 = vand.u32 2147483647, %v2584
  %vm2752 = vcmp.eq.f32.partialorder %v2751, 8.507059e+37
  %v2753 = vand.u32 %v2584, 2147483648
  %v2754 = vor.u32 1.1754944e-38, %v2753
  %v2755 = vsel %vm2752, %v2754, %v2750
  %v2756 = vmul.f32 1.0, %v2755
  %v2757 = vrcp.pop %v2585
  %v2758 = vmul.f32 %v2585, %v2757
  %v2759 = vsub.f32 1.0, %v2758
  %v2760 = vmul.f32 %v2757, %v2759
  %v2761 = vadd.f32 %v2757, %v2760
  %vm2762 = vweird.f32 %v2585
  %vm2763 = vweird.f32 %v2757
  %vm2764 = vmor %vm2762, %vm2763
  %v2765 = vsel %vm2764, %v2757, %v2761
  %v2766 = vand.u32 2147483647, %v2585
  %vm2767 = vcmp.eq.f32.partialorder %v2766, 8.507059e+37
  %v2768 = vand.u32 %v2585, 2147483648
  %v2769 = vor.u32 1.1754944e-38, %v2768
  %v2770 = vsel %vm2767, %v2769, %v2765
  %v2771 = vmul.f32 1.0, %v2770
  %v2772 = vrcp.pop %v2586
  %v2773 = vmul.f32 %v2586, %v2772
  %v2774 = vsub.f32 1.0, %v2773
  %v2775 = vmul.f32 %v2772, %v2774
  %v2776 = vadd.f32 %v2772, %v2775
  %vm2777 = vweird.f32 %v2586
  %vm2778 = vweird.f32 %v2772
  %vm2779 = vmor %vm2777, %vm2778
  %v2780 = vsel %vm2779, %v2772, %v2776
  %v2781 = vand.u32 2147483647, %v2586
  %vm2782 = vcmp.eq.f32.partialorder %v2781, 8.507059e+37
  %v2783 = vand.u32 %v2586, 2147483648
  %v2784 = vor.u32 1.1754944e-38, %v2783
  %v2785 = vsel %vm2782, %v2784, %v2780
  %v2786 = vmul.f32 1.0, %v2785
  %v2787 = vrcp.pop %v2587
  %v2788 = vmul.f32 %v2587, %v2787
  %v2789 = vsub.f32 1.0, %v2788
  %v2790 = vmul.f32 %v2787, %v2789
  %v2791 = vadd.f32 %v2787, %v2790
  %vm2792 = vweird.f32 %v2587
  %vm2793 = vweird.f32 %v2787
  %vm2794 = vmor %vm2792, %vm2793
  %v2795 = vsel %vm2794, %v2787, %v2791
  %v2796 = vand.u32 2147483647, %v2587
  %vm2797 = vcmp.eq.f32.partialorder %v2796, 8.507059e+37
  %v2798 = vand.u32 %v2587, 2147483648
  %v2799 = vor.u32 1.1754944e-38, %v2798
  %v2800 = vsel %vm2797, %v2799, %v2795
  %v2801 = vmul.f32 1.0, %v2800
  %v2802 = vrcp.pop %v2588
  %v2803 = vmul.f32 %v2588, %v2802
  %v2804 = vsub.f32 1.0, %v2803
  %v2805 = vmul.f32 %v2802, %v2804
  %v2806 = vadd.f32 %v2802, %v2805
  %vm2807 = vweird.f32 %v2588
  %vm2808 = vweird.f32 %v2802
  %vm2809 = vmor %vm2807, %vm2808
  %v2810 = vsel %vm2809, %v2802, %v2806
  %v2811 = vand.u32 2147483647, %v2588
  %vm2812 = vcmp.eq.f32.partialorder %v2811, 8.507059e+37
  %v2813 = vand.u32 %v2588, 2147483648
  %v2814 = vor.u32 1.1754944e-38, %v2813
  %v2815 = vsel %vm2812, %v2814, %v2810
  %v2816 = vmul.f32 1.0, %v2815
  %v2817 = vrcp.pop %v2589
  %v2818 = vmul.f32 %v2589, %v2817
  %v2819 = vsub.f32 1.0, %v2818
  %v2820 = vmul.f32 %v2817, %v2819
  %v2821 = vadd.f32 %v2817, %v2820
  %vm2822 = vweird.f32 %v2589
  %vm2823 = vweird.f32 %v2817
  %vm2824 = vmor %vm2822, %vm2823
  %v2825 = vsel %vm2824, %v2817, %v2821
  %v2826 = vand.u32 2147483647, %v2589
  %vm2827 = vcmp.eq.f32.partialorder %v2826, 8.507059e+37
  %v2828 = vand.u32 %v2589, 2147483648
  %v2829 = vor.u32 1.1754944e-38, %v2828
  %v2830 = vsel %vm2827, %v2829, %v2825
  %v2831 = vmul.f32 1.0, %v2830
  %v2832 = vrcp.pop %v2590
  %v2833 = vmul.f32 %v2590, %v2832
  %v2834 = vsub.f32 1.0, %v2833
  %v2835 = vmul.f32 %v2832, %v2834
  %v2836 = vadd.f32 %v2832, %v2835
  %vm2837 = vweird.f32 %v2590
  %vm2838 = vweird.f32 %v2832
  %vm2839 = vmor %vm2837, %vm2838
  %v2840 = vsel %vm2839, %v2832, %v2836
  %v2841 = vand.u32 2147483647, %v2590
  %vm2842 = vcmp.eq.f32.partialorder %v2841, 8.507059e+37
  %v2843 = vand.u32 %v2590, 2147483648
  %v2844 = vor.u32 1.1754944e-38, %v2843
  %v2845 = vsel %vm2842, %v2844, %v2840
  %v2846 = vmul.f32 1.0, %v2845
  %v2847 = vrcp.pop %v2591
  %v2848 = vmul.f32 %v2591, %v2847
  %v2849 = vsub.f32 1.0, %v2848
  %v2850 = vmul.f32 %v2847, %v2849
  %v2851 = vadd.f32 %v2847, %v2850
  %vm2852 = vweird.f32 %v2591
  %vm2853 = vweird.f32 %v2847
  %vm2854 = vmor %vm2852, %vm2853
  %v2855 = vsel %vm2854, %v2847, %v2851
  %v2856 = vand.u32 2147483647, %v2591
  %vm2857 = vcmp.eq.f32.partialorder %v2856, 8.507059e+37
  %v2858 = vand.u32 %v2591, 2147483648
  %v2859 = vor.u32 1.1754944e-38, %v2858
  %v2860 = vsel %vm2857, %v2859, %v2855
  %v2861 = vmul.f32 1.0, %v2860
  %v2862 = vtanh.pop %v2476
  %v2863 = vtanh.pop %v2478
  %v2864 = vtanh.pop %v2481
  %v2865 = vtanh.pop %v2483
  %v2866 = vtanh.pop %v2486
  %v2867 = vtanh.pop %v2488
  %v2868 = vtanh.pop %v2491
  %v2869 = vtanh.pop %v2493
  %v2870 = vtanh.pop %v2496
  %v2871 = vtanh.pop %v2498
  %v2872 = vtanh.pop %v2501
  %v2873 = vtanh.pop %v2503
  %v2874 = vtanh.pop %v2506
  %v2875 = vtanh.pop %v2508
  %v2876 = vtanh.pop %v2511
  %v2877 = vtanh.pop %v2513
  %v2878 = vtanh.pop %v2516
  %v2879 = vtanh.pop %v2518
  %v2880 = vmul.f32 %v2606, %v2258
  %v2881 = vmul.f32 %v2621, %v2259
  %v2882 = vmul.f32 %v2636, %v2260
  %v2883 = vmul.f32 %v2651, %v2261
  %v2884 = vmul.f32 %v2666, %v2262
  %v2885 = vmul.f32 %v2681, %v2263
  %v2886 = vmul.f32 %v2696, %v2264
  %v2887 = vmul.f32 %v2711, %v2265
  %v2888 = vmul.f32 %v2726, %v2266
  %v2889 = vmul.f32 %v2741, %v2267
  %v2890 = vmul.f32 %v2756, %v2268
  %v2891 = vmul.f32 %v2771, %v2269
  %v2892 = vmul.f32 %v2786, %v2270
  %v2893 = vmul.f32 %v2801, %v2271
  %v2894 = vmul.f32 %v2816, %v2272
  %v2895 = vmul.f32 %v2831, %v2273
  %v2896 = vmul.f32 %v2846, %v2274
  %v2897 = vmul.f32 %v2861, %v2275
  %2916 = vrot.lane.b32.xlu0 %v2862, 32
  %v2917 = vpop.permute.xlu0 %2916
  %2918 = vrot.lane.b32.xlu0 %v2863, 32
  %v2919 = vpop.permute.xlu0 %2918
  %2920 = vrot.lane.b32.xlu0 %v2864, 32
  %v2921 = vpop.permute.xlu0 %2920
  %2922 = vrot.lane.b32.xlu0 %v2865, 32
  %v2923 = vpop.permute.xlu0 %2922
  %2924 = vrot.lane.b32.xlu0 %v2866, 32
  %v2925 = vpop.permute.xlu0 %2924
  %2926 = vrot.lane.b32.xlu0 %v2867, 32
  %v2927 = vpop.permute.xlu0 %2926
  %2928 = vrot.lane.b32.xlu0 %v2868, 32
  %v2929 = vpop.permute.xlu0 %2928
  %2930 = vrot.lane.b32.xlu0 %v2869, 32
  %v2931 = vpop.permute.xlu0 %2930
  %2932 = vrot.lane.b32.xlu0 %v2870, 32
  %v2933 = vpop.permute.xlu0 %2932
  %2934 = vrot.lane.b32.xlu0 %v2871, 32
  %v2935 = vpop.permute.xlu0 %2934
  %2936 = vrot.lane.b32.xlu0 %v2872, 32
  %v2937 = vpop.permute.xlu0 %2936
  %2938 = vrot.lane.b32.xlu0 %v2873, 32
  %v2939 = vpop.permute.xlu0 %2938
  %2940 = vrot.lane.b32.xlu0 %v2874, 32
  %v2941 = vpop.permute.xlu0 %2940
  %2942 = vrot.lane.b32.xlu0 %v2875, 32
  %v2943 = vpop.permute.xlu0 %2942
  %2944 = vrot.lane.b32.xlu0 %v2876, 32
  %v2945 = vpop.permute.xlu0 %2944
  %2946 = vrot.lane.b32.xlu0 %v2877, 32
  %v2947 = vpop.permute.xlu0 %2946
  %2948 = vrot.lane.b32.xlu0 %v2878, 32
  %v2949 = vpop.permute.xlu0 %2948
  %2950 = vrot.lane.b32.xlu0 %v2879, 32
  %v2951 = vpop.permute.xlu0 %2950
  %v2970 = vmul.f32 %v2606, %v2917
  %v2971 = vmul.f32 %v2621, %v2919
  %v2972 = vmul.f32 %v2636, %v2921
  %v2973 = vmul.f32 %v2651, %v2923
  %v2974 = vmul.f32 %v2666, %v2925
  %v2975 = vmul.f32 %v2681, %v2927
  %v2976 = vmul.f32 %v2696, %v2929
  %v2977 = vmul.f32 %v2711, %v2931
  %v2978 = vmul.f32 %v2726, %v2933
  %v2979 = vmul.f32 %v2741, %v2935
  %v2980 = vmul.f32 %v2756, %v2937
  %v2981 = vmul.f32 %v2771, %v2939
  %v2982 = vmul.f32 %v2786, %v2941
  %v2983 = vmul.f32 %v2801, %v2943
  %v2984 = vmul.f32 %v2816, %v2945
  %v2985 = vmul.f32 %v2831, %v2947
  %v2986 = vmul.f32 %v2846, %v2949
  %v2987 = vmul.f32 %v2861, %v2951
  %3006 = vrot.lane.b32.xlu0 %v2970, 32
  %v3007 = vpop.permute.xlu0 %3006
  %3008 = vrot.lane.b32.xlu0 %v2971, 32
  %v3009 = vpop.permute.xlu0 %3008
  %3010 = vrot.lane.b32.xlu0 %v2972, 32
  %v3011 = vpop.permute.xlu0 %3010
  %3012 = vrot.lane.b32.xlu0 %v2973, 32
  %v3013 = vpop.permute.xlu0 %3012
  %3014 = vrot.lane.b32.xlu0 %v2974, 32
  %v3015 = vpop.permute.xlu0 %3014
  %3016 = vrot.lane.b32.xlu0 %v2975, 32
  %v3017 = vpop.permute.xlu0 %3016
  %3018 = vrot.lane.b32.xlu0 %v2976, 32
  %v3019 = vpop.permute.xlu0 %3018
  %3020 = vrot.lane.b32.xlu0 %v2977, 32
  %v3021 = vpop.permute.xlu0 %3020
  %3022 = vrot.lane.b32.xlu0 %v2978, 32
  %v3023 = vpop.permute.xlu0 %3022
  %3024 = vrot.lane.b32.xlu0 %v2979, 32
  %v3025 = vpop.permute.xlu0 %3024
  %3026 = vrot.lane.b32.xlu0 %v2980, 32
  %v3027 = vpop.permute.xlu0 %3026
  %3028 = vrot.lane.b32.xlu0 %v2981, 32
  %v3029 = vpop.permute.xlu0 %3028
  %3030 = vrot.lane.b32.xlu0 %v2982, 32
  %v3031 = vpop.permute.xlu0 %3030
  %3032 = vrot.lane.b32.xlu0 %v2983, 32
  %v3033 = vpop.permute.xlu0 %3032
  %3034 = vrot.lane.b32.xlu0 %v2984, 32
  %v3035 = vpop.permute.xlu0 %3034
  %3036 = vrot.lane.b32.xlu0 %v2985, 32
  %v3037 = vpop.permute.xlu0 %3036
  %3038 = vrot.lane.b32.xlu0 %v2986, 32
  %v3039 = vpop.permute.xlu0 %3038
  %3040 = vrot.lane.b32.xlu0 %v2987, 32
  %v3041 = vpop.permute.xlu0 %3040
  %v3060 = vadd.f32 %v2880, %v3007
  %v3061 = vadd.f32 %v2881, %v3009
  %v3062 = vadd.f32 %v2882, %v3011
  %v3063 = vadd.f32 %v2883, %v3013
  %v3064 = vadd.f32 %v2884, %v3015
  %v3065 = vadd.f32 %v2885, %v3017
  %v3066 = vadd.f32 %v2886, %v3019
  %v3067 = vadd.f32 %v2887, %v3021
  %v3068 = vadd.f32 %v2888, %v3023
  %v3069 = vadd.f32 %v2889, %v3025
  %v3070 = vadd.f32 %v2890, %v3027
  %v3071 = vadd.f32 %v2891, %v3029
  %v3072 = vadd.f32 %v2892, %v3031
  %v3073 = vadd.f32 %v2893, %v3033
  %v3074 = vadd.f32 %v2894, %v3035
  %v3075 = vadd.f32 %v2895, %v3037
  %v3076 = vadd.f32 %v2896, %v3039
  %v3077 = vadd.f32 %v2897, %v3041
  %v3078 = vtanh.pop %v3060
  %v3079 = vtanh.pop %v3061
  %v3080 = vtanh.pop %v3062
  %v3081 = vtanh.pop %v3063
  %v3082 = vtanh.pop %v3064
  %v3083 = vtanh.pop %v3065
  %v3084 = vtanh.pop %v3066
  %v3085 = vtanh.pop %v3067
  %v3086 = vtanh.pop %v3068
  %v3087 = vtanh.pop %v3069
  %v3088 = vtanh.pop %v3070
  %v3089 = vtanh.pop %v3071
  %v3090 = vtanh.pop %v3072
  %v3091 = vtanh.pop %v3073
  %v3092 = vtanh.pop %v3074
  %v3093 = vtanh.pop %v3075
  %v3094 = vtanh.pop %v3076
  %v3095 = vtanh.pop %v3077
  %3114 = vrot.lane.b32.xlu0 %v3078, 32
  %v3115 = vpop.permute.xlu0 %3114
  %3116 = vrot.lane.b32.xlu0 %v3079, 32
  %v3117 = vpop.permute.xlu0 %3116
  %3118 = vrot.lane.b32.xlu0 %v3080, 32
  %v3119 = vpop.permute.xlu0 %3118
  %3120 = vrot.lane.b32.xlu0 %v3081, 32
  %v3121 = vpop.permute.xlu0 %3120
  %3122 = vrot.lane.b32.xlu0 %v3082, 32
  %v3123 = vpop.permute.xlu0 %3122
  %3124 = vrot.lane.b32.xlu0 %v3083, 32
  %v3125 = vpop.permute.xlu0 %3124
  %3126 = vrot.lane.b32.xlu0 %v3084, 32
  %v3127 = vpop.permute.xlu0 %3126
  %3128 = vrot.lane.b32.xlu0 %v3085, 32
  %v3129 = vpop.permute.xlu0 %3128
  %3130 = vrot.lane.b32.xlu0 %v3086, 32
  %v3131 = vpop.permute.xlu0 %3130
  %3132 = vrot.lane.b32.xlu0 %v3087, 32
  %v3133 = vpop.permute.xlu0 %3132
  %3134 = vrot.lane.b32.xlu0 %v3088, 32
  %v3135 = vpop.permute.xlu0 %3134
  %3136 = vrot.lane.b32.xlu0 %v3089, 32
  %v3137 = vpop.permute.xlu0 %3136
  %3138 = vrot.lane.b32.xlu0 %v3090, 32
  %v3139 = vpop.permute.xlu0 %3138
  %3140 = vrot.lane.b32.xlu0 %v3091, 32
  %v3141 = vpop.permute.xlu0 %3140
  %3142 = vrot.lane.b32.xlu0 %v3092, 32
  %v3143 = vpop.permute.xlu0 %3142
  %3144 = vrot.lane.b32.xlu0 %v3093, 32
  %v3145 = vpop.permute.xlu0 %3144
  %3146 = vrot.lane.b32.xlu0 %v3094, 32
  %v3147 = vpop.permute.xlu0 %3146
  %3148 = vrot.lane.b32.xlu0 %v3095, 32
  %v3149 = vpop.permute.xlu0 %3148
  %v3168 = vmul.f32 %v2606, %v3115
  %v3169 = vmul.f32 %v2621, %v3117
  %v3170 = vmul.f32 %v2636, %v3119
  %v3171 = vmul.f32 %v2651, %v3121
  %v3172 = vmul.f32 %v2666, %v3123
  %v3173 = vmul.f32 %v2681, %v3125
  %v3174 = vmul.f32 %v2696, %v3127
  %v3175 = vmul.f32 %v2711, %v3129
  %v3176 = vmul.f32 %v2726, %v3131
  %v3177 = vmul.f32 %v2741, %v3133
  %v3178 = vmul.f32 %v2756, %v3135
  %v3179 = vmul.f32 %v2771, %v3137
  %v3180 = vmul.f32 %v2786, %v3139
  %v3181 = vmul.f32 %v2801, %v3141
  %v3182 = vmul.f32 %v2816, %v3143
  %v3183 = vmul.f32 %v2831, %v3145
  %v3184 = vmul.f32 %v2846, %v3147
  %v3185 = vmul.f32 %v2861, %v3149
  %v3186 = vpack.c.bf16 %v3169, %v3168
  %v3187 = vpack.c.bf16 %v3171, %v3170
  %v3188 = vpack.c.bf16 %v3173, %v3172
  %v3189 = vpack.c.bf16 %v3175, %v3174
  %v3190 = vpack.c.bf16 %v3177, %v3176
  %v3191 = vpack.c.bf16 %v3179, %v3178
  %v3192 = vpack.c.bf16 %v3181, %v3180
  %v3193 = vpack.c.bf16 %v3183, %v3182
  %v3194 = vpack.c.bf16 %v3185, %v3184
  %s3195 = scalar_lea.vmem %s0, 576
  %v3196 = vld [vmem:[%s3195] sm:$0xff]
  %v3197 = vld [vmem:[%s3195 + $0x8] sm:$0xff]
  %v3198 = vld [vmem:[%s3195 + $0x10] sm:$0xff]
  %v3199 = vld [vmem:[%s3195 + $0x18] sm:$0xff]
  %v3200 = vld [vmem:[%s3195 + $0x20] sm:$0xff]
  %v3201 = vld [vmem:[%s3195 + $0x28] sm:$0xff]
  %v3202 = vld [vmem:[%s3195 + $0x30] sm:$0xff]
  %v3203 = vld [vmem:[%s3195 + $0x38] sm:$0xff]
  %v3204 = vld [vmem:[%s3195 + $0x40] sm:$0xff]
  %v3205 = vld [vmem:[%s3195 + $0x48] sm:$0xff]
  %v3206 = vld [vmem:[%s3195 + $0x50] sm:$0xff]
  %v3207 = vld [vmem:[%s3195 + $0x58] sm:$0xff]
  %v3208 = vld [vmem:[%s3195 + $0x60] sm:$0xff]
  %v3209 = vld [vmem:[%s3195 + $0x68] sm:$0xff]
  %v3210 = vld [vmem:[%s3195 + $0x70] sm:$0xff]
  %v3211 = vld [vmem:[%s3195 + $0x78] sm:$0xff]
  %v3212 = vld [vmem:[%s3195 + $0x80] sm:$0xff]
  %v3213 = vld [vmem:[%s3195 + $0x88] sm:$0xff]
  %3223 = vrot.lane.b32.xlu0 %v3186, 64
  %v3224 = vpop.permute.xlu0 %3223
  %3225 = vrot.lane.b32.xlu0 %v3187, 64
  %v3226 = vpop.permute.xlu0 %3225
  %3227 = vrot.lane.b32.xlu0 %v3188, 64
  %v3228 = vpop.permute.xlu0 %3227
  %3229 = vrot.lane.b32.xlu0 %v3189, 64
  %v3230 = vpop.permute.xlu0 %3229
  %3231 = vrot.lane.b32.xlu0 %v3190, 64
  %v3232 = vpop.permute.xlu0 %3231
  %3233 = vrot.lane.b32.xlu0 %v3191, 64
  %v3234 = vpop.permute.xlu0 %3233
  %3235 = vrot.lane.b32.xlu0 %v3192, 64
  %v3236 = vpop.permute.xlu0 %3235
  %3237 = vrot.lane.b32.xlu0 %v3193, 64
  %v3238 = vpop.permute.xlu0 %3237
  %3239 = vrot.lane.b32.xlu0 %v3194, 64
  %v3240 = vpop.permute.xlu0 %3239
  %v3242 = vsel %vm56, %v3224, 0
  %v3245 = vsel %vm56, %v3226, 0
  %v3248 = vsel %vm56, %v3228, 0
  %v3251 = vsel %vm56, %v3230, 0
  %v3254 = vsel %vm56, %v3232, 0
  %v3257 = vsel %vm56, %v3234, 0
  %v3260 = vsel %vm56, %v3236, 0
  %v3263 = vsel %vm56, %v3238, 0
  %v3266 = vsel %vm56, %v3240, 0
  %3268 = vmatpush.bf16.msra.mxu0 0
  %3269 = vmatpush.bf16.msra.mxu0 0
  %3270 = vmatpush.bf16.msra.mxu0 0
  %3271 = vmatpush.bf16.msra.mxu0 0
  %3272 = vmatpush.bf16.msra.mxu0 0
  %3273 = vmatpush.bf16.msra.mxu0 0
  %3274 = vmatpush.bf16.msra.mxu0 %v53
  %3275 = vmatpush.bf16.msra.mxu0 %v52
  %3276 = vmatmul.bf16.gmra.mxu0 %v3242
  %v3277 = vpop.f32.mrf.mxu0
  %v3278 = vadd.f32 %v3196, %v3277
  %v3279 = vpop.f32.mrf.mxu0
  %v3280 = vadd.f32 %v3197, %v3279
  %3281 = vmatmul.bf16.gmra.mxu0 %v3245
  %v3282 = vpop.f32.mrf.mxu0
  %v3283 = vadd.f32 %v3198, %v3282
  %v3284 = vpop.f32.mrf.mxu0
  %v3285 = vadd.f32 %v3199, %v3284
  %3286 = vmatmul.bf16.gmra.mxu0 %v3248
  %v3287 = vpop.f32.mrf.mxu0
  %v3288 = vadd.f32 %v3200, %v3287
  %v3289 = vpop.f32.mrf.mxu0
  %v3290 = vadd.f32 %v3201, %v3289
  %3291 = vmatmul.bf16.gmra.mxu0 %v3251
  %v3292 = vpop.f32.mrf.mxu0
  %v3293 = vadd.f32 %v3202, %v3292
  %v3294 = vpop.f32.mrf.mxu0
  %v3295 = vadd.f32 %v3203, %v3294
  %3296 = vmatmul.bf16.gmra.mxu0 %v3254
  %v3297 = vpop.f32.mrf.mxu0
  %v3298 = vadd.f32 %v3204, %v3297
  %v3299 = vpop.f32.mrf.mxu0
  %v3300 = vadd.f32 %v3205, %v3299
  %3301 = vmatmul.bf16.gmra.mxu0 %v3257
  %v3302 = vpop.f32.mrf.mxu0
  %v3303 = vadd.f32 %v3206, %v3302
  %v3304 = vpop.f32.mrf.mxu0
  %v3305 = vadd.f32 %v3207, %v3304
  %3306 = vmatmul.bf16.gmra.mxu0 %v3260
  %v3307 = vpop.f32.mrf.mxu0
  %v3308 = vadd.f32 %v3208, %v3307
  %v3309 = vpop.f32.mrf.mxu0
  %v3310 = vadd.f32 %v3209, %v3309
  %3311 = vmatmul.bf16.gmra.mxu0 %v3263
  %v3312 = vpop.f32.mrf.mxu0
  %v3313 = vadd.f32 %v3210, %v3312
  %v3314 = vpop.f32.mrf.mxu0
  %v3315 = vadd.f32 %v3211, %v3314
  %3316 = vmatmul.bf16.gmra.mxu0 %v3266
  %v3317 = vpop.f32.mrf.mxu0
  %v3318 = vadd.f32 %v3212, %v3317
  %v3319 = vpop.f32.mrf.mxu0
  %v3320 = vadd.f32 %v3213, %v3319
  %3321 = vdwg.mxu0
  %v3322 = vxor.u32 %v3278, 2147483648
  %v3323 = vxor.u32 %v3280, 2147483648
  %v3324 = vxor.u32 %v3283, 2147483648
  %v3325 = vxor.u32 %v3285, 2147483648
  %v3326 = vxor.u32 %v3288, 2147483648
  %v3327 = vxor.u32 %v3290, 2147483648
  %v3328 = vxor.u32 %v3293, 2147483648
  %v3329 = vxor.u32 %v3295, 2147483648
  %v3330 = vxor.u32 %v3298, 2147483648
  %v3331 = vxor.u32 %v3300, 2147483648
  %v3332 = vxor.u32 %v3303, 2147483648
  %v3333 = vxor.u32 %v3305, 2147483648
  %v3334 = vxor.u32 %v3308, 2147483648
  %v3335 = vxor.u32 %v3310, 2147483648
  %v3336 = vxor.u32 %v3313, 2147483648
  %v3337 = vxor.u32 %v3315, 2147483648
  %v3338 = vxor.u32 %v3318, 2147483648
  %v3339 = vxor.u32 %v3320, 2147483648
  %v3340 = vmul.f32 %v3322, 1.442695
  %v3341 = vpow.pop %v3340
  %v3342 = vmul.f32 %v3323, 1.442695
  %v3343 = vpow.pop %v3342
  %v3344 = vmul.f32 %v3324, 1.442695
  %v3345 = vpow.pop %v3344
  %v3346 = vmul.f32 %v3325, 1.442695
  %v3347 = vpow.pop %v3346
  %v3348 = vmul.f32 %v3326, 1.442695
  %v3349 = vpow.pop %v3348
  %v3350 = vmul.f32 %v3327, 1.442695
  %v3351 = vpow.pop %v3350
  %v3352 = vmul.f32 %v3328, 1.442695
  %v3353 = vpow.pop %v3352
  %v3354 = vmul.f32 %v3329, 1.442695
  %v3355 = vpow.pop %v3354
  %v3356 = vmul.f32 %v3330, 1.442695
  %v3357 = vpow.pop %v3356
  %v3358 = vmul.f32 %v3331, 1.442695
  %v3359 = vpow.pop %v3358
  %v3360 = vmul.f32 %v3332, 1.442695
  %v3361 = vpow.pop %v3360
  %v3362 = vmul.f32 %v3333, 1.442695
  %v3363 = vpow.pop %v3362
  %v3364 = vmul.f32 %v3334, 1.442695
  %v3365 = vpow.pop %v3364
  %v3366 = vmul.f32 %v3335, 1.442695
  %v3367 = vpow.pop %v3366
  %v3368 = vmul.f32 %v3336, 1.442695
  %v3369 = vpow.pop %v3368
  %v3370 = vmul.f32 %v3337, 1.442695
  %v3371 = vpow.pop %v3370
  %v3372 = vmul.f32 %v3338, 1.442695
  %v3373 = vpow.pop %v3372
  %v3374 = vmul.f32 %v3339, 1.442695
  %v3375 = vpow.pop %v3374
  %v3376 = vadd.f32 %v3341, 1.0
  %v3377 = vadd.f32 %v3343, 1.0
  %v3378 = vadd.f32 %v3345, 1.0
  %v3379 = vadd.f32 %v3347, 1.0
  %v3380 = vadd.f32 %v3349, 1.0
  %v3381 = vadd.f32 %v3351, 1.0
  %v3382 = vadd.f32 %v3353, 1.0
  %v3383 = vadd.f32 %v3355, 1.0
  %v3384 = vadd.f32 %v3357, 1.0
  %v3385 = vadd.f32 %v3359, 1.0
  %v3386 = vadd.f32 %v3361, 1.0
  %v3387 = vadd.f32 %v3363, 1.0
  %v3388 = vadd.f32 %v3365, 1.0
  %v3389 = vadd.f32 %v3367, 1.0
  %v3390 = vadd.f32 %v3369, 1.0
  %v3391 = vadd.f32 %v3371, 1.0
  %v3392 = vadd.f32 %v3373, 1.0
  %v3393 = vadd.f32 %v3375, 1.0
  %v3394 = vrcp.pop %v3376
  %v3395 = vmul.f32 %v3376, %v3394
  %v3396 = vsub.f32 1.0, %v3395
  %v3397 = vmul.f32 %v3394, %v3396
  %v3398 = vadd.f32 %v3394, %v3397
  %vm3399 = vweird.f32 %v3376
  %vm3400 = vweird.f32 %v3394
  %vm3401 = vmor %vm3399, %vm3400
  %v3402 = vsel %vm3401, %v3394, %v3398
  %v3403 = vand.u32 2147483647, %v3376
  %vm3404 = vcmp.eq.f32.partialorder %v3403, 8.507059e+37
  %v3405 = vand.u32 %v3376, 2147483648
  %v3406 = vor.u32 1.1754944e-38, %v3405
  %v3407 = vsel %vm3404, %v3406, %v3402
  %v3408 = vmul.f32 1.0, %v3407
  %v3409 = vrcp.pop %v3377
  %v3410 = vmul.f32 %v3377, %v3409
  %v3411 = vsub.f32 1.0, %v3410
  %v3412 = vmul.f32 %v3409, %v3411
  %v3413 = vadd.f32 %v3409, %v3412
  %vm3414 = vweird.f32 %v3377
  %vm3415 = vweird.f32 %v3409
  %vm3416 = vmor %vm3414, %vm3415
  %v3417 = vsel %vm3416, %v3409, %v3413
  %v3418 = vand.u32 2147483647, %v3377
  %vm3419 = vcmp.eq.f32.partialorder %v3418, 8.507059e+37
  %v3420 = vand.u32 %v3377, 2147483648
  %v3421 = vor.u32 1.1754944e-38, %v3420
  %v3422 = vsel %vm3419, %v3421, %v3417
  %v3423 = vmul.f32 1.0, %v3422
  %v3424 = vrcp.pop %v3378
  %v3425 = vmul.f32 %v3378, %v3424
  %v3426 = vsub.f32 1.0, %v3425
  %v3427 = vmul.f32 %v3424, %v3426
  %v3428 = vadd.f32 %v3424, %v3427
  %vm3429 = vweird.f32 %v3378
  %vm3430 = vweird.f32 %v3424
  %vm3431 = vmor %vm3429, %vm3430
  %v3432 = vsel %vm3431, %v3424, %v3428
  %v3433 = vand.u32 2147483647, %v3378
  %vm3434 = vcmp.eq.f32.partialorder %v3433, 8.507059e+37
  %v3435 = vand.u32 %v3378, 2147483648
  %v3436 = vor.u32 1.1754944e-38, %v3435
  %v3437 = vsel %vm3434, %v3436, %v3432
  %v3438 = vmul.f32 1.0, %v3437
  %v3439 = vrcp.pop %v3379
  %v3440 = vmul.f32 %v3379, %v3439
  %v3441 = vsub.f32 1.0, %v3440
  %v3442 = vmul.f32 %v3439, %v3441
  %v3443 = vadd.f32 %v3439, %v3442
  %vm3444 = vweird.f32 %v3379
  %vm3445 = vweird.f32 %v3439
  %vm3446 = vmor %vm3444, %vm3445
  %v3447 = vsel %vm3446, %v3439, %v3443
  %v3448 = vand.u32 2147483647, %v3379
  %vm3449 = vcmp.eq.f32.partialorder %v3448, 8.507059e+37
  %v3450 = vand.u32 %v3379, 2147483648
  %v3451 = vor.u32 1.1754944e-38, %v3450
  %v3452 = vsel %vm3449, %v3451, %v3447
  %v3453 = vmul.f32 1.0, %v3452
  %v3454 = vrcp.pop %v3380
  %v3455 = vmul.f32 %v3380, %v3454
  %v3456 = vsub.f32 1.0, %v3455
  %v3457 = vmul.f32 %v3454, %v3456
  %v3458 = vadd.f32 %v3454, %v3457
  %vm3459 = vweird.f32 %v3380
  %vm3460 = vweird.f32 %v3454
  %vm3461 = vmor %vm3459, %vm3460
  %v3462 = vsel %vm3461, %v3454, %v3458
  %v3463 = vand.u32 2147483647, %v3380
  %vm3464 = vcmp.eq.f32.partialorder %v3463, 8.507059e+37
  %v3465 = vand.u32 %v3380, 2147483648
  %v3466 = vor.u32 1.1754944e-38, %v3465
  %v3467 = vsel %vm3464, %v3466, %v3462
  %v3468 = vmul.f32 1.0, %v3467
  %v3469 = vrcp.pop %v3381
  %v3470 = vmul.f32 %v3381, %v3469
  %v3471 = vsub.f32 1.0, %v3470
  %v3472 = vmul.f32 %v3469, %v3471
  %v3473 = vadd.f32 %v3469, %v3472
  %vm3474 = vweird.f32 %v3381
  %vm3475 = vweird.f32 %v3469
  %vm3476 = vmor %vm3474, %vm3475
  %v3477 = vsel %vm3476, %v3469, %v3473
  %v3478 = vand.u32 2147483647, %v3381
  %vm3479 = vcmp.eq.f32.partialorder %v3478, 8.507059e+37
  %v3480 = vand.u32 %v3381, 2147483648
  %v3481 = vor.u32 1.1754944e-38, %v3480
  %v3482 = vsel %vm3479, %v3481, %v3477
  %v3483 = vmul.f32 1.0, %v3482
  %v3484 = vrcp.pop %v3382
  %v3485 = vmul.f32 %v3382, %v3484
  %v3486 = vsub.f32 1.0, %v3485
  %v3487 = vmul.f32 %v3484, %v3486
  %v3488 = vadd.f32 %v3484, %v3487
  %vm3489 = vweird.f32 %v3382
  %vm3490 = vweird.f32 %v3484
  %vm3491 = vmor %vm3489, %vm3490
  %v3492 = vsel %vm3491, %v3484, %v3488
  %v3493 = vand.u32 2147483647, %v3382
  %vm3494 = vcmp.eq.f32.partialorder %v3493, 8.507059e+37
  %v3495 = vand.u32 %v3382, 2147483648
  %v3496 = vor.u32 1.1754944e-38, %v3495
  %v3497 = vsel %vm3494, %v3496, %v3492
  %v3498 = vmul.f32 1.0, %v3497
  %v3499 = vrcp.pop %v3383
  %v3500 = vmul.f32 %v3383, %v3499
  %v3501 = vsub.f32 1.0, %v3500
  %v3502 = vmul.f32 %v3499, %v3501
  %v3503 = vadd.f32 %v3499, %v3502
  %vm3504 = vweird.f32 %v3383
  %vm3505 = vweird.f32 %v3499
  %vm3506 = vmor %vm3504, %vm3505
  %v3507 = vsel %vm3506, %v3499, %v3503
  %v3508 = vand.u32 2147483647, %v3383
  %vm3509 = vcmp.eq.f32.partialorder %v3508, 8.507059e+37
  %v3510 = vand.u32 %v3383, 2147483648
  %v3511 = vor.u32 1.1754944e-38, %v3510
  %v3512 = vsel %vm3509, %v3511, %v3507
  %v3513 = vmul.f32 1.0, %v3512
  %v3514 = vrcp.pop %v3384
  %v3515 = vmul.f32 %v3384, %v3514
  %v3516 = vsub.f32 1.0, %v3515
  %v3517 = vmul.f32 %v3514, %v3516
  %v3518 = vadd.f32 %v3514, %v3517
  %vm3519 = vweird.f32 %v3384
  %vm3520 = vweird.f32 %v3514
  %vm3521 = vmor %vm3519, %vm3520
  %v3522 = vsel %vm3521, %v3514, %v3518
  %v3523 = vand.u32 2147483647, %v3384
  %vm3524 = vcmp.eq.f32.partialorder %v3523, 8.507059e+37
  %v3525 = vand.u32 %v3384, 2147483648
  %v3526 = vor.u32 1.1754944e-38, %v3525
  %v3527 = vsel %vm3524, %v3526, %v3522
  %v3528 = vmul.f32 1.0, %v3527
  %v3529 = vrcp.pop %v3385
  %v3530 = vmul.f32 %v3385, %v3529
  %v3531 = vsub.f32 1.0, %v3530
  %v3532 = vmul.f32 %v3529, %v3531
  %v3533 = vadd.f32 %v3529, %v3532
  %vm3534 = vweird.f32 %v3385
  %vm3535 = vweird.f32 %v3529
  %vm3536 = vmor %vm3534, %vm3535
  %v3537 = vsel %vm3536, %v3529, %v3533
  %v3538 = vand.u32 2147483647, %v3385
  %vm3539 = vcmp.eq.f32.partialorder %v3538, 8.507059e+37
  %v3540 = vand.u32 %v3385, 2147483648
  %v3541 = vor.u32 1.1754944e-38, %v3540
  %v3542 = vsel %vm3539, %v3541, %v3537
  %v3543 = vmul.f32 1.0, %v3542
  %v3544 = vrcp.pop %v3386
  %v3545 = vmul.f32 %v3386, %v3544
  %v3546 = vsub.f32 1.0, %v3545
  %v3547 = vmul.f32 %v3544, %v3546
  %v3548 = vadd.f32 %v3544, %v3547
  %vm3549 = vweird.f32 %v3386
  %vm3550 = vweird.f32 %v3544
  %vm3551 = vmor %vm3549, %vm3550
  %v3552 = vsel %vm3551, %v3544, %v3548
  %v3553 = vand.u32 2147483647, %v3386
  %vm3554 = vcmp.eq.f32.partialorder %v3553, 8.507059e+37
  %v3555 = vand.u32 %v3386, 2147483648
  %v3556 = vor.u32 1.1754944e-38, %v3555
  %v3557 = vsel %vm3554, %v3556, %v3552
  %v3558 = vmul.f32 1.0, %v3557
  %v3559 = vrcp.pop %v3387
  %v3560 = vmul.f32 %v3387, %v3559
  %v3561 = vsub.f32 1.0, %v3560
  %v3562 = vmul.f32 %v3559, %v3561
  %v3563 = vadd.f32 %v3559, %v3562
  %vm3564 = vweird.f32 %v3387
  %vm3565 = vweird.f32 %v3559
  %vm3566 = vmor %vm3564, %vm3565
  %v3567 = vsel %vm3566, %v3559, %v3563
  %v3568 = vand.u32 2147483647, %v3387
  %vm3569 = vcmp.eq.f32.partialorder %v3568, 8.507059e+37
  %v3570 = vand.u32 %v3387, 2147483648
  %v3571 = vor.u32 1.1754944e-38, %v3570
  %v3572 = vsel %vm3569, %v3571, %v3567
  %v3573 = vmul.f32 1.0, %v3572
  %v3574 = vrcp.pop %v3388
  %v3575 = vmul.f32 %v3388, %v3574
  %v3576 = vsub.f32 1.0, %v3575
  %v3577 = vmul.f32 %v3574, %v3576
  %v3578 = vadd.f32 %v3574, %v3577
  %vm3579 = vweird.f32 %v3388
  %vm3580 = vweird.f32 %v3574
  %vm3581 = vmor %vm3579, %vm3580
  %v3582 = vsel %vm3581, %v3574, %v3578
  %v3583 = vand.u32 2147483647, %v3388
  %vm3584 = vcmp.eq.f32.partialorder %v3583, 8.507059e+37
  %v3585 = vand.u32 %v3388, 2147483648
  %v3586 = vor.u32 1.1754944e-38, %v3585
  %v3587 = vsel %vm3584, %v3586, %v3582
  %v3588 = vmul.f32 1.0, %v3587
  %v3589 = vrcp.pop %v3389
  %v3590 = vmul.f32 %v3389, %v3589
  %v3591 = vsub.f32 1.0, %v3590
  %v3592 = vmul.f32 %v3589, %v3591
  %v3593 = vadd.f32 %v3589, %v3592
  %vm3594 = vweird.f32 %v3389
  %vm3595 = vweird.f32 %v3589
  %vm3596 = vmor %vm3594, %vm3595
  %v3597 = vsel %vm3596, %v3589, %v3593
  %v3598 = vand.u32 2147483647, %v3389
  %vm3599 = vcmp.eq.f32.partialorder %v3598, 8.507059e+37
  %v3600 = vand.u32 %v3389, 2147483648
  %v3601 = vor.u32 1.1754944e-38, %v3600
  %v3602 = vsel %vm3599, %v3601, %v3597
  %v3603 = vmul.f32 1.0, %v3602
  %v3604 = vrcp.pop %v3390
  %v3605 = vmul.f32 %v3390, %v3604
  %v3606 = vsub.f32 1.0, %v3605
  %v3607 = vmul.f32 %v3604, %v3606
  %v3608 = vadd.f32 %v3604, %v3607
  %vm3609 = vweird.f32 %v3390
  %vm3610 = vweird.f32 %v3604
  %vm3611 = vmor %vm3609, %vm3610
  %v3612 = vsel %vm3611, %v3604, %v3608
  %v3613 = vand.u32 2147483647, %v3390
  %vm3614 = vcmp.eq.f32.partialorder %v3613, 8.507059e+37
  %v3615 = vand.u32 %v3390, 2147483648
  %v3616 = vor.u32 1.1754944e-38, %v3615
  %v3617 = vsel %vm3614, %v3616, %v3612
  %v3618 = vmul.f32 1.0, %v3617
  %v3619 = vrcp.pop %v3391
  %v3620 = vmul.f32 %v3391, %v3619
  %v3621 = vsub.f32 1.0, %v3620
  %v3622 = vmul.f32 %v3619, %v3621
  %v3623 = vadd.f32 %v3619, %v3622
  %vm3624 = vweird.f32 %v3391
  %vm3625 = vweird.f32 %v3619
  %vm3626 = vmor %vm3624, %vm3625
  %v3627 = vsel %vm3626, %v3619, %v3623
  %v3628 = vand.u32 2147483647, %v3391
  %vm3629 = vcmp.eq.f32.partialorder %v3628, 8.507059e+37
  %v3630 = vand.u32 %v3391, 2147483648
  %v3631 = vor.u32 1.1754944e-38, %v3630
  %v3632 = vsel %vm3629, %v3631, %v3627
  %v3633 = vmul.f32 1.0, %v3632
  %v3634 = vrcp.pop %v3392
  %v3635 = vmul.f32 %v3392, %v3634
  %v3636 = vsub.f32 1.0, %v3635
  %v3637 = vmul.f32 %v3634, %v3636
  %v3638 = vadd.f32 %v3634, %v3637
  %vm3639 = vweird.f32 %v3392
  %vm3640 = vweird.f32 %v3634
  %vm3641 = vmor %vm3639, %vm3640
  %v3642 = vsel %vm3641, %v3634, %v3638
  %v3643 = vand.u32 2147483647, %v3392
  %vm3644 = vcmp.eq.f32.partialorder %v3643, 8.507059e+37
  %v3645 = vand.u32 %v3392, 2147483648
  %v3646 = vor.u32 1.1754944e-38, %v3645
  %v3647 = vsel %vm3644, %v3646, %v3642
  %v3648 = vmul.f32 1.0, %v3647
  %v3649 = vrcp.pop %v3393
  %v3650 = vmul.f32 %v3393, %v3649
  %v3651 = vsub.f32 1.0, %v3650
  %v3652 = vmul.f32 %v3649, %v3651
  %v3653 = vadd.f32 %v3649, %v3652
  %vm3654 = vweird.f32 %v3393
  %vm3655 = vweird.f32 %v3649
  %vm3656 = vmor %vm3654, %vm3655
  %v3657 = vsel %vm3656, %v3649, %v3653
  %v3658 = vand.u32 2147483647, %v3393
  %vm3659 = vcmp.eq.f32.partialorder %v3658, 8.507059e+37
  %v3660 = vand.u32 %v3393, 2147483648
  %v3661 = vor.u32 1.1754944e-38, %v3660
  %v3662 = vsel %vm3659, %v3661, %v3657
  %v3663 = vmul.f32 1.0, %v3662
  %v3664 = vtanh.pop %v3278
  %v3665 = vtanh.pop %v3280
  %v3666 = vtanh.pop %v3283
  %v3667 = vtanh.pop %v3285
  %v3668 = vtanh.pop %v3288
  %v3669 = vtanh.pop %v3290
  %v3670 = vtanh.pop %v3293
  %v3671 = vtanh.pop %v3295
  %v3672 = vtanh.pop %v3298
  %v3673 = vtanh.pop %v3300
  %v3674 = vtanh.pop %v3303
  %v3675 = vtanh.pop %v3305
  %v3676 = vtanh.pop %v3308
  %v3677 = vtanh.pop %v3310
  %v3678 = vtanh.pop %v3313
  %v3679 = vtanh.pop %v3315
  %v3680 = vtanh.pop %v3318
  %v3681 = vtanh.pop %v3320
  %v3682 = vmul.f32 %v3408, %v3060
  %v3683 = vmul.f32 %v3423, %v3061
  %v3684 = vmul.f32 %v3438, %v3062
  %v3685 = vmul.f32 %v3453, %v3063
  %v3686 = vmul.f32 %v3468, %v3064
  %v3687 = vmul.f32 %v3483, %v3065
  %v3688 = vmul.f32 %v3498, %v3066
  %v3689 = vmul.f32 %v3513, %v3067
  %v3690 = vmul.f32 %v3528, %v3068
  %v3691 = vmul.f32 %v3543, %v3069
  %v3692 = vmul.f32 %v3558, %v3070
  %v3693 = vmul.f32 %v3573, %v3071
  %v3694 = vmul.f32 %v3588, %v3072
  %v3695 = vmul.f32 %v3603, %v3073
  %v3696 = vmul.f32 %v3618, %v3074
  %v3697 = vmul.f32 %v3633, %v3075
  %v3698 = vmul.f32 %v3648, %v3076
  %v3699 = vmul.f32 %v3663, %v3077
  %3718 = vrot.lane.b32.xlu0 %v3664, 32
  %v3719 = vpop.permute.xlu0 %3718
  %3720 = vrot.lane.b32.xlu0 %v3665, 32
  %v3721 = vpop.permute.xlu0 %3720
  %3722 = vrot.lane.b32.xlu0 %v3666, 32
  %v3723 = vpop.permute.xlu0 %3722
  %3724 = vrot.lane.b32.xlu0 %v3667, 32
  %v3725 = vpop.permute.xlu0 %3724
  %3726 = vrot.lane.b32.xlu0 %v3668, 32
  %v3727 = vpop.permute.xlu0 %3726
  %3728 = vrot.lane.b32.xlu0 %v3669, 32
  %v3729 = vpop.permute.xlu0 %3728
  %3730 = vrot.lane.b32.xlu0 %v3670, 32
  %v3731 = vpop.permute.xlu0 %3730
  %3732 = vrot.lane.b32.xlu0 %v3671, 32
  %v3733 = vpop.permute.xlu0 %3732
  %3734 = vrot.lane.b32.xlu0 %v3672, 32
  %v3735 = vpop.permute.xlu0 %3734
  %3736 = vrot.lane.b32.xlu0 %v3673, 32
  %v3737 = vpop.permute.xlu0 %3736
  %3738 = vrot.lane.b32.xlu0 %v3674, 32
  %v3739 = vpop.permute.xlu0 %3738
  %3740 = vrot.lane.b32.xlu0 %v3675, 32
  %v3741 = vpop.permute.xlu0 %3740
  %3742 = vrot.lane.b32.xlu0 %v3676, 32
  %v3743 = vpop.permute.xlu0 %3742
  %3744 = vrot.lane.b32.xlu0 %v3677, 32
  %v3745 = vpop.permute.xlu0 %3744
  %3746 = vrot.lane.b32.xlu0 %v3678, 32
  %v3747 = vpop.permute.xlu0 %3746
  %3748 = vrot.lane.b32.xlu0 %v3679, 32
  %v3749 = vpop.permute.xlu0 %3748
  %3750 = vrot.lane.b32.xlu0 %v3680, 32
  %v3751 = vpop.permute.xlu0 %3750
  %3752 = vrot.lane.b32.xlu0 %v3681, 32
  %v3753 = vpop.permute.xlu0 %3752
  %v3772 = vmul.f32 %v3408, %v3719
  %v3773 = vmul.f32 %v3423, %v3721
  %v3774 = vmul.f32 %v3438, %v3723
  %v3775 = vmul.f32 %v3453, %v3725
  %v3776 = vmul.f32 %v3468, %v3727
  %v3777 = vmul.f32 %v3483, %v3729
  %v3778 = vmul.f32 %v3498, %v3731
  %v3779 = vmul.f32 %v3513, %v3733
  %v3780 = vmul.f32 %v3528, %v3735
  %v3781 = vmul.f32 %v3543, %v3737
  %v3782 = vmul.f32 %v3558, %v3739
  %v3783 = vmul.f32 %v3573, %v3741
  %v3784 = vmul.f32 %v3588, %v3743
  %v3785 = vmul.f32 %v3603, %v3745
  %v3786 = vmul.f32 %v3618, %v3747
  %v3787 = vmul.f32 %v3633, %v3749
  %v3788 = vmul.f32 %v3648, %v3751
  %v3789 = vmul.f32 %v3663, %v3753
  %3808 = vrot.lane.b32.xlu0 %v3772, 32
  %v3809 = vpop.permute.xlu0 %3808
  %3810 = vrot.lane.b32.xlu0 %v3773, 32
  %v3811 = vpop.permute.xlu0 %3810
  %3812 = vrot.lane.b32.xlu0 %v3774, 32
  %v3813 = vpop.permute.xlu0 %3812
  %3814 = vrot.lane.b32.xlu0 %v3775, 32
  %v3815 = vpop.permute.xlu0 %3814
  %3816 = vrot.lane.b32.xlu0 %v3776, 32
  %v3817 = vpop.permute.xlu0 %3816
  %3818 = vrot.lane.b32.xlu0 %v3777, 32
  %v3819 = vpop.permute.xlu0 %3818
  %3820 = vrot.lane.b32.xlu0 %v3778, 32
  %v3821 = vpop.permute.xlu0 %3820
  %3822 = vrot.lane.b32.xlu0 %v3779, 32
  %v3823 = vpop.permute.xlu0 %3822
  %3824 = vrot.lane.b32.xlu0 %v3780, 32
  %v3825 = vpop.permute.xlu0 %3824
  %3826 = vrot.lane.b32.xlu0 %v3781, 32
  %v3827 = vpop.permute.xlu0 %3826
  %3828 = vrot.lane.b32.xlu0 %v3782, 32
  %v3829 = vpop.permute.xlu0 %3828
  %3830 = vrot.lane.b32.xlu0 %v3783, 32
  %v3831 = vpop.permute.xlu0 %3830
  %3832 = vrot.lane.b32.xlu0 %v3784, 32
  %v3833 = vpop.permute.xlu0 %3832
  %3834 = vrot.lane.b32.xlu0 %v3785, 32
  %v3835 = vpop.permute.xlu0 %3834
  %3836 = vrot.lane.b32.xlu0 %v3786, 32
  %v3837 = vpop.permute.xlu0 %3836
  %3838 = vrot.lane.b32.xlu0 %v3787, 32
  %v3839 = vpop.permute.xlu0 %3838
  %3840 = vrot.lane.b32.xlu0 %v3788, 32
  %v3841 = vpop.permute.xlu0 %3840
  %3842 = vrot.lane.b32.xlu0 %v3789, 32
  %v3843 = vpop.permute.xlu0 %3842
  %v3862 = vadd.f32 %v3682, %v3809
  %v3863 = vadd.f32 %v3683, %v3811
  %v3864 = vadd.f32 %v3684, %v3813
  %v3865 = vadd.f32 %v3685, %v3815
  %v3866 = vadd.f32 %v3686, %v3817
  %v3867 = vadd.f32 %v3687, %v3819
  %v3868 = vadd.f32 %v3688, %v3821
  %v3869 = vadd.f32 %v3689, %v3823
  %v3870 = vadd.f32 %v3690, %v3825
  %v3871 = vadd.f32 %v3691, %v3827
  %v3872 = vadd.f32 %v3692, %v3829
  %v3873 = vadd.f32 %v3693, %v3831
  %v3874 = vadd.f32 %v3694, %v3833
  %v3875 = vadd.f32 %v3695, %v3835
  %v3876 = vadd.f32 %v3696, %v3837
  %v3877 = vadd.f32 %v3697, %v3839
  %v3878 = vadd.f32 %v3698, %v3841
  %v3879 = vadd.f32 %v3699, %v3843
  %v3880 = vtanh.pop %v3862
  %v3881 = vtanh.pop %v3863
  %v3882 = vtanh.pop %v3864
  %v3883 = vtanh.pop %v3865
  %v3884 = vtanh.pop %v3866
  %v3885 = vtanh.pop %v3867
  %v3886 = vtanh.pop %v3868
  %v3887 = vtanh.pop %v3869
  %v3888 = vtanh.pop %v3870
  %v3889 = vtanh.pop %v3871
  %v3890 = vtanh.pop %v3872
  %v3891 = vtanh.pop %v3873
  %v3892 = vtanh.pop %v3874
  %v3893 = vtanh.pop %v3875
  %v3894 = vtanh.pop %v3876
  %v3895 = vtanh.pop %v3877
  %v3896 = vtanh.pop %v3878
  %v3897 = vtanh.pop %v3879
  %3916 = vrot.lane.b32.xlu0 %v3880, 32
  %v3917 = vpop.permute.xlu0 %3916
  %3918 = vrot.lane.b32.xlu0 %v3881, 32
  %v3919 = vpop.permute.xlu0 %3918
  %3920 = vrot.lane.b32.xlu0 %v3882, 32
  %v3921 = vpop.permute.xlu0 %3920
  %3922 = vrot.lane.b32.xlu0 %v3883, 32
  %v3923 = vpop.permute.xlu0 %3922
  %3924 = vrot.lane.b32.xlu0 %v3884, 32
  %v3925 = vpop.permute.xlu0 %3924
  %3926 = vrot.lane.b32.xlu0 %v3885, 32
  %v3927 = vpop.permute.xlu0 %3926
  %3928 = vrot.lane.b32.xlu0 %v3886, 32
  %v3929 = vpop.permute.xlu0 %3928
  %3930 = vrot.lane.b32.xlu0 %v3887, 32
  %v3931 = vpop.permute.xlu0 %3930
  %3932 = vrot.lane.b32.xlu0 %v3888, 32
  %v3933 = vpop.permute.xlu0 %3932
  %3934 = vrot.lane.b32.xlu0 %v3889, 32
  %v3935 = vpop.permute.xlu0 %3934
  %3936 = vrot.lane.b32.xlu0 %v3890, 32
  %v3937 = vpop.permute.xlu0 %3936
  %3938 = vrot.lane.b32.xlu0 %v3891, 32
  %v3939 = vpop.permute.xlu0 %3938
  %3940 = vrot.lane.b32.xlu0 %v3892, 32
  %v3941 = vpop.permute.xlu0 %3940
  %3942 = vrot.lane.b32.xlu0 %v3893, 32
  %v3943 = vpop.permute.xlu0 %3942
  %3944 = vrot.lane.b32.xlu0 %v3894, 32
  %v3945 = vpop.permute.xlu0 %3944
  %3946 = vrot.lane.b32.xlu0 %v3895, 32
  %v3947 = vpop.permute.xlu0 %3946
  %3948 = vrot.lane.b32.xlu0 %v3896, 32
  %v3949 = vpop.permute.xlu0 %3948
  %3950 = vrot.lane.b32.xlu0 %v3897, 32
  %v3951 = vpop.permute.xlu0 %3950
  %v3970 = vmul.f32 %v3408, %v3917
  %v3971 = vmul.f32 %v3423, %v3919
  %v3972 = vmul.f32 %v3438, %v3921
  %v3973 = vmul.f32 %v3453, %v3923
  %v3974 = vmul.f32 %v3468, %v3925
  %v3975 = vmul.f32 %v3483, %v3927
  %v3976 = vmul.f32 %v3498, %v3929
  %v3977 = vmul.f32 %v3513, %v3931
  %v3978 = vmul.f32 %v3528, %v3933
  %v3979 = vmul.f32 %v3543, %v3935
  %v3980 = vmul.f32 %v3558, %v3937
  %v3981 = vmul.f32 %v3573, %v3939
  %v3982 = vmul.f32 %v3588, %v3941
  %v3983 = vmul.f32 %v3603, %v3943
  %v3984 = vmul.f32 %v3618, %v3945
  %v3985 = vmul.f32 %v3633, %v3947
  %v3986 = vmul.f32 %v3648, %v3949
  %v3987 = vmul.f32 %v3663, %v3951
  %v3988 = vpack.c.bf16 %v3971, %v3970
  %v3989 = vpack.c.bf16 %v3973, %v3972
  %v3990 = vpack.c.bf16 %v3975, %v3974
  %v3991 = vpack.c.bf16 %v3977, %v3976
  %v3992 = vpack.c.bf16 %v3979, %v3978
  %v3993 = vpack.c.bf16 %v3981, %v3980
  %v3994 = vpack.c.bf16 %v3983, %v3982
  %v3995 = vpack.c.bf16 %v3985, %v3984
  %v3996 = vpack.c.bf16 %v3987, %v3986
  %s3997 = scalar_lea.vmem %s0, 720
  %v3998 = vld [vmem:[%s3997] sm:$0xff]
  %v3999 = vld [vmem:[%s3997 + $0x8] sm:$0xff]
  %v4000 = vld [vmem:[%s3997 + $0x10] sm:$0xff]
  %v4001 = vld [vmem:[%s3997 + $0x18] sm:$0xff]
  %v4002 = vld [vmem:[%s3997 + $0x20] sm:$0xff]
  %v4003 = vld [vmem:[%s3997 + $0x28] sm:$0xff]
  %v4004 = vld [vmem:[%s3997 + $0x30] sm:$0xff]
  %v4005 = vld [vmem:[%s3997 + $0x38] sm:$0xff]
  %v4006 = vld [vmem:[%s3997 + $0x40] sm:$0xff]
  %v4007 = vld [vmem:[%s3997 + $0x48] sm:$0xff]
  %v4008 = vld [vmem:[%s3997 + $0x50] sm:$0xff]
  %v4009 = vld [vmem:[%s3997 + $0x58] sm:$0xff]
  %v4010 = vld [vmem:[%s3997 + $0x60] sm:$0xff]
  %v4011 = vld [vmem:[%s3997 + $0x68] sm:$0xff]
  %v4012 = vld [vmem:[%s3997 + $0x70] sm:$0xff]
  %v4013 = vld [vmem:[%s3997 + $0x78] sm:$0xff]
  %v4014 = vld [vmem:[%s3997 + $0x80] sm:$0xff]
  %v4015 = vld [vmem:[%s3997 + $0x88] sm:$0xff]
  %4025 = vrot.lane.b32.xlu0 %v3988, 64
  %v4026 = vpop.permute.xlu0 %4025
  %4027 = vrot.lane.b32.xlu0 %v3989, 64
  %v4028 = vpop.permute.xlu0 %4027
  %4029 = vrot.lane.b32.xlu0 %v3990, 64
  %v4030 = vpop.permute.xlu0 %4029
  %4031 = vrot.lane.b32.xlu0 %v3991, 64
  %v4032 = vpop.permute.xlu0 %4031
  %4033 = vrot.lane.b32.xlu0 %v3992, 64
  %v4034 = vpop.permute.xlu0 %4033
  %4035 = vrot.lane.b32.xlu0 %v3993, 64
  %v4036 = vpop.permute.xlu0 %4035
  %4037 = vrot.lane.b32.xlu0 %v3994, 64
  %v4038 = vpop.permute.xlu0 %4037
  %4039 = vrot.lane.b32.xlu0 %v3995, 64
  %v4040 = vpop.permute.xlu0 %4039
  %4041 = vrot.lane.b32.xlu0 %v3996, 64
  %v4042 = vpop.permute.xlu0 %4041
  %v4044 = vsel %vm56, %v4026, 0
  %v4047 = vsel %vm56, %v4028, 0
  %v4050 = vsel %vm56, %v4030, 0
  %v4053 = vsel %vm56, %v4032, 0
  %v4056 = vsel %vm56, %v4034, 0
  %v4059 = vsel %vm56, %v4036, 0
  %v4062 = vsel %vm56, %v4038, 0
  %v4065 = vsel %vm56, %v4040, 0
  %v4068 = vsel %vm56, %v4042, 0
  %4070 = vmatpush.bf16.msra.mxu0 0
  %4071 = vmatpush.bf16.msra.mxu0 0
  %4072 = vmatpush.bf16.msra.mxu0 0
  %4073 = vmatpush.bf16.msra.mxu0 0
  %4074 = vmatpush.bf16.msra.mxu0 0
  %4075 = vmatpush.bf16.msra.mxu0 0
  %4076 = vmatpush.bf16.msra.mxu0 %v53
  %4077 = vmatpush.bf16.msra.mxu0 %v52
  %4078 = vmatmul.bf16.gmra.mxu0 %v4044
  %v4079 = vpop.f32.mrf.mxu0
  %v4080 = vadd.f32 %v3998, %v4079
  %v4081 = vpop.f32.mrf.mxu0
  %v4082 = vadd.f32 %v3999, %v4081
  %4083 = vmatmul.bf16.gmra.mxu0 %v4047
  %v4084 = vpop.f32.mrf.mxu0
  %v4085 = vadd.f32 %v4000, %v4084
  %v4086 = vpop.f32.mrf.mxu0
  %v4087 = vadd.f32 %v4001, %v4086
  %4088 = vmatmul.bf16.gmra.mxu0 %v4050
  %v4089 = vpop.f32.mrf.mxu0
  %v4090 = vadd.f32 %v4002, %v4089
  %v4091 = vpop.f32.mrf.mxu0
  %v4092 = vadd.f32 %v4003, %v4091
  %4093 = vmatmul.bf16.gmra.mxu0 %v4053
  %v4094 = vpop.f32.mrf.mxu0
  %v4095 = vadd.f32 %v4004, %v4094
  %v4096 = vpop.f32.mrf.mxu0
  %v4097 = vadd.f32 %v4005, %v4096
  %4098 = vmatmul.bf16.gmra.mxu0 %v4056
  %v4099 = vpop.f32.mrf.mxu0
  %v4100 = vadd.f32 %v4006, %v4099
  %v4101 = vpop.f32.mrf.mxu0
  %v4102 = vadd.f32 %v4007, %v4101
  %4103 = vmatmul.bf16.gmra.mxu0 %v4059
  %v4104 = vpop.f32.mrf.mxu0
  %v4105 = vadd.f32 %v4008, %v4104
  %v4106 = vpop.f32.mrf.mxu0
  %v4107 = vadd.f32 %v4009, %v4106
  %4108 = vmatmul.bf16.gmra.mxu0 %v4062
  %v4109 = vpop.f32.mrf.mxu0
  %v4110 = vadd.f32 %v4010, %v4109
  %v4111 = vpop.f32.mrf.mxu0
  %v4112 = vadd.f32 %v4011, %v4111
  %4113 = vmatmul.bf16.gmra.mxu0 %v4065
  %v4114 = vpop.f32.mrf.mxu0
  %v4115 = vadd.f32 %v4012, %v4114
  %v4116 = vpop.f32.mrf.mxu0
  %v4117 = vadd.f32 %v4013, %v4116
  %4118 = vmatmul.bf16.gmra.mxu0 %v4068
  %v4119 = vpop.f32.mrf.mxu0
  %v4120 = vadd.f32 %v4014, %v4119
  %v4121 = vpop.f32.mrf.mxu0
  %v4122 = vadd.f32 %v4015, %v4121
  %4123 = vdwg.mxu0
  %v4124 = vxor.u32 %v4080, 2147483648
  %v4125 = vxor.u32 %v4082, 2147483648
  %v4126 = vxor.u32 %v4085, 2147483648
  %v4127 = vxor.u32 %v4087, 2147483648
  %v4128 = vxor.u32 %v4090, 2147483648
  %v4129 = vxor.u32 %v4092, 2147483648
  %v4130 = vxor.u32 %v4095, 2147483648
  %v4131 = vxor.u32 %v4097, 2147483648
  %v4132 = vxor.u32 %v4100, 2147483648
  %v4133 = vxor.u32 %v4102, 2147483648
  %v4134 = vxor.u32 %v4105, 2147483648
  %v4135 = vxor.u32 %v4107, 2147483648
  %v4136 = vxor.u32 %v4110, 2147483648
  %v4137 = vxor.u32 %v4112, 2147483648
  %v4138 = vxor.u32 %v4115, 2147483648
  %v4139 = vxor.u32 %v4117, 2147483648
  %v4140 = vxor.u32 %v4120, 2147483648
  %v4141 = vxor.u32 %v4122, 2147483648
  %v4142 = vmul.f32 %v4124, 1.442695
  %v4143 = vpow.pop %v4142
  %v4144 = vmul.f32 %v4125, 1.442695
  %v4145 = vpow.pop %v4144
  %v4146 = vmul.f32 %v4126, 1.442695
  %v4147 = vpow.pop %v4146
  %v4148 = vmul.f32 %v4127, 1.442695
  %v4149 = vpow.pop %v4148
  %v4150 = vmul.f32 %v4128, 1.442695
  %v4151 = vpow.pop %v4150
  %v4152 = vmul.f32 %v4129, 1.442695
  %v4153 = vpow.pop %v4152
  %v4154 = vmul.f32 %v4130, 1.442695
  %v4155 = vpow.pop %v4154
  %v4156 = vmul.f32 %v4131, 1.442695
  %v4157 = vpow.pop %v4156
  %v4158 = vmul.f32 %v4132, 1.442695
  %v4159 = vpow.pop %v4158
  %v4160 = vmul.f32 %v4133, 1.442695
  %v4161 = vpow.pop %v4160
  %v4162 = vmul.f32 %v4134, 1.442695
  %v4163 = vpow.pop %v4162
  %v4164 = vmul.f32 %v4135, 1.442695
  %v4165 = vpow.pop %v4164
  %v4166 = vmul.f32 %v4136, 1.442695
  %v4167 = vpow.pop %v4166
  %v4168 = vmul.f32 %v4137, 1.442695
  %v4169 = vpow.pop %v4168
  %v4170 = vmul.f32 %v4138, 1.442695
  %v4171 = vpow.pop %v4170
  %v4172 = vmul.f32 %v4139, 1.442695
  %v4173 = vpow.pop %v4172
  %v4174 = vmul.f32 %v4140, 1.442695
  %v4175 = vpow.pop %v4174
  %v4176 = vmul.f32 %v4141, 1.442695
  %v4177 = vpow.pop %v4176
  %v4178 = vadd.f32 %v4143, 1.0
  %v4179 = vadd.f32 %v4145, 1.0
  %v4180 = vadd.f32 %v4147, 1.0
  %v4181 = vadd.f32 %v4149, 1.0
  %v4182 = vadd.f32 %v4151, 1.0
  %v4183 = vadd.f32 %v4153, 1.0
  %v4184 = vadd.f32 %v4155, 1.0
  %v4185 = vadd.f32 %v4157, 1.0
  %v4186 = vadd.f32 %v4159, 1.0
  %v4187 = vadd.f32 %v4161, 1.0
  %v4188 = vadd.f32 %v4163, 1.0
  %v4189 = vadd.f32 %v4165, 1.0
  %v4190 = vadd.f32 %v4167, 1.0
  %v4191 = vadd.f32 %v4169, 1.0
  %v4192 = vadd.f32 %v4171, 1.0
  %v4193 = vadd.f32 %v4173, 1.0
  %v4194 = vadd.f32 %v4175, 1.0
  %v4195 = vadd.f32 %v4177, 1.0
  %v4196 = vrcp.pop %v4178
  %v4197 = vmul.f32 %v4178, %v4196
  %v4198 = vsub.f32 1.0, %v4197
  %v4199 = vmul.f32 %v4196, %v4198
  %v4200 = vadd.f32 %v4196, %v4199
  %vm4201 = vweird.f32 %v4178
  %vm4202 = vweird.f32 %v4196
  %vm4203 = vmor %vm4201, %vm4202
  %v4204 = vsel %vm4203, %v4196, %v4200
  %v4205 = vand.u32 2147483647, %v4178
  %vm4206 = vcmp.eq.f32.partialorder %v4205, 8.507059e+37
  %v4207 = vand.u32 %v4178, 2147483648
  %v4208 = vor.u32 1.1754944e-38, %v4207
  %v4209 = vsel %vm4206, %v4208, %v4204
  %v4210 = vmul.f32 1.0, %v4209
  %v4211 = vrcp.pop %v4179
  %v4212 = vmul.f32 %v4179, %v4211
  %v4213 = vsub.f32 1.0, %v4212
  %v4214 = vmul.f32 %v4211, %v4213
  %v4215 = vadd.f32 %v4211, %v4214
  %vm4216 = vweird.f32 %v4179
  %vm4217 = vweird.f32 %v4211
  %vm4218 = vmor %vm4216, %vm4217
  %v4219 = vsel %vm4218, %v4211, %v4215
  %v4220 = vand.u32 2147483647, %v4179
  %vm4221 = vcmp.eq.f32.partialorder %v4220, 8.507059e+37
  %v4222 = vand.u32 %v4179, 2147483648
  %v4223 = vor.u32 1.1754944e-38, %v4222
  %v4224 = vsel %vm4221, %v4223, %v4219
  %v4225 = vmul.f32 1.0, %v4224
  %v4226 = vrcp.pop %v4180
  %v4227 = vmul.f32 %v4180, %v4226
  %v4228 = vsub.f32 1.0, %v4227
  %v4229 = vmul.f32 %v4226, %v4228
  %v4230 = vadd.f32 %v4226, %v4229
  %vm4231 = vweird.f32 %v4180
  %vm4232 = vweird.f32 %v4226
  %vm4233 = vmor %vm4231, %vm4232
  %v4234 = vsel %vm4233, %v4226, %v4230
  %v4235 = vand.u32 2147483647, %v4180
  %vm4236 = vcmp.eq.f32.partialorder %v4235, 8.507059e+37
  %v4237 = vand.u32 %v4180, 2147483648
  %v4238 = vor.u32 1.1754944e-38, %v4237
  %v4239 = vsel %vm4236, %v4238, %v4234
  %v4240 = vmul.f32 1.0, %v4239
  %v4241 = vrcp.pop %v4181
  %v4242 = vmul.f32 %v4181, %v4241
  %v4243 = vsub.f32 1.0, %v4242
  %v4244 = vmul.f32 %v4241, %v4243
  %v4245 = vadd.f32 %v4241, %v4244
  %vm4246 = vweird.f32 %v4181
  %vm4247 = vweird.f32 %v4241
  %vm4248 = vmor %vm4246, %vm4247
  %v4249 = vsel %vm4248, %v4241, %v4245
  %v4250 = vand.u32 2147483647, %v4181
  %vm4251 = vcmp.eq.f32.partialorder %v4250, 8.507059e+37
  %v4252 = vand.u32 %v4181, 2147483648
  %v4253 = vor.u32 1.1754944e-38, %v4252
  %v4254 = vsel %vm4251, %v4253, %v4249
  %v4255 = vmul.f32 1.0, %v4254
  %v4256 = vrcp.pop %v4182
  %v4257 = vmul.f32 %v4182, %v4256
  %v4258 = vsub.f32 1.0, %v4257
  %v4259 = vmul.f32 %v4256, %v4258
  %v4260 = vadd.f32 %v4256, %v4259
  %vm4261 = vweird.f32 %v4182
  %vm4262 = vweird.f32 %v4256
  %vm4263 = vmor %vm4261, %vm4262
  %v4264 = vsel %vm4263, %v4256, %v4260
  %v4265 = vand.u32 2147483647, %v4182
  %vm4266 = vcmp.eq.f32.partialorder %v4265, 8.507059e+37
  %v4267 = vand.u32 %v4182, 2147483648
  %v4268 = vor.u32 1.1754944e-38, %v4267
  %v4269 = vsel %vm4266, %v4268, %v4264
  %v4270 = vmul.f32 1.0, %v4269
  %v4271 = vrcp.pop %v4183
  %v4272 = vmul.f32 %v4183, %v4271
  %v4273 = vsub.f32 1.0, %v4272
  %v4274 = vmul.f32 %v4271, %v4273
  %v4275 = vadd.f32 %v4271, %v4274
  %vm4276 = vweird.f32 %v4183
  %vm4277 = vweird.f32 %v4271
  %vm4278 = vmor %vm4276, %vm4277
  %v4279 = vsel %vm4278, %v4271, %v4275
  %v4280 = vand.u32 2147483647, %v4183
  %vm4281 = vcmp.eq.f32.partialorder %v4280, 8.507059e+37
  %v4282 = vand.u32 %v4183, 2147483648
  %v4283 = vor.u32 1.1754944e-38, %v4282
  %v4284 = vsel %vm4281, %v4283, %v4279
  %v4285 = vmul.f32 1.0, %v4284
  %v4286 = vrcp.pop %v4184
  %v4287 = vmul.f32 %v4184, %v4286
  %v4288 = vsub.f32 1.0, %v4287
  %v4289 = vmul.f32 %v4286, %v4288
  %v4290 = vadd.f32 %v4286, %v4289
  %vm4291 = vweird.f32 %v4184
  %vm4292 = vweird.f32 %v4286
  %vm4293 = vmor %vm4291, %vm4292
  %v4294 = vsel %vm4293, %v4286, %v4290
  %v4295 = vand.u32 2147483647, %v4184
  %vm4296 = vcmp.eq.f32.partialorder %v4295, 8.507059e+37
  %v4297 = vand.u32 %v4184, 2147483648
  %v4298 = vor.u32 1.1754944e-38, %v4297
  %v4299 = vsel %vm4296, %v4298, %v4294
  %v4300 = vmul.f32 1.0, %v4299
  %v4301 = vrcp.pop %v4185
  %v4302 = vmul.f32 %v4185, %v4301
  %v4303 = vsub.f32 1.0, %v4302
  %v4304 = vmul.f32 %v4301, %v4303
  %v4305 = vadd.f32 %v4301, %v4304
  %vm4306 = vweird.f32 %v4185
  %vm4307 = vweird.f32 %v4301
  %vm4308 = vmor %vm4306, %vm4307
  %v4309 = vsel %vm4308, %v4301, %v4305
  %v4310 = vand.u32 2147483647, %v4185
  %vm4311 = vcmp.eq.f32.partialorder %v4310, 8.507059e+37
  %v4312 = vand.u32 %v4185, 2147483648
  %v4313 = vor.u32 1.1754944e-38, %v4312
  %v4314 = vsel %vm4311, %v4313, %v4309
  %v4315 = vmul.f32 1.0, %v4314
  %v4316 = vrcp.pop %v4186
  %v4317 = vmul.f32 %v4186, %v4316
  %v4318 = vsub.f32 1.0, %v4317
  %v4319 = vmul.f32 %v4316, %v4318
  %v4320 = vadd.f32 %v4316, %v4319
  %vm4321 = vweird.f32 %v4186
  %vm4322 = vweird.f32 %v4316
  %vm4323 = vmor %vm4321, %vm4322
  %v4324 = vsel %vm4323, %v4316, %v4320
  %v4325 = vand.u32 2147483647, %v4186
  %vm4326 = vcmp.eq.f32.partialorder %v4325, 8.507059e+37
  %v4327 = vand.u32 %v4186, 2147483648
  %v4328 = vor.u32 1.1754944e-38, %v4327
  %v4329 = vsel %vm4326, %v4328, %v4324
  %v4330 = vmul.f32 1.0, %v4329
  %v4331 = vrcp.pop %v4187
  %v4332 = vmul.f32 %v4187, %v4331
  %v4333 = vsub.f32 1.0, %v4332
  %v4334 = vmul.f32 %v4331, %v4333
  %v4335 = vadd.f32 %v4331, %v4334
  %vm4336 = vweird.f32 %v4187
  %vm4337 = vweird.f32 %v4331
  %vm4338 = vmor %vm4336, %vm4337
  %v4339 = vsel %vm4338, %v4331, %v4335
  %v4340 = vand.u32 2147483647, %v4187
  %vm4341 = vcmp.eq.f32.partialorder %v4340, 8.507059e+37
  %v4342 = vand.u32 %v4187, 2147483648
  %v4343 = vor.u32 1.1754944e-38, %v4342
  %v4344 = vsel %vm4341, %v4343, %v4339
  %v4345 = vmul.f32 1.0, %v4344
  %v4346 = vrcp.pop %v4188
  %v4347 = vmul.f32 %v4188, %v4346
  %v4348 = vsub.f32 1.0, %v4347
  %v4349 = vmul.f32 %v4346, %v4348
  %v4350 = vadd.f32 %v4346, %v4349
  %vm4351 = vweird.f32 %v4188
  %vm4352 = vweird.f32 %v4346
  %vm4353 = vmor %vm4351, %vm4352
  %v4354 = vsel %vm4353, %v4346, %v4350
  %v4355 = vand.u32 2147483647, %v4188
  %vm4356 = vcmp.eq.f32.partialorder %v4355, 8.507059e+37
  %v4357 = vand.u32 %v4188, 2147483648
  %v4358 = vor.u32 1.1754944e-38, %v4357
  %v4359 = vsel %vm4356, %v4358, %v4354
  %v4360 = vmul.f32 1.0, %v4359
  %v4361 = vrcp.pop %v4189
  %v4362 = vmul.f32 %v4189, %v4361
  %v4363 = vsub.f32 1.0, %v4362
  %v4364 = vmul.f32 %v4361, %v4363
  %v4365 = vadd.f32 %v4361, %v4364
  %vm4366 = vweird.f32 %v4189
  %vm4367 = vweird.f32 %v4361
  %vm4368 = vmor %vm4366, %vm4367
  %v4369 = vsel %vm4368, %v4361, %v4365
  %v4370 = vand.u32 2147483647, %v4189
  %vm4371 = vcmp.eq.f32.partialorder %v4370, 8.507059e+37
  %v4372 = vand.u32 %v4189, 2147483648
  %v4373 = vor.u32 1.1754944e-38, %v4372
  %v4374 = vsel %vm4371, %v4373, %v4369
  %v4375 = vmul.f32 1.0, %v4374
  %v4376 = vrcp.pop %v4190
  %v4377 = vmul.f32 %v4190, %v4376
  %v4378 = vsub.f32 1.0, %v4377
  %v4379 = vmul.f32 %v4376, %v4378
  %v4380 = vadd.f32 %v4376, %v4379
  %vm4381 = vweird.f32 %v4190
  %vm4382 = vweird.f32 %v4376
  %vm4383 = vmor %vm4381, %vm4382
  %v4384 = vsel %vm4383, %v4376, %v4380
  %v4385 = vand.u32 2147483647, %v4190
  %vm4386 = vcmp.eq.f32.partialorder %v4385, 8.507059e+37
  %v4387 = vand.u32 %v4190, 2147483648
  %v4388 = vor.u32 1.1754944e-38, %v4387
  %v4389 = vsel %vm4386, %v4388, %v4384
  %v4390 = vmul.f32 1.0, %v4389
  %v4391 = vrcp.pop %v4191
  %v4392 = vmul.f32 %v4191, %v4391
  %v4393 = vsub.f32 1.0, %v4392
  %v4394 = vmul.f32 %v4391, %v4393
  %v4395 = vadd.f32 %v4391, %v4394
  %vm4396 = vweird.f32 %v4191
  %vm4397 = vweird.f32 %v4391
  %vm4398 = vmor %vm4396, %vm4397
  %v4399 = vsel %vm4398, %v4391, %v4395
  %v4400 = vand.u32 2147483647, %v4191
  %vm4401 = vcmp.eq.f32.partialorder %v4400, 8.507059e+37
  %v4402 = vand.u32 %v4191, 2147483648
  %v4403 = vor.u32 1.1754944e-38, %v4402
  %v4404 = vsel %vm4401, %v4403, %v4399
  %v4405 = vmul.f32 1.0, %v4404
  %v4406 = vrcp.pop %v4192
  %v4407 = vmul.f32 %v4192, %v4406
  %v4408 = vsub.f32 1.0, %v4407
  %v4409 = vmul.f32 %v4406, %v4408
  %v4410 = vadd.f32 %v4406, %v4409
  %vm4411 = vweird.f32 %v4192
  %vm4412 = vweird.f32 %v4406
  %vm4413 = vmor %vm4411, %vm4412
  %v4414 = vsel %vm4413, %v4406, %v4410
  %v4415 = vand.u32 2147483647, %v4192
  %vm4416 = vcmp.eq.f32.partialorder %v4415, 8.507059e+37
  %v4417 = vand.u32 %v4192, 2147483648
  %v4418 = vor.u32 1.1754944e-38, %v4417
  %v4419 = vsel %vm4416, %v4418, %v4414
  %v4420 = vmul.f32 1.0, %v4419
  %v4421 = vrcp.pop %v4193
  %v4422 = vmul.f32 %v4193, %v4421
  %v4423 = vsub.f32 1.0, %v4422
  %v4424 = vmul.f32 %v4421, %v4423
  %v4425 = vadd.f32 %v4421, %v4424
  %vm4426 = vweird.f32 %v4193
  %vm4427 = vweird.f32 %v4421
  %vm4428 = vmor %vm4426, %vm4427
  %v4429 = vsel %vm4428, %v4421, %v4425
  %v4430 = vand.u32 2147483647, %v4193
  %vm4431 = vcmp.eq.f32.partialorder %v4430, 8.507059e+37
  %v4432 = vand.u32 %v4193, 2147483648
  %v4433 = vor.u32 1.1754944e-38, %v4432
  %v4434 = vsel %vm4431, %v4433, %v4429
  %v4435 = vmul.f32 1.0, %v4434
  %v4436 = vrcp.pop %v4194
  %v4437 = vmul.f32 %v4194, %v4436
  %v4438 = vsub.f32 1.0, %v4437
  %v4439 = vmul.f32 %v4436, %v4438
  %v4440 = vadd.f32 %v4436, %v4439
  %vm4441 = vweird.f32 %v4194
  %vm4442 = vweird.f32 %v4436
  %vm4443 = vmor %vm4441, %vm4442
  %v4444 = vsel %vm4443, %v4436, %v4440
  %v4445 = vand.u32 2147483647, %v4194
  %vm4446 = vcmp.eq.f32.partialorder %v4445, 8.507059e+37
  %v4447 = vand.u32 %v4194, 2147483648
  %v4448 = vor.u32 1.1754944e-38, %v4447
  %v4449 = vsel %vm4446, %v4448, %v4444
  %v4450 = vmul.f32 1.0, %v4449
  %v4451 = vrcp.pop %v4195
  %v4452 = vmul.f32 %v4195, %v4451
  %v4453 = vsub.f32 1.0, %v4452
  %v4454 = vmul.f32 %v4451, %v4453
  %v4455 = vadd.f32 %v4451, %v4454
  %vm4456 = vweird.f32 %v4195
  %vm4457 = vweird.f32 %v4451
  %vm4458 = vmor %vm4456, %vm4457
  %v4459 = vsel %vm4458, %v4451, %v4455
  %v4460 = vand.u32 2147483647, %v4195
  %vm4461 = vcmp.eq.f32.partialorder %v4460, 8.507059e+37
  %v4462 = vand.u32 %v4195, 2147483648
  %v4463 = vor.u32 1.1754944e-38, %v4462
  %v4464 = vsel %vm4461, %v4463, %v4459
  %v4465 = vmul.f32 1.0, %v4464
  %v4466 = vtanh.pop %v4080
  %v4467 = vtanh.pop %v4082
  %v4468 = vtanh.pop %v4085
  %v4469 = vtanh.pop %v4087
  %v4470 = vtanh.pop %v4090
  %v4471 = vtanh.pop %v4092
  %v4472 = vtanh.pop %v4095
  %v4473 = vtanh.pop %v4097
  %v4474 = vtanh.pop %v4100
  %v4475 = vtanh.pop %v4102
  %v4476 = vtanh.pop %v4105
  %v4477 = vtanh.pop %v4107
  %v4478 = vtanh.pop %v4110
  %v4479 = vtanh.pop %v4112
  %v4480 = vtanh.pop %v4115
  %v4481 = vtanh.pop %v4117
  %v4482 = vtanh.pop %v4120
  %v4483 = vtanh.pop %v4122
  %v4484 = vmul.f32 %v4210, %v3862
  %v4485 = vmul.f32 %v4225, %v3863
  %v4486 = vmul.f32 %v4240, %v3864
  %v4487 = vmul.f32 %v4255, %v3865
  %v4488 = vmul.f32 %v4270, %v3866
  %v4489 = vmul.f32 %v4285, %v3867
  %v4490 = vmul.f32 %v4300, %v3868
  %v4491 = vmul.f32 %v4315, %v3869
  %v4492 = vmul.f32 %v4330, %v3870
  %v4493 = vmul.f32 %v4345, %v3871
  %v4494 = vmul.f32 %v4360, %v3872
  %v4495 = vmul.f32 %v4375, %v3873
  %v4496 = vmul.f32 %v4390, %v3874
  %v4497 = vmul.f32 %v4405, %v3875
  %v4498 = vmul.f32 %v4420, %v3876
  %v4499 = vmul.f32 %v4435, %v3877
  %v4500 = vmul.f32 %v4450, %v3878
  %v4501 = vmul.f32 %v4465, %v3879
  %4520 = vrot.lane.b32.xlu0 %v4466, 32
  %v4521 = vpop.permute.xlu0 %4520
  %4522 = vrot.lane.b32.xlu0 %v4467, 32
  %v4523 = vpop.permute.xlu0 %4522
  %4524 = vrot.lane.b32.xlu0 %v4468, 32
  %v4525 = vpop.permute.xlu0 %4524
  %4526 = vrot.lane.b32.xlu0 %v4469, 32
  %v4527 = vpop.permute.xlu0 %4526
  %4528 = vrot.lane.b32.xlu0 %v4470, 32
  %v4529 = vpop.permute.xlu0 %4528
  %4530 = vrot.lane.b32.xlu0 %v4471, 32
  %v4531 = vpop.permute.xlu0 %4530
  %4532 = vrot.lane.b32.xlu0 %v4472, 32
  %v4533 = vpop.permute.xlu0 %4532
  %4534 = vrot.lane.b32.xlu0 %v4473, 32
  %v4535 = vpop.permute.xlu0 %4534
  %4536 = vrot.lane.b32.xlu0 %v4474, 32
  %v4537 = vpop.permute.xlu0 %4536
  %4538 = vrot.lane.b32.xlu0 %v4475, 32
  %v4539 = vpop.permute.xlu0 %4538
  %4540 = vrot.lane.b32.xlu0 %v4476, 32
  %v4541 = vpop.permute.xlu0 %4540
  %4542 = vrot.lane.b32.xlu0 %v4477, 32
  %v4543 = vpop.permute.xlu0 %4542
  %4544 = vrot.lane.b32.xlu0 %v4478, 32
  %v4545 = vpop.permute.xlu0 %4544
  %4546 = vrot.lane.b32.xlu0 %v4479, 32
  %v4547 = vpop.permute.xlu0 %4546
  %4548 = vrot.lane.b32.xlu0 %v4480, 32
  %v4549 = vpop.permute.xlu0 %4548
  %4550 = vrot.lane.b32.xlu0 %v4481, 32
  %v4551 = vpop.permute.xlu0 %4550
  %4552 = vrot.lane.b32.xlu0 %v4482, 32
  %v4553 = vpop.permute.xlu0 %4552
  %4554 = vrot.lane.b32.xlu0 %v4483, 32
  %v4555 = vpop.permute.xlu0 %4554
  %v4574 = vmul.f32 %v4210, %v4521
  %v4575 = vmul.f32 %v4225, %v4523
  %v4576 = vmul.f32 %v4240, %v4525
  %v4577 = vmul.f32 %v4255, %v4527
  %v4578 = vmul.f32 %v4270, %v4529
  %v4579 = vmul.f32 %v4285, %v4531
  %v4580 = vmul.f32 %v4300, %v4533
  %v4581 = vmul.f32 %v4315, %v4535
  %v4582 = vmul.f32 %v4330, %v4537
  %v4583 = vmul.f32 %v4345, %v4539
  %v4584 = vmul.f32 %v4360, %v4541
  %v4585 = vmul.f32 %v4375, %v4543
  %v4586 = vmul.f32 %v4390, %v4545
  %v4587 = vmul.f32 %v4405, %v4547
  %v4588 = vmul.f32 %v4420, %v4549
  %v4589 = vmul.f32 %v4435, %v4551
  %v4590 = vmul.f32 %v4450, %v4553
  %v4591 = vmul.f32 %v4465, %v4555
  %4610 = vrot.lane.b32.xlu0 %v4574, 32
  %v4611 = vpop.permute.xlu0 %4610
  %4612 = vrot.lane.b32.xlu0 %v4575, 32
  %v4613 = vpop.permute.xlu0 %4612
  %4614 = vrot.lane.b32.xlu0 %v4576, 32
  %v4615 = vpop.permute.xlu0 %4614
  %4616 = vrot.lane.b32.xlu0 %v4577, 32
  %v4617 = vpop.permute.xlu0 %4616
  %4618 = vrot.lane.b32.xlu0 %v4578, 32
  %v4619 = vpop.permute.xlu0 %4618
  %4620 = vrot.lane.b32.xlu0 %v4579, 32
  %v4621 = vpop.permute.xlu0 %4620
  %4622 = vrot.lane.b32.xlu0 %v4580, 32
  %v4623 = vpop.permute.xlu0 %4622
  %4624 = vrot.lane.b32.xlu0 %v4581, 32
  %v4625 = vpop.permute.xlu0 %4624
  %4626 = vrot.lane.b32.xlu0 %v4582, 32
  %v4627 = vpop.permute.xlu0 %4626
  %4628 = vrot.lane.b32.xlu0 %v4583, 32
  %v4629 = vpop.permute.xlu0 %4628
  %4630 = vrot.lane.b32.xlu0 %v4584, 32
  %v4631 = vpop.permute.xlu0 %4630
  %4632 = vrot.lane.b32.xlu0 %v4585, 32
  %v4633 = vpop.permute.xlu0 %4632
  %4634 = vrot.lane.b32.xlu0 %v4586, 32
  %v4635 = vpop.permute.xlu0 %4634
  %4636 = vrot.lane.b32.xlu0 %v4587, 32
  %v4637 = vpop.permute.xlu0 %4636
  %4638 = vrot.lane.b32.xlu0 %v4588, 32
  %v4639 = vpop.permute.xlu0 %4638
  %4640 = vrot.lane.b32.xlu0 %v4589, 32
  %v4641 = vpop.permute.xlu0 %4640
  %4642 = vrot.lane.b32.xlu0 %v4590, 32
  %v4643 = vpop.permute.xlu0 %4642
  %4644 = vrot.lane.b32.xlu0 %v4591, 32
  %v4645 = vpop.permute.xlu0 %4644
  %v4664 = vadd.f32 %v4484, %v4611
  %v4665 = vadd.f32 %v4485, %v4613
  %v4666 = vadd.f32 %v4486, %v4615
  %v4667 = vadd.f32 %v4487, %v4617
  %v4668 = vadd.f32 %v4488, %v4619
  %v4669 = vadd.f32 %v4489, %v4621
  %v4670 = vadd.f32 %v4490, %v4623
  %v4671 = vadd.f32 %v4491, %v4625
  %v4672 = vadd.f32 %v4492, %v4627
  %v4673 = vadd.f32 %v4493, %v4629
  %v4674 = vadd.f32 %v4494, %v4631
  %v4675 = vadd.f32 %v4495, %v4633
  %v4676 = vadd.f32 %v4496, %v4635
  %v4677 = vadd.f32 %v4497, %v4637
  %v4678 = vadd.f32 %v4498, %v4639
  %v4679 = vadd.f32 %v4499, %v4641
  %v4680 = vadd.f32 %v4500, %v4643
  %v4681 = vadd.f32 %v4501, %v4645
  %v4682 = vtanh.pop %v4664
  %v4683 = vtanh.pop %v4665
  %v4684 = vtanh.pop %v4666
  %v4685 = vtanh.pop %v4667
  %v4686 = vtanh.pop %v4668
  %v4687 = vtanh.pop %v4669
  %v4688 = vtanh.pop %v4670
  %v4689 = vtanh.pop %v4671
  %v4690 = vtanh.pop %v4672
  %v4691 = vtanh.pop %v4673
  %v4692 = vtanh.pop %v4674
  %v4693 = vtanh.pop %v4675
  %v4694 = vtanh.pop %v4676
  %v4695 = vtanh.pop %v4677
  %v4696 = vtanh.pop %v4678
  %v4697 = vtanh.pop %v4679
  %v4698 = vtanh.pop %v4680
  %v4699 = vtanh.pop %v4681
  %4718 = vrot.lane.b32.xlu0 %v4682, 32
  %v4719 = vpop.permute.xlu0 %4718
  %4720 = vrot.lane.b32.xlu0 %v4683, 32
  %v4721 = vpop.permute.xlu0 %4720
  %4722 = vrot.lane.b32.xlu0 %v4684, 32
  %v4723 = vpop.permute.xlu0 %4722
  %4724 = vrot.lane.b32.xlu0 %v4685, 32
  %v4725 = vpop.permute.xlu0 %4724
  %4726 = vrot.lane.b32.xlu0 %v4686, 32
  %v4727 = vpop.permute.xlu0 %4726
  %4728 = vrot.lane.b32.xlu0 %v4687, 32
  %v4729 = vpop.permute.xlu0 %4728
  %4730 = vrot.lane.b32.xlu0 %v4688, 32
  %v4731 = vpop.permute.xlu0 %4730
  %4732 = vrot.lane.b32.xlu0 %v4689, 32
  %v4733 = vpop.permute.xlu0 %4732
  %4734 = vrot.lane.b32.xlu0 %v4690, 32
  %v4735 = vpop.permute.xlu0 %4734
  %4736 = vrot.lane.b32.xlu0 %v4691, 32
  %v4737 = vpop.permute.xlu0 %4736
  %4738 = vrot.lane.b32.xlu0 %v4692, 32
  %v4739 = vpop.permute.xlu0 %4738
  %4740 = vrot.lane.b32.xlu0 %v4693, 32
  %v4741 = vpop.permute.xlu0 %4740
  %4742 = vrot.lane.b32.xlu0 %v4694, 32
  %v4743 = vpop.permute.xlu0 %4742
  %4744 = vrot.lane.b32.xlu0 %v4695, 32
  %v4745 = vpop.permute.xlu0 %4744
  %4746 = vrot.lane.b32.xlu0 %v4696, 32
  %v4747 = vpop.permute.xlu0 %4746
  %4748 = vrot.lane.b32.xlu0 %v4697, 32
  %v4749 = vpop.permute.xlu0 %4748
  %4750 = vrot.lane.b32.xlu0 %v4698, 32
  %v4751 = vpop.permute.xlu0 %4750
  %4752 = vrot.lane.b32.xlu0 %v4699, 32
  %v4753 = vpop.permute.xlu0 %4752
  %v4772 = vmul.f32 %v4210, %v4719
  %v4773 = vmul.f32 %v4225, %v4721
  %v4774 = vmul.f32 %v4240, %v4723
  %v4775 = vmul.f32 %v4255, %v4725
  %v4776 = vmul.f32 %v4270, %v4727
  %v4777 = vmul.f32 %v4285, %v4729
  %v4778 = vmul.f32 %v4300, %v4731
  %v4779 = vmul.f32 %v4315, %v4733
  %v4780 = vmul.f32 %v4330, %v4735
  %v4781 = vmul.f32 %v4345, %v4737
  %v4782 = vmul.f32 %v4360, %v4739
  %v4783 = vmul.f32 %v4375, %v4741
  %v4784 = vmul.f32 %v4390, %v4743
  %v4785 = vmul.f32 %v4405, %v4745
  %v4786 = vmul.f32 %v4420, %v4747
  %v4787 = vmul.f32 %v4435, %v4749
  %v4788 = vmul.f32 %v4450, %v4751
  %v4789 = vmul.f32 %v4465, %v4753
  %v4790 = vpack.c.bf16 %v4773, %v4772
  %v4791 = vpack.c.bf16 %v4775, %v4774
  %v4792 = vpack.c.bf16 %v4777, %v4776
  %v4793 = vpack.c.bf16 %v4779, %v4778
  %v4794 = vpack.c.bf16 %v4781, %v4780
  %v4795 = vpack.c.bf16 %v4783, %v4782
  %v4796 = vpack.c.bf16 %v4785, %v4784
  %v4797 = vpack.c.bf16 %v4787, %v4786
  %v4798 = vpack.c.bf16 %v4789, %v4788
  %s4799 = scalar_lea.vmem %s0, 864
  %v4800 = vld [vmem:[%s4799] sm:$0xff]
  %v4801 = vld [vmem:[%s4799 + $0x8] sm:$0xff]
  %v4802 = vld [vmem:[%s4799 + $0x10] sm:$0xff]
  %v4803 = vld [vmem:[%s4799 + $0x18] sm:$0xff]
  %v4804 = vld [vmem:[%s4799 + $0x20] sm:$0xff]
  %v4805 = vld [vmem:[%s4799 + $0x28] sm:$0xff]
  %v4806 = vld [vmem:[%s4799 + $0x30] sm:$0xff]
  %v4807 = vld [vmem:[%s4799 + $0x38] sm:$0xff]
  %v4808 = vld [vmem:[%s4799 + $0x40] sm:$0xff]
  %v4809 = vld [vmem:[%s4799 + $0x48] sm:$0xff]
  %v4810 = vld [vmem:[%s4799 + $0x50] sm:$0xff]
  %v4811 = vld [vmem:[%s4799 + $0x58] sm:$0xff]
  %v4812 = vld [vmem:[%s4799 + $0x60] sm:$0xff]
  %v4813 = vld [vmem:[%s4799 + $0x68] sm:$0xff]
  %v4814 = vld [vmem:[%s4799 + $0x70] sm:$0xff]
  %v4815 = vld [vmem:[%s4799 + $0x78] sm:$0xff]
  %v4816 = vld [vmem:[%s4799 + $0x80] sm:$0xff]
  %v4817 = vld [vmem:[%s4799 + $0x88] sm:$0xff]
  %4827 = vrot.lane.b32.xlu0 %v4790, 64
  %v4828 = vpop.permute.xlu0 %4827
  %4829 = vrot.lane.b32.xlu0 %v4791, 64
  %v4830 = vpop.permute.xlu0 %4829
  %4831 = vrot.lane.b32.xlu0 %v4792, 64
  %v4832 = vpop.permute.xlu0 %4831
  %4833 = vrot.lane.b32.xlu0 %v4793, 64
  %v4834 = vpop.permute.xlu0 %4833
  %4835 = vrot.lane.b32.xlu0 %v4794, 64
  %v4836 = vpop.permute.xlu0 %4835
  %4837 = vrot.lane.b32.xlu0 %v4795, 64
  %v4838 = vpop.permute.xlu0 %4837
  %4839 = vrot.lane.b32.xlu0 %v4796, 64
  %v4840 = vpop.permute.xlu0 %4839
  %4841 = vrot.lane.b32.xlu0 %v4797, 64
  %v4842 = vpop.permute.xlu0 %4841
  %4843 = vrot.lane.b32.xlu0 %v4798, 64
  %v4844 = vpop.permute.xlu0 %4843
  %v4846 = vsel %vm56, %v4828, 0
  %v4849 = vsel %vm56, %v4830, 0
  %v4852 = vsel %vm56, %v4832, 0
  %v4855 = vsel %vm56, %v4834, 0
  %v4858 = vsel %vm56, %v4836, 0
  %v4861 = vsel %vm56, %v4838, 0
  %v4864 = vsel %vm56, %v4840, 0
  %v4867 = vsel %vm56, %v4842, 0
  %v4870 = vsel %vm56, %v4844, 0
  %4872 = vmatpush.bf16.msra.mxu0 0
  %4873 = vmatpush.bf16.msra.mxu0 0
  %4874 = vmatpush.bf16.msra.mxu0 0
  %4875 = vmatpush.bf16.msra.mxu0 0
  %4876 = vmatpush.bf16.msra.mxu0 0
  %4877 = vmatpush.bf16.msra.mxu0 0
  %4878 = vmatpush.bf16.msra.mxu0 %v53
  %4879 = vmatpush.bf16.msra.mxu0 %v52
  %4880 = vmatmul.bf16.gmra.mxu0 %v4846
  %v4881 = vpop.f32.mrf.mxu0
  %v4882 = vadd.f32 %v4800, %v4881
  %v4883 = vpop.f32.mrf.mxu0
  %v4884 = vadd.f32 %v4801, %v4883
  %4885 = vmatmul.bf16.gmra.mxu0 %v4849
  %v4886 = vpop.f32.mrf.mxu0
  %v4887 = vadd.f32 %v4802, %v4886
  %v4888 = vpop.f32.mrf.mxu0
  %v4889 = vadd.f32 %v4803, %v4888
  %4890 = vmatmul.bf16.gmra.mxu0 %v4852
  %v4891 = vpop.f32.mrf.mxu0
  %v4892 = vadd.f32 %v4804, %v4891
  %v4893 = vpop.f32.mrf.mxu0
  %v4894 = vadd.f32 %v4805, %v4893
  %4895 = vmatmul.bf16.gmra.mxu0 %v4855
  %v4896 = vpop.f32.mrf.mxu0
  %v4897 = vadd.f32 %v4806, %v4896
  %v4898 = vpop.f32.mrf.mxu0
  %v4899 = vadd.f32 %v4807, %v4898
  %4900 = vmatmul.bf16.gmra.mxu0 %v4858
  %v4901 = vpop.f32.mrf.mxu0
  %v4902 = vadd.f32 %v4808, %v4901
  %v4903 = vpop.f32.mrf.mxu0
  %v4904 = vadd.f32 %v4809, %v4903
  %4905 = vmatmul.bf16.gmra.mxu0 %v4861
  %v4906 = vpop.f32.mrf.mxu0
  %v4907 = vadd.f32 %v4810, %v4906
  %v4908 = vpop.f32.mrf.mxu0
  %v4909 = vadd.f32 %v4811, %v4908
  %4910 = vmatmul.bf16.gmra.mxu0 %v4864
  %v4911 = vpop.f32.mrf.mxu0
  %v4912 = vadd.f32 %v4812, %v4911
  %v4913 = vpop.f32.mrf.mxu0
  %v4914 = vadd.f32 %v4813, %v4913
  %4915 = vmatmul.bf16.gmra.mxu0 %v4867
  %v4916 = vpop.f32.mrf.mxu0
  %v4917 = vadd.f32 %v4814, %v4916
  %v4918 = vpop.f32.mrf.mxu0
  %v4919 = vadd.f32 %v4815, %v4918
  %4920 = vmatmul.bf16.gmra.mxu0 %v4870
  %v4921 = vpop.f32.mrf.mxu0
  %v4922 = vadd.f32 %v4816, %v4921
  %v4923 = vpop.f32.mrf.mxu0
  %v4924 = vadd.f32 %v4817, %v4923
  %4925 = vdwg.mxu0
  %v4926 = vxor.u32 %v4882, 2147483648
  %v4927 = vxor.u32 %v4884, 2147483648
  %v4928 = vxor.u32 %v4887, 2147483648
  %v4929 = vxor.u32 %v4889, 2147483648
  %v4930 = vxor.u32 %v4892, 2147483648
  %v4931 = vxor.u32 %v4894, 2147483648
  %v4932 = vxor.u32 %v4897, 2147483648
  %v4933 = vxor.u32 %v4899, 2147483648
  %v4934 = vxor.u32 %v4902, 2147483648
  %v4935 = vxor.u32 %v4904, 2147483648
  %v4936 = vxor.u32 %v4907, 2147483648
  %v4937 = vxor.u32 %v4909, 2147483648
  %v4938 = vxor.u32 %v4912, 2147483648
  %v4939 = vxor.u32 %v4914, 2147483648
  %v4940 = vxor.u32 %v4917, 2147483648
  %v4941 = vxor.u32 %v4919, 2147483648
  %v4942 = vxor.u32 %v4922, 2147483648
  %v4943 = vxor.u32 %v4924, 2147483648
  %v4944 = vmul.f32 %v4926, 1.442695
  %v4945 = vpow.pop %v4944
  %v4946 = vmul.f32 %v4927, 1.442695
  %v4947 = vpow.pop %v4946
  %v4948 = vmul.f32 %v4928, 1.442695
  %v4949 = vpow.pop %v4948
  %v4950 = vmul.f32 %v4929, 1.442695
  %v4951 = vpow.pop %v4950
  %v4952 = vmul.f32 %v4930, 1.442695
  %v4953 = vpow.pop %v4952
  %v4954 = vmul.f32 %v4931, 1.442695
  %v4955 = vpow.pop %v4954
  %v4956 = vmul.f32 %v4932, 1.442695
  %v4957 = vpow.pop %v4956
  %v4958 = vmul.f32 %v4933, 1.442695
  %v4959 = vpow.pop %v4958
  %v4960 = vmul.f32 %v4934, 1.442695
  %v4961 = vpow.pop %v4960
  %v4962 = vmul.f32 %v4935, 1.442695
  %v4963 = vpow.pop %v4962
  %v4964 = vmul.f32 %v4936, 1.442695
  %v4965 = vpow.pop %v4964
  %v4966 = vmul.f32 %v4937, 1.442695
  %v4967 = vpow.pop %v4966
  %v4968 = vmul.f32 %v4938, 1.442695
  %v4969 = vpow.pop %v4968
  %v4970 = vmul.f32 %v4939, 1.442695
  %v4971 = vpow.pop %v4970
  %v4972 = vmul.f32 %v4940, 1.442695
  %v4973 = vpow.pop %v4972
  %v4974 = vmul.f32 %v4941, 1.442695
  %v4975 = vpow.pop %v4974
  %v4976 = vmul.f32 %v4942, 1.442695
  %v4977 = vpow.pop %v4976
  %v4978 = vmul.f32 %v4943, 1.442695
  %v4979 = vpow.pop %v4978
  %v4980 = vadd.f32 %v4945, 1.0
  %v4981 = vadd.f32 %v4947, 1.0
  %v4982 = vadd.f32 %v4949, 1.0
  %v4983 = vadd.f32 %v4951, 1.0
  %v4984 = vadd.f32 %v4953, 1.0
  %v4985 = vadd.f32 %v4955, 1.0
  %v4986 = vadd.f32 %v4957, 1.0
  %v4987 = vadd.f32 %v4959, 1.0
  %v4988 = vadd.f32 %v4961, 1.0
  %v4989 = vadd.f32 %v4963, 1.0
  %v4990 = vadd.f32 %v4965, 1.0
  %v4991 = vadd.f32 %v4967, 1.0
  %v4992 = vadd.f32 %v4969, 1.0
  %v4993 = vadd.f32 %v4971, 1.0
  %v4994 = vadd.f32 %v4973, 1.0
  %v4995 = vadd.f32 %v4975, 1.0
  %v4996 = vadd.f32 %v4977, 1.0
  %v4997 = vadd.f32 %v4979, 1.0
  %v4998 = vrcp.pop %v4980
  %v4999 = vmul.f32 %v4980, %v4998
  %v5000 = vsub.f32 1.0, %v4999
  %v5001 = vmul.f32 %v4998, %v5000
  %v5002 = vadd.f32 %v4998, %v5001
  %vm5003 = vweird.f32 %v4980
  %vm5004 = vweird.f32 %v4998
  %vm5005 = vmor %vm5003, %vm5004
  %v5006 = vsel %vm5005, %v4998, %v5002
  %v5007 = vand.u32 2147483647, %v4980
  %vm5008 = vcmp.eq.f32.partialorder %v5007, 8.507059e+37
  %v5009 = vand.u32 %v4980, 2147483648
  %v5010 = vor.u32 1.1754944e-38, %v5009
  %v5011 = vsel %vm5008, %v5010, %v5006
  %v5012 = vmul.f32 1.0, %v5011
  %v5013 = vrcp.pop %v4981
  %v5014 = vmul.f32 %v4981, %v5013
  %v5015 = vsub.f32 1.0, %v5014
  %v5016 = vmul.f32 %v5013, %v5015
  %v5017 = vadd.f32 %v5013, %v5016
  %vm5018 = vweird.f32 %v4981
  %vm5019 = vweird.f32 %v5013
  %vm5020 = vmor %vm5018, %vm5019
  %v5021 = vsel %vm5020, %v5013, %v5017
  %v5022 = vand.u32 2147483647, %v4981
  %vm5023 = vcmp.eq.f32.partialorder %v5022, 8.507059e+37
  %v5024 = vand.u32 %v4981, 2147483648
  %v5025 = vor.u32 1.1754944e-38, %v5024
  %v5026 = vsel %vm5023, %v5025, %v5021
  %v5027 = vmul.f32 1.0, %v5026
  %v5028 = vrcp.pop %v4982
  %v5029 = vmul.f32 %v4982, %v5028
  %v5030 = vsub.f32 1.0, %v5029
  %v5031 = vmul.f32 %v5028, %v5030
  %v5032 = vadd.f32 %v5028, %v5031
  %vm5033 = vweird.f32 %v4982
  %vm5034 = vweird.f32 %v5028
  %vm5035 = vmor %vm5033, %vm5034
  %v5036 = vsel %vm5035, %v5028, %v5032
  %v5037 = vand.u32 2147483647, %v4982
  %vm5038 = vcmp.eq.f32.partialorder %v5037, 8.507059e+37
  %v5039 = vand.u32 %v4982, 2147483648
  %v5040 = vor.u32 1.1754944e-38, %v5039
  %v5041 = vsel %vm5038, %v5040, %v5036
  %v5042 = vmul.f32 1.0, %v5041
  %v5043 = vrcp.pop %v4983
  %v5044 = vmul.f32 %v4983, %v5043
  %v5045 = vsub.f32 1.0, %v5044
  %v5046 = vmul.f32 %v5043, %v5045
  %v5047 = vadd.f32 %v5043, %v5046
  %vm5048 = vweird.f32 %v4983
  %vm5049 = vweird.f32 %v5043
  %vm5050 = vmor %vm5048, %vm5049
  %v5051 = vsel %vm5050, %v5043, %v5047
  %v5052 = vand.u32 2147483647, %v4983
  %vm5053 = vcmp.eq.f32.partialorder %v5052, 8.507059e+37
  %v5054 = vand.u32 %v4983, 2147483648
  %v5055 = vor.u32 1.1754944e-38, %v5054
  %v5056 = vsel %vm5053, %v5055, %v5051
  %v5057 = vmul.f32 1.0, %v5056
  %v5058 = vrcp.pop %v4984
  %v5059 = vmul.f32 %v4984, %v5058
  %v5060 = vsub.f32 1.0, %v5059
  %v5061 = vmul.f32 %v5058, %v5060
  %v5062 = vadd.f32 %v5058, %v5061
  %vm5063 = vweird.f32 %v4984
  %vm5064 = vweird.f32 %v5058
  %vm5065 = vmor %vm5063, %vm5064
  %v5066 = vsel %vm5065, %v5058, %v5062
  %v5067 = vand.u32 2147483647, %v4984
  %vm5068 = vcmp.eq.f32.partialorder %v5067, 8.507059e+37
  %v5069 = vand.u32 %v4984, 2147483648
  %v5070 = vor.u32 1.1754944e-38, %v5069
  %v5071 = vsel %vm5068, %v5070, %v5066
  %v5072 = vmul.f32 1.0, %v5071
  %v5073 = vrcp.pop %v4985
  %v5074 = vmul.f32 %v4985, %v5073
  %v5075 = vsub.f32 1.0, %v5074
  %v5076 = vmul.f32 %v5073, %v5075
  %v5077 = vadd.f32 %v5073, %v5076
  %vm5078 = vweird.f32 %v4985
  %vm5079 = vweird.f32 %v5073
  %vm5080 = vmor %vm5078, %vm5079
  %v5081 = vsel %vm5080, %v5073, %v5077
  %v5082 = vand.u32 2147483647, %v4985
  %vm5083 = vcmp.eq.f32.partialorder %v5082, 8.507059e+37
  %v5084 = vand.u32 %v4985, 2147483648
  %v5085 = vor.u32 1.1754944e-38, %v5084
  %v5086 = vsel %vm5083, %v5085, %v5081
  %v5087 = vmul.f32 1.0, %v5086
  %v5088 = vrcp.pop %v4986
  %v5089 = vmul.f32 %v4986, %v5088
  %v5090 = vsub.f32 1.0, %v5089
  %v5091 = vmul.f32 %v5088, %v5090
  %v5092 = vadd.f32 %v5088, %v5091
  %vm5093 = vweird.f32 %v4986
  %vm5094 = vweird.f32 %v5088
  %vm5095 = vmor %vm5093, %vm5094
  %v5096 = vsel %vm5095, %v5088, %v5092
  %v5097 = vand.u32 2147483647, %v4986
  %vm5098 = vcmp.eq.f32.partialorder %v5097, 8.507059e+37
  %v5099 = vand.u32 %v4986, 2147483648
  %v5100 = vor.u32 1.1754944e-38, %v5099
  %v5101 = vsel %vm5098, %v5100, %v5096
  %v5102 = vmul.f32 1.0, %v5101
  %v5103 = vrcp.pop %v4987
  %v5104 = vmul.f32 %v4987, %v5103
  %v5105 = vsub.f32 1.0, %v5104
  %v5106 = vmul.f32 %v5103, %v5105
  %v5107 = vadd.f32 %v5103, %v5106
  %vm5108 = vweird.f32 %v4987
  %vm5109 = vweird.f32 %v5103
  %vm5110 = vmor %vm5108, %vm5109
  %v5111 = vsel %vm5110, %v5103, %v5107
  %v5112 = vand.u32 2147483647, %v4987
  %vm5113 = vcmp.eq.f32.partialorder %v5112, 8.507059e+37
  %v5114 = vand.u32 %v4987, 2147483648
  %v5115 = vor.u32 1.1754944e-38, %v5114
  %v5116 = vsel %vm5113, %v5115, %v5111
  %v5117 = vmul.f32 1.0, %v5116
  %v5118 = vrcp.pop %v4988
  %v5119 = vmul.f32 %v4988, %v5118
  %v5120 = vsub.f32 1.0, %v5119
  %v5121 = vmul.f32 %v5118, %v5120
  %v5122 = vadd.f32 %v5118, %v5121
  %vm5123 = vweird.f32 %v4988
  %vm5124 = vweird.f32 %v5118
  %vm5125 = vmor %vm5123, %vm5124
  %v5126 = vsel %vm5125, %v5118, %v5122
  %v5127 = vand.u32 2147483647, %v4988
  %vm5128 = vcmp.eq.f32.partialorder %v5127, 8.507059e+37
  %v5129 = vand.u32 %v4988, 2147483648
  %v5130 = vor.u32 1.1754944e-38, %v5129
  %v5131 = vsel %vm5128, %v5130, %v5126
  %v5132 = vmul.f32 1.0, %v5131
  %v5133 = vrcp.pop %v4989
  %v5134 = vmul.f32 %v4989, %v5133
  %v5135 = vsub.f32 1.0, %v5134
  %v5136 = vmul.f32 %v5133, %v5135
  %v5137 = vadd.f32 %v5133, %v5136
  %vm5138 = vweird.f32 %v4989
  %vm5139 = vweird.f32 %v5133
  %vm5140 = vmor %vm5138, %vm5139
  %v5141 = vsel %vm5140, %v5133, %v5137
  %v5142 = vand.u32 2147483647, %v4989
  %vm5143 = vcmp.eq.f32.partialorder %v5142, 8.507059e+37
  %v5144 = vand.u32 %v4989, 2147483648
  %v5145 = vor.u32 1.1754944e-38, %v5144
  %v5146 = vsel %vm5143, %v5145, %v5141
  %v5147 = vmul.f32 1.0, %v5146
  %v5148 = vrcp.pop %v4990
  %v5149 = vmul.f32 %v4990, %v5148
  %v5150 = vsub.f32 1.0, %v5149
  %v5151 = vmul.f32 %v5148, %v5150
  %v5152 = vadd.f32 %v5148, %v5151
  %vm5153 = vweird.f32 %v4990
  %vm5154 = vweird.f32 %v5148
  %vm5155 = vmor %vm5153, %vm5154
  %v5156 = vsel %vm5155, %v5148, %v5152
  %v5157 = vand.u32 2147483647, %v4990
  %vm5158 = vcmp.eq.f32.partialorder %v5157, 8.507059e+37
  %v5159 = vand.u32 %v4990, 2147483648
  %v5160 = vor.u32 1.1754944e-38, %v5159
  %v5161 = vsel %vm5158, %v5160, %v5156
  %v5162 = vmul.f32 1.0, %v5161
  %v5163 = vrcp.pop %v4991
  %v5164 = vmul.f32 %v4991, %v5163
  %v5165 = vsub.f32 1.0, %v5164
  %v5166 = vmul.f32 %v5163, %v5165
  %v5167 = vadd.f32 %v5163, %v5166
  %vm5168 = vweird.f32 %v4991
  %vm5169 = vweird.f32 %v5163
  %vm5170 = vmor %vm5168, %vm5169
  %v5171 = vsel %vm5170, %v5163, %v5167
  %v5172 = vand.u32 2147483647, %v4991
  %vm5173 = vcmp.eq.f32.partialorder %v5172, 8.507059e+37
  %v5174 = vand.u32 %v4991, 2147483648
  %v5175 = vor.u32 1.1754944e-38, %v5174
  %v5176 = vsel %vm5173, %v5175, %v5171
  %v5177 = vmul.f32 1.0, %v5176
  %v5178 = vrcp.pop %v4992
  %v5179 = vmul.f32 %v4992, %v5178
  %v5180 = vsub.f32 1.0, %v5179
  %v5181 = vmul.f32 %v5178, %v5180
  %v5182 = vadd.f32 %v5178, %v5181
  %vm5183 = vweird.f32 %v4992
  %vm5184 = vweird.f32 %v5178
  %vm5185 = vmor %vm5183, %vm5184
  %v5186 = vsel %vm5185, %v5178, %v5182
  %v5187 = vand.u32 2147483647, %v4992
  %vm5188 = vcmp.eq.f32.partialorder %v5187, 8.507059e+37
  %v5189 = vand.u32 %v4992, 2147483648
  %v5190 = vor.u32 1.1754944e-38, %v5189
  %v5191 = vsel %vm5188, %v5190, %v5186
  %v5192 = vmul.f32 1.0, %v5191
  %v5193 = vrcp.pop %v4993
  %v5194 = vmul.f32 %v4993, %v5193
  %v5195 = vsub.f32 1.0, %v5194
  %v5196 = vmul.f32 %v5193, %v5195
  %v5197 = vadd.f32 %v5193, %v5196
  %vm5198 = vweird.f32 %v4993
  %vm5199 = vweird.f32 %v5193
  %vm5200 = vmor %vm5198, %vm5199
  %v5201 = vsel %vm5200, %v5193, %v5197
  %v5202 = vand.u32 2147483647, %v4993
  %vm5203 = vcmp.eq.f32.partialorder %v5202, 8.507059e+37
  %v5204 = vand.u32 %v4993, 2147483648
  %v5205 = vor.u32 1.1754944e-38, %v5204
  %v5206 = vsel %vm5203, %v5205, %v5201
  %v5207 = vmul.f32 1.0, %v5206
  %v5208 = vrcp.pop %v4994
  %v5209 = vmul.f32 %v4994, %v5208
  %v5210 = vsub.f32 1.0, %v5209
  %v5211 = vmul.f32 %v5208, %v5210
  %v5212 = vadd.f32 %v5208, %v5211
  %vm5213 = vweird.f32 %v4994
  %vm5214 = vweird.f32 %v5208
  %vm5215 = vmor %vm5213, %vm5214
  %v5216 = vsel %vm5215, %v5208, %v5212
  %v5217 = vand.u32 2147483647, %v4994
  %vm5218 = vcmp.eq.f32.partialorder %v5217, 8.507059e+37
  %v5219 = vand.u32 %v4994, 2147483648
  %v5220 = vor.u32 1.1754944e-38, %v5219
  %v5221 = vsel %vm5218, %v5220, %v5216
  %v5222 = vmul.f32 1.0, %v5221
  %v5223 = vrcp.pop %v4995
  %v5224 = vmul.f32 %v4995, %v5223
  %v5225 = vsub.f32 1.0, %v5224
  %v5226 = vmul.f32 %v5223, %v5225
  %v5227 = vadd.f32 %v5223, %v5226
  %vm5228 = vweird.f32 %v4995
  %vm5229 = vweird.f32 %v5223
  %vm5230 = vmor %vm5228, %vm5229
  %v5231 = vsel %vm5230, %v5223, %v5227
  %v5232 = vand.u32 2147483647, %v4995
  %vm5233 = vcmp.eq.f32.partialorder %v5232, 8.507059e+37
  %v5234 = vand.u32 %v4995, 2147483648
  %v5235 = vor.u32 1.1754944e-38, %v5234
  %v5236 = vsel %vm5233, %v5235, %v5231
  %v5237 = vmul.f32 1.0, %v5236
  %v5238 = vrcp.pop %v4996
  %v5239 = vmul.f32 %v4996, %v5238
  %v5240 = vsub.f32 1.0, %v5239
  %v5241 = vmul.f32 %v5238, %v5240
  %v5242 = vadd.f32 %v5238, %v5241
  %vm5243 = vweird.f32 %v4996
  %vm5244 = vweird.f32 %v5238
  %vm5245 = vmor %vm5243, %vm5244
  %v5246 = vsel %vm5245, %v5238, %v5242
  %v5247 = vand.u32 2147483647, %v4996
  %vm5248 = vcmp.eq.f32.partialorder %v5247, 8.507059e+37
  %v5249 = vand.u32 %v4996, 2147483648
  %v5250 = vor.u32 1.1754944e-38, %v5249
  %v5251 = vsel %vm5248, %v5250, %v5246
  %v5252 = vmul.f32 1.0, %v5251
  %v5253 = vrcp.pop %v4997
  %v5254 = vmul.f32 %v4997, %v5253
  %v5255 = vsub.f32 1.0, %v5254
  %v5256 = vmul.f32 %v5253, %v5255
  %v5257 = vadd.f32 %v5253, %v5256
  %vm5258 = vweird.f32 %v4997
  %vm5259 = vweird.f32 %v5253
  %vm5260 = vmor %vm5258, %vm5259
  %v5261 = vsel %vm5260, %v5253, %v5257
  %v5262 = vand.u32 2147483647, %v4997
  %vm5263 = vcmp.eq.f32.partialorder %v5262, 8.507059e+37
  %v5264 = vand.u32 %v4997, 2147483648
  %v5265 = vor.u32 1.1754944e-38, %v5264
  %v5266 = vsel %vm5263, %v5265, %v5261
  %v5267 = vmul.f32 1.0, %v5266
  %v5268 = vtanh.pop %v4882
  %v5269 = vtanh.pop %v4884
  %v5270 = vtanh.pop %v4887
  %v5271 = vtanh.pop %v4889
  %v5272 = vtanh.pop %v4892
  %v5273 = vtanh.pop %v4894
  %v5274 = vtanh.pop %v4897
  %v5275 = vtanh.pop %v4899
  %v5276 = vtanh.pop %v4902
  %v5277 = vtanh.pop %v4904
  %v5278 = vtanh.pop %v4907
  %v5279 = vtanh.pop %v4909
  %v5280 = vtanh.pop %v4912
  %v5281 = vtanh.pop %v4914
  %v5282 = vtanh.pop %v4917
  %v5283 = vtanh.pop %v4919
  %v5284 = vtanh.pop %v4922
  %v5285 = vtanh.pop %v4924
  %v5286 = vmul.f32 %v5012, %v4664
  %v5287 = vmul.f32 %v5027, %v4665
  %v5288 = vmul.f32 %v5042, %v4666
  %v5289 = vmul.f32 %v5057, %v4667
  %v5290 = vmul.f32 %v5072, %v4668
  %v5291 = vmul.f32 %v5087, %v4669
  %v5292 = vmul.f32 %v5102, %v4670
  %v5293 = vmul.f32 %v5117, %v4671
  %v5294 = vmul.f32 %v5132, %v4672
  %v5295 = vmul.f32 %v5147, %v4673
  %v5296 = vmul.f32 %v5162, %v4674
  %v5297 = vmul.f32 %v5177, %v4675
  %v5298 = vmul.f32 %v5192, %v4676
  %v5299 = vmul.f32 %v5207, %v4677
  %v5300 = vmul.f32 %v5222, %v4678
  %v5301 = vmul.f32 %v5237, %v4679
  %v5302 = vmul.f32 %v5252, %v4680
  %v5303 = vmul.f32 %v5267, %v4681
  %5322 = vrot.lane.b32.xlu0 %v5268, 32
  %v5323 = vpop.permute.xlu0 %5322
  %5324 = vrot.lane.b32.xlu0 %v5269, 32
  %v5325 = vpop.permute.xlu0 %5324
  %5326 = vrot.lane.b32.xlu0 %v5270, 32
  %v5327 = vpop.permute.xlu0 %5326
  %5328 = vrot.lane.b32.xlu0 %v5271, 32
  %v5329 = vpop.permute.xlu0 %5328
  %5330 = vrot.lane.b32.xlu0 %v5272, 32
  %v5331 = vpop.permute.xlu0 %5330
  %5332 = vrot.lane.b32.xlu0 %v5273, 32
  %v5333 = vpop.permute.xlu0 %5332
  %5334 = vrot.lane.b32.xlu0 %v5274, 32
  %v5335 = vpop.permute.xlu0 %5334
  %5336 = vrot.lane.b32.xlu0 %v5275, 32
  %v5337 = vpop.permute.xlu0 %5336
  %5338 = vrot.lane.b32.xlu0 %v5276, 32
  %v5339 = vpop.permute.xlu0 %5338
  %5340 = vrot.lane.b32.xlu0 %v5277, 32
  %v5341 = vpop.permute.xlu0 %5340
  %5342 = vrot.lane.b32.xlu0 %v5278, 32
  %v5343 = vpop.permute.xlu0 %5342
  %5344 = vrot.lane.b32.xlu0 %v5279, 32
  %v5345 = vpop.permute.xlu0 %5344
  %5346 = vrot.lane.b32.xlu0 %v5280, 32
  %v5347 = vpop.permute.xlu0 %5346
  %5348 = vrot.lane.b32.xlu0 %v5281, 32
  %v5349 = vpop.permute.xlu0 %5348
  %5350 = vrot.lane.b32.xlu0 %v5282, 32
  %v5351 = vpop.permute.xlu0 %5350
  %5352 = vrot.lane.b32.xlu0 %v5283, 32
  %v5353 = vpop.permute.xlu0 %5352
  %5354 = vrot.lane.b32.xlu0 %v5284, 32
  %v5355 = vpop.permute.xlu0 %5354
  %5356 = vrot.lane.b32.xlu0 %v5285, 32
  %v5357 = vpop.permute.xlu0 %5356
  %v5376 = vmul.f32 %v5012, %v5323
  %v5377 = vmul.f32 %v5027, %v5325
  %v5378 = vmul.f32 %v5042, %v5327
  %v5379 = vmul.f32 %v5057, %v5329
  %v5380 = vmul.f32 %v5072, %v5331
  %v5381 = vmul.f32 %v5087, %v5333
  %v5382 = vmul.f32 %v5102, %v5335
  %v5383 = vmul.f32 %v5117, %v5337
  %v5384 = vmul.f32 %v5132, %v5339
  %v5385 = vmul.f32 %v5147, %v5341
  %v5386 = vmul.f32 %v5162, %v5343
  %v5387 = vmul.f32 %v5177, %v5345
  %v5388 = vmul.f32 %v5192, %v5347
  %v5389 = vmul.f32 %v5207, %v5349
  %v5390 = vmul.f32 %v5222, %v5351
  %v5391 = vmul.f32 %v5237, %v5353
  %v5392 = vmul.f32 %v5252, %v5355
  %v5393 = vmul.f32 %v5267, %v5357
  %5412 = vrot.lane.b32.xlu0 %v5376, 32
  %v5413 = vpop.permute.xlu0 %5412
  %5414 = vrot.lane.b32.xlu0 %v5377, 32
  %v5415 = vpop.permute.xlu0 %5414
  %5416 = vrot.lane.b32.xlu0 %v5378, 32
  %v5417 = vpop.permute.xlu0 %5416
  %5418 = vrot.lane.b32.xlu0 %v5379, 32
  %v5419 = vpop.permute.xlu0 %5418
  %5420 = vrot.lane.b32.xlu0 %v5380, 32
  %v5421 = vpop.permute.xlu0 %5420
  %5422 = vrot.lane.b32.xlu0 %v5381, 32
  %v5423 = vpop.permute.xlu0 %5422
  %5424 = vrot.lane.b32.xlu0 %v5382, 32
  %v5425 = vpop.permute.xlu0 %5424
  %5426 = vrot.lane.b32.xlu0 %v5383, 32
  %v5427 = vpop.permute.xlu0 %5426
  %5428 = vrot.lane.b32.xlu0 %v5384, 32
  %v5429 = vpop.permute.xlu0 %5428
  %5430 = vrot.lane.b32.xlu0 %v5385, 32
  %v5431 = vpop.permute.xlu0 %5430
  %5432 = vrot.lane.b32.xlu0 %v5386, 32
  %v5433 = vpop.permute.xlu0 %5432
  %5434 = vrot.lane.b32.xlu0 %v5387, 32
  %v5435 = vpop.permute.xlu0 %5434
  %5436 = vrot.lane.b32.xlu0 %v5388, 32
  %v5437 = vpop.permute.xlu0 %5436
  %5438 = vrot.lane.b32.xlu0 %v5389, 32
  %v5439 = vpop.permute.xlu0 %5438
  %5440 = vrot.lane.b32.xlu0 %v5390, 32
  %v5441 = vpop.permute.xlu0 %5440
  %5442 = vrot.lane.b32.xlu0 %v5391, 32
  %v5443 = vpop.permute.xlu0 %5442
  %5444 = vrot.lane.b32.xlu0 %v5392, 32
  %v5445 = vpop.permute.xlu0 %5444
  %5446 = vrot.lane.b32.xlu0 %v5393, 32
  %v5447 = vpop.permute.xlu0 %5446
  %v5466 = vadd.f32 %v5286, %v5413
  %v5467 = vadd.f32 %v5287, %v5415
  %v5468 = vadd.f32 %v5288, %v5417
  %v5469 = vadd.f32 %v5289, %v5419
  %v5470 = vadd.f32 %v5290, %v5421
  %v5471 = vadd.f32 %v5291, %v5423
  %v5472 = vadd.f32 %v5292, %v5425
  %v5473 = vadd.f32 %v5293, %v5427
  %v5474 = vadd.f32 %v5294, %v5429
  %v5475 = vadd.f32 %v5295, %v5431
  %v5476 = vadd.f32 %v5296, %v5433
  %v5477 = vadd.f32 %v5297, %v5435
  %v5478 = vadd.f32 %v5298, %v5437
  %v5479 = vadd.f32 %v5299, %v5439
  %v5480 = vadd.f32 %v5300, %v5441
  %v5481 = vadd.f32 %v5301, %v5443
  %v5482 = vadd.f32 %v5302, %v5445
  %v5483 = vadd.f32 %v5303, %v5447
  %v5484 = vtanh.pop %v5466
  %v5485 = vtanh.pop %v5467
  %v5486 = vtanh.pop %v5468
  %v5487 = vtanh.pop %v5469
  %v5488 = vtanh.pop %v5470
  %v5489 = vtanh.pop %v5471
  %v5490 = vtanh.pop %v5472
  %v5491 = vtanh.pop %v5473
  %v5492 = vtanh.pop %v5474
  %v5493 = vtanh.pop %v5475
  %v5494 = vtanh.pop %v5476
  %v5495 = vtanh.pop %v5477
  %v5496 = vtanh.pop %v5478
  %v5497 = vtanh.pop %v5479
  %v5498 = vtanh.pop %v5480
  %v5499 = vtanh.pop %v5481
  %v5500 = vtanh.pop %v5482
  %v5501 = vtanh.pop %v5483
  %5520 = vrot.lane.b32.xlu0 %v5484, 32
  %v5521 = vpop.permute.xlu0 %5520
  %5522 = vrot.lane.b32.xlu0 %v5485, 32
  %v5523 = vpop.permute.xlu0 %5522
  %5524 = vrot.lane.b32.xlu0 %v5486, 32
  %v5525 = vpop.permute.xlu0 %5524
  %5526 = vrot.lane.b32.xlu0 %v5487, 32
  %v5527 = vpop.permute.xlu0 %5526
  %5528 = vrot.lane.b32.xlu0 %v5488, 32
  %v5529 = vpop.permute.xlu0 %5528
  %5530 = vrot.lane.b32.xlu0 %v5489, 32
  %v5531 = vpop.permute.xlu0 %5530
  %5532 = vrot.lane.b32.xlu0 %v5490, 32
  %v5533 = vpop.permute.xlu0 %5532
  %5534 = vrot.lane.b32.xlu0 %v5491, 32
  %v5535 = vpop.permute.xlu0 %5534
  %5536 = vrot.lane.b32.xlu0 %v5492, 32
  %v5537 = vpop.permute.xlu0 %5536
  %5538 = vrot.lane.b32.xlu0 %v5493, 32
  %v5539 = vpop.permute.xlu0 %5538
  %5540 = vrot.lane.b32.xlu0 %v5494, 32
  %v5541 = vpop.permute.xlu0 %5540
  %5542 = vrot.lane.b32.xlu0 %v5495, 32
  %v5543 = vpop.permute.xlu0 %5542
  %5544 = vrot.lane.b32.xlu0 %v5496, 32
  %v5545 = vpop.permute.xlu0 %5544
  %5546 = vrot.lane.b32.xlu0 %v5497, 32
  %v5547 = vpop.permute.xlu0 %5546
  %5548 = vrot.lane.b32.xlu0 %v5498, 32
  %v5549 = vpop.permute.xlu0 %5548
  %5550 = vrot.lane.b32.xlu0 %v5499, 32
  %v5551 = vpop.permute.xlu0 %5550
  %5552 = vrot.lane.b32.xlu0 %v5500, 32
  %v5553 = vpop.permute.xlu0 %5552
  %5554 = vrot.lane.b32.xlu0 %v5501, 32
  %v5555 = vpop.permute.xlu0 %5554
  %v5574 = vmul.f32 %v5012, %v5521
  %v5575 = vmul.f32 %v5027, %v5523
  %v5576 = vmul.f32 %v5042, %v5525
  %v5577 = vmul.f32 %v5057, %v5527
  %v5578 = vmul.f32 %v5072, %v5529
  %v5579 = vmul.f32 %v5087, %v5531
  %v5580 = vmul.f32 %v5102, %v5533
  %v5581 = vmul.f32 %v5117, %v5535
  %v5582 = vmul.f32 %v5132, %v5537
  %v5583 = vmul.f32 %v5147, %v5539
  %v5584 = vmul.f32 %v5162, %v5541
  %v5585 = vmul.f32 %v5177, %v5543
  %v5586 = vmul.f32 %v5192, %v5545
  %v5587 = vmul.f32 %v5207, %v5547
  %v5588 = vmul.f32 %v5222, %v5549
  %v5589 = vmul.f32 %v5237, %v5551
  %v5590 = vmul.f32 %v5252, %v5553
  %v5591 = vmul.f32 %v5267, %v5555
  %v5592 = vpack.c.bf16 %v5575, %v5574
  %v5593 = vpack.c.bf16 %v5577, %v5576
  %v5594 = vpack.c.bf16 %v5579, %v5578
  %v5595 = vpack.c.bf16 %v5581, %v5580
  %v5596 = vpack.c.bf16 %v5583, %v5582
  %v5597 = vpack.c.bf16 %v5585, %v5584
  %v5598 = vpack.c.bf16 %v5587, %v5586
  %v5599 = vpack.c.bf16 %v5589, %v5588
  %v5600 = vpack.c.bf16 %v5591, %v5590
  %s5601 = scalar_lea.vmem %s0, 1008
  %v5602 = vld [vmem:[%s5601] sm:$0xff]
  %v5603 = vld [vmem:[%s5601 + $0x8] sm:$0xff]
  %v5604 = vld [vmem:[%s5601 + $0x10] sm:$0xff]
  %v5605 = vld [vmem:[%s5601 + $0x18] sm:$0xff]
  %v5606 = vld [vmem:[%s5601 + $0x20] sm:$0xff]
  %v5607 = vld [vmem:[%s5601 + $0x28] sm:$0xff]
  %v5608 = vld [vmem:[%s5601 + $0x30] sm:$0xff]
  %v5609 = vld [vmem:[%s5601 + $0x38] sm:$0xff]
  %v5610 = vld [vmem:[%s5601 + $0x40] sm:$0xff]
  %v5611 = vld [vmem:[%s5601 + $0x48] sm:$0xff]
  %v5612 = vld [vmem:[%s5601 + $0x50] sm:$0xff]
  %v5613 = vld [vmem:[%s5601 + $0x58] sm:$0xff]
  %v5614 = vld [vmem:[%s5601 + $0x60] sm:$0xff]
  %v5615 = vld [vmem:[%s5601 + $0x68] sm:$0xff]
  %v5616 = vld [vmem:[%s5601 + $0x70] sm:$0xff]
  %v5617 = vld [vmem:[%s5601 + $0x78] sm:$0xff]
  %v5618 = vld [vmem:[%s5601 + $0x80] sm:$0xff]
  %v5619 = vld [vmem:[%s5601 + $0x88] sm:$0xff]
  %5629 = vrot.lane.b32.xlu0 %v5592, 64
  %v5630 = vpop.permute.xlu0 %5629
  %5631 = vrot.lane.b32.xlu0 %v5593, 64
  %v5632 = vpop.permute.xlu0 %5631
  %5633 = vrot.lane.b32.xlu0 %v5594, 64
  %v5634 = vpop.permute.xlu0 %5633
  %5635 = vrot.lane.b32.xlu0 %v5595, 64
  %v5636 = vpop.permute.xlu0 %5635
  %5637 = vrot.lane.b32.xlu0 %v5596, 64
  %v5638 = vpop.permute.xlu0 %5637
  %5639 = vrot.lane.b32.xlu0 %v5597, 64
  %v5640 = vpop.permute.xlu0 %5639
  %5641 = vrot.lane.b32.xlu0 %v5598, 64
  %v5642 = vpop.permute.xlu0 %5641
  %5643 = vrot.lane.b32.xlu0 %v5599, 64
  %v5644 = vpop.permute.xlu0 %5643
  %5645 = vrot.lane.b32.xlu0 %v5600, 64
  %v5646 = vpop.permute.xlu0 %5645
  %v5648 = vsel %vm56, %v5630, 0
  %v5651 = vsel %vm56, %v5632, 0
  %v5654 = vsel %vm56, %v5634, 0
  %v5657 = vsel %vm56, %v5636, 0
  %v5660 = vsel %vm56, %v5638, 0
  %v5663 = vsel %vm56, %v5640, 0
  %v5666 = vsel %vm56, %v5642, 0
  %v5669 = vsel %vm56, %v5644, 0
  %v5672 = vsel %vm56, %v5646, 0
  %5674 = vmatpush.bf16.msra.mxu0 0
  %5675 = vmatpush.bf16.msra.mxu0 0
  %5676 = vmatpush.bf16.msra.mxu0 0
  %5677 = vmatpush.bf16.msra.mxu0 0
  %5678 = vmatpush.bf16.msra.mxu0 0
  %5679 = vmatpush.bf16.msra.mxu0 0
  %5680 = vmatpush.bf16.msra.mxu0 %v53
  %5681 = vmatpush.bf16.msra.mxu0 %v52
  %5682 = vmatmul.bf16.gmra.mxu0 %v5648
  %v5683 = vpop.f32.mrf.mxu0
  %v5684 = vadd.f32 %v5602, %v5683
  %v5685 = vpop.f32.mrf.mxu0
  %v5686 = vadd.f32 %v5603, %v5685
  %5687 = vmatmul.bf16.gmra.mxu0 %v5651
  %v5688 = vpop.f32.mrf.mxu0
  %v5689 = vadd.f32 %v5604, %v5688
  %v5690 = vpop.f32.mrf.mxu0
  %v5691 = vadd.f32 %v5605, %v5690
  %5692 = vmatmul.bf16.gmra.mxu0 %v5654
  %v5693 = vpop.f32.mrf.mxu0
  %v5694 = vadd.f32 %v5606, %v5693
  %v5695 = vpop.f32.mrf.mxu0
  %v5696 = vadd.f32 %v5607, %v5695
  %5697 = vmatmul.bf16.gmra.mxu0 %v5657
  %v5698 = vpop.f32.mrf.mxu0
  %v5699 = vadd.f32 %v5608, %v5698
  %v5700 = vpop.f32.mrf.mxu0
  %v5701 = vadd.f32 %v5609, %v5700
  %5702 = vmatmul.bf16.gmra.mxu0 %v5660
  %v5703 = vpop.f32.mrf.mxu0
  %v5704 = vadd.f32 %v5610, %v5703
  %v5705 = vpop.f32.mrf.mxu0
  %v5706 = vadd.f32 %v5611, %v5705
  %5707 = vmatmul.bf16.gmra.mxu0 %v5663
  %v5708 = vpop.f32.mrf.mxu0
  %v5709 = vadd.f32 %v5612, %v5708
  %v5710 = vpop.f32.mrf.mxu0
  %v5711 = vadd.f32 %v5613, %v5710
  %5712 = vmatmul.bf16.gmra.mxu0 %v5666
  %v5713 = vpop.f32.mrf.mxu0
  %v5714 = vadd.f32 %v5614, %v5713
  %v5715 = vpop.f32.mrf.mxu0
  %v5716 = vadd.f32 %v5615, %v5715
  %5717 = vmatmul.bf16.gmra.mxu0 %v5669
  %v5718 = vpop.f32.mrf.mxu0
  %v5719 = vadd.f32 %v5616, %v5718
  %v5720 = vpop.f32.mrf.mxu0
  %v5721 = vadd.f32 %v5617, %v5720
  %5722 = vmatmul.bf16.gmra.mxu0 %v5672
  %v5723 = vpop.f32.mrf.mxu0
  %v5724 = vadd.f32 %v5618, %v5723
  %v5725 = vpop.f32.mrf.mxu0
  %v5726 = vadd.f32 %v5619, %v5725
  %5727 = vdwg.mxu0
  %v5728 = vxor.u32 %v5684, 2147483648
  %v5729 = vxor.u32 %v5686, 2147483648
  %v5730 = vxor.u32 %v5689, 2147483648
  %v5731 = vxor.u32 %v5691, 2147483648
  %v5732 = vxor.u32 %v5694, 2147483648
  %v5733 = vxor.u32 %v5696, 2147483648
  %v5734 = vxor.u32 %v5699, 2147483648
  %v5735 = vxor.u32 %v5701, 2147483648
  %v5736 = vxor.u32 %v5704, 2147483648
  %v5737 = vxor.u32 %v5706, 2147483648
  %v5738 = vxor.u32 %v5709, 2147483648
  %v5739 = vxor.u32 %v5711, 2147483648
  %v5740 = vxor.u32 %v5714, 2147483648
  %v5741 = vxor.u32 %v5716, 2147483648
  %v5742 = vxor.u32 %v5719, 2147483648
  %v5743 = vxor.u32 %v5721, 2147483648
  %v5744 = vxor.u32 %v5724, 2147483648
  %v5745 = vxor.u32 %v5726, 2147483648
  %v5746 = vmul.f32 %v5728, 1.442695
  %v5747 = vpow.pop %v5746
  %v5748 = vmul.f32 %v5729, 1.442695
  %v5749 = vpow.pop %v5748
  %v5750 = vmul.f32 %v5730, 1.442695
  %v5751 = vpow.pop %v5750
  %v5752 = vmul.f32 %v5731, 1.442695
  %v5753 = vpow.pop %v5752
  %v5754 = vmul.f32 %v5732, 1.442695
  %v5755 = vpow.pop %v5754
  %v5756 = vmul.f32 %v5733, 1.442695
  %v5757 = vpow.pop %v5756
  %v5758 = vmul.f32 %v5734, 1.442695
  %v5759 = vpow.pop %v5758
  %v5760 = vmul.f32 %v5735, 1.442695
  %v5761 = vpow.pop %v5760
  %v5762 = vmul.f32 %v5736, 1.442695
  %v5763 = vpow.pop %v5762
  %v5764 = vmul.f32 %v5737, 1.442695
  %v5765 = vpow.pop %v5764
  %v5766 = vmul.f32 %v5738, 1.442695
  %v5767 = vpow.pop %v5766
  %v5768 = vmul.f32 %v5739, 1.442695
  %v5769 = vpow.pop %v5768
  %v5770 = vmul.f32 %v5740, 1.442695
  %v5771 = vpow.pop %v5770
  %v5772 = vmul.f32 %v5741, 1.442695
  %v5773 = vpow.pop %v5772
  %v5774 = vmul.f32 %v5742, 1.442695
  %v5775 = vpow.pop %v5774
  %v5776 = vmul.f32 %v5743, 1.442695
  %v5777 = vpow.pop %v5776
  %v5778 = vmul.f32 %v5744, 1.442695
  %v5779 = vpow.pop %v5778
  %v5780 = vmul.f32 %v5745, 1.442695
  %v5781 = vpow.pop %v5780
  %v5782 = vadd.f32 %v5747, 1.0
  %v5783 = vadd.f32 %v5749, 1.0
  %v5784 = vadd.f32 %v5751, 1.0
  %v5785 = vadd.f32 %v5753, 1.0
  %v5786 = vadd.f32 %v5755, 1.0
  %v5787 = vadd.f32 %v5757, 1.0
  %v5788 = vadd.f32 %v5759, 1.0
  %v5789 = vadd.f32 %v5761, 1.0
  %v5790 = vadd.f32 %v5763, 1.0
  %v5791 = vadd.f32 %v5765, 1.0
  %v5792 = vadd.f32 %v5767, 1.0
  %v5793 = vadd.f32 %v5769, 1.0
  %v5794 = vadd.f32 %v5771, 1.0
  %v5795 = vadd.f32 %v5773, 1.0
  %v5796 = vadd.f32 %v5775, 1.0
  %v5797 = vadd.f32 %v5777, 1.0
  %v5798 = vadd.f32 %v5779, 1.0
  %v5799 = vadd.f32 %v5781, 1.0
  %v5800 = vrcp.pop %v5782
  %v5801 = vmul.f32 %v5782, %v5800
  %v5802 = vsub.f32 1.0, %v5801
  %v5803 = vmul.f32 %v5800, %v5802
  %v5804 = vadd.f32 %v5800, %v5803
  %vm5805 = vweird.f32 %v5782
  %vm5806 = vweird.f32 %v5800
  %vm5807 = vmor %vm5805, %vm5806
  %v5808 = vsel %vm5807, %v5800, %v5804
  %v5809 = vand.u32 2147483647, %v5782
  %vm5810 = vcmp.eq.f32.partialorder %v5809, 8.507059e+37
  %v5811 = vand.u32 %v5782, 2147483648
  %v5812 = vor.u32 1.1754944e-38, %v5811
  %v5813 = vsel %vm5810, %v5812, %v5808
  %v5814 = vmul.f32 1.0, %v5813
  %v5815 = vrcp.pop %v5783
  %v5816 = vmul.f32 %v5783, %v5815
  %v5817 = vsub.f32 1.0, %v5816
  %v5818 = vmul.f32 %v5815, %v5817
  %v5819 = vadd.f32 %v5815, %v5818
  %vm5820 = vweird.f32 %v5783
  %vm5821 = vweird.f32 %v5815
  %vm5822 = vmor %vm5820, %vm5821
  %v5823 = vsel %vm5822, %v5815, %v5819
  %v5824 = vand.u32 2147483647, %v5783
  %vm5825 = vcmp.eq.f32.partialorder %v5824, 8.507059e+37
  %v5826 = vand.u32 %v5783, 2147483648
  %v5827 = vor.u32 1.1754944e-38, %v5826
  %v5828 = vsel %vm5825, %v5827, %v5823
  %v5829 = vmul.f32 1.0, %v5828
  %v5830 = vrcp.pop %v5784
  %v5831 = vmul.f32 %v5784, %v5830
  %v5832 = vsub.f32 1.0, %v5831
  %v5833 = vmul.f32 %v5830, %v5832
  %v5834 = vadd.f32 %v5830, %v5833
  %vm5835 = vweird.f32 %v5784
  %vm5836 = vweird.f32 %v5830
  %vm5837 = vmor %vm5835, %vm5836
  %v5838 = vsel %vm5837, %v5830, %v5834
  %v5839 = vand.u32 2147483647, %v5784
  %vm5840 = vcmp.eq.f32.partialorder %v5839, 8.507059e+37
  %v5841 = vand.u32 %v5784, 2147483648
  %v5842 = vor.u32 1.1754944e-38, %v5841
  %v5843 = vsel %vm5840, %v5842, %v5838
  %v5844 = vmul.f32 1.0, %v5843
  %v5845 = vrcp.pop %v5785
  %v5846 = vmul.f32 %v5785, %v5845
  %v5847 = vsub.f32 1.0, %v5846
  %v5848 = vmul.f32 %v5845, %v5847
  %v5849 = vadd.f32 %v5845, %v5848
  %vm5850 = vweird.f32 %v5785
  %vm5851 = vweird.f32 %v5845
  %vm5852 = vmor %vm5850, %vm5851
  %v5853 = vsel %vm5852, %v5845, %v5849
  %v5854 = vand.u32 2147483647, %v5785
  %vm5855 = vcmp.eq.f32.partialorder %v5854, 8.507059e+37
  %v5856 = vand.u32 %v5785, 2147483648
  %v5857 = vor.u32 1.1754944e-38, %v5856
  %v5858 = vsel %vm5855, %v5857, %v5853
  %v5859 = vmul.f32 1.0, %v5858
  %v5860 = vrcp.pop %v5786
  %v5861 = vmul.f32 %v5786, %v5860
  %v5862 = vsub.f32 1.0, %v5861
  %v5863 = vmul.f32 %v5860, %v5862
  %v5864 = vadd.f32 %v5860, %v5863
  %vm5865 = vweird.f32 %v5786
  %vm5866 = vweird.f32 %v5860
  %vm5867 = vmor %vm5865, %vm5866
  %v5868 = vsel %vm5867, %v5860, %v5864
  %v5869 = vand.u32 2147483647, %v5786
  %vm5870 = vcmp.eq.f32.partialorder %v5869, 8.507059e+37
  %v5871 = vand.u32 %v5786, 2147483648
  %v5872 = vor.u32 1.1754944e-38, %v5871
  %v5873 = vsel %vm5870, %v5872, %v5868
  %v5874 = vmul.f32 1.0, %v5873
  %v5875 = vrcp.pop %v5787
  %v5876 = vmul.f32 %v5787, %v5875
  %v5877 = vsub.f32 1.0, %v5876
  %v5878 = vmul.f32 %v5875, %v5877
  %v5879 = vadd.f32 %v5875, %v5878
  %vm5880 = vweird.f32 %v5787
  %vm5881 = vweird.f32 %v5875
  %vm5882 = vmor %vm5880, %vm5881
  %v5883 = vsel %vm5882, %v5875, %v5879
  %v5884 = vand.u32 2147483647, %v5787
  %vm5885 = vcmp.eq.f32.partialorder %v5884, 8.507059e+37
  %v5886 = vand.u32 %v5787, 2147483648
  %v5887 = vor.u32 1.1754944e-38, %v5886
  %v5888 = vsel %vm5885, %v5887, %v5883
  %v5889 = vmul.f32 1.0, %v5888
  %v5890 = vrcp.pop %v5788
  %v5891 = vmul.f32 %v5788, %v5890
  %v5892 = vsub.f32 1.0, %v5891
  %v5893 = vmul.f32 %v5890, %v5892
  %v5894 = vadd.f32 %v5890, %v5893
  %vm5895 = vweird.f32 %v5788
  %vm5896 = vweird.f32 %v5890
  %vm5897 = vmor %vm5895, %vm5896
  %v5898 = vsel %vm5897, %v5890, %v5894
  %v5899 = vand.u32 2147483647, %v5788
  %vm5900 = vcmp.eq.f32.partialorder %v5899, 8.507059e+37
  %v5901 = vand.u32 %v5788, 2147483648
  %v5902 = vor.u32 1.1754944e-38, %v5901
  %v5903 = vsel %vm5900, %v5902, %v5898
  %v5904 = vmul.f32 1.0, %v5903
  %v5905 = vrcp.pop %v5789
  %v5906 = vmul.f32 %v5789, %v5905
  %v5907 = vsub.f32 1.0, %v5906
  %v5908 = vmul.f32 %v5905, %v5907
  %v5909 = vadd.f32 %v5905, %v5908
  %vm5910 = vweird.f32 %v5789
  %vm5911 = vweird.f32 %v5905
  %vm5912 = vmor %vm5910, %vm5911
  %v5913 = vsel %vm5912, %v5905, %v5909
  %v5914 = vand.u32 2147483647, %v5789
  %vm5915 = vcmp.eq.f32.partialorder %v5914, 8.507059e+37
  %v5916 = vand.u32 %v5789, 2147483648
  %v5917 = vor.u32 1.1754944e-38, %v5916
  %v5918 = vsel %vm5915, %v5917, %v5913
  %v5919 = vmul.f32 1.0, %v5918
  %v5920 = vrcp.pop %v5790
  %v5921 = vmul.f32 %v5790, %v5920
  %v5922 = vsub.f32 1.0, %v5921
  %v5923 = vmul.f32 %v5920, %v5922
  %v5924 = vadd.f32 %v5920, %v5923
  %vm5925 = vweird.f32 %v5790
  %vm5926 = vweird.f32 %v5920
  %vm5927 = vmor %vm5925, %vm5926
  %v5928 = vsel %vm5927, %v5920, %v5924
  %v5929 = vand.u32 2147483647, %v5790
  %vm5930 = vcmp.eq.f32.partialorder %v5929, 8.507059e+37
  %v5931 = vand.u32 %v5790, 2147483648
  %v5932 = vor.u32 1.1754944e-38, %v5931
  %v5933 = vsel %vm5930, %v5932, %v5928
  %v5934 = vmul.f32 1.0, %v5933
  %v5935 = vrcp.pop %v5791
  %v5936 = vmul.f32 %v5791, %v5935
  %v5937 = vsub.f32 1.0, %v5936
  %v5938 = vmul.f32 %v5935, %v5937
  %v5939 = vadd.f32 %v5935, %v5938
  %vm5940 = vweird.f32 %v5791
  %vm5941 = vweird.f32 %v5935
  %vm5942 = vmor %vm5940, %vm5941
  %v5943 = vsel %vm5942, %v5935, %v5939
  %v5944 = vand.u32 2147483647, %v5791
  %vm5945 = vcmp.eq.f32.partialorder %v5944, 8.507059e+37
  %v5946 = vand.u32 %v5791, 2147483648
  %v5947 = vor.u32 1.1754944e-38, %v5946
  %v5948 = vsel %vm5945, %v5947, %v5943
  %v5949 = vmul.f32 1.0, %v5948
  %v5950 = vrcp.pop %v5792
  %v5951 = vmul.f32 %v5792, %v5950
  %v5952 = vsub.f32 1.0, %v5951
  %v5953 = vmul.f32 %v5950, %v5952
  %v5954 = vadd.f32 %v5950, %v5953
  %vm5955 = vweird.f32 %v5792
  %vm5956 = vweird.f32 %v5950
  %vm5957 = vmor %vm5955, %vm5956
  %v5958 = vsel %vm5957, %v5950, %v5954
  %v5959 = vand.u32 2147483647, %v5792
  %vm5960 = vcmp.eq.f32.partialorder %v5959, 8.507059e+37
  %v5961 = vand.u32 %v5792, 2147483648
  %v5962 = vor.u32 1.1754944e-38, %v5961
  %v5963 = vsel %vm5960, %v5962, %v5958
  %v5964 = vmul.f32 1.0, %v5963
  %v5965 = vrcp.pop %v5793
  %v5966 = vmul.f32 %v5793, %v5965
  %v5967 = vsub.f32 1.0, %v5966
  %v5968 = vmul.f32 %v5965, %v5967
  %v5969 = vadd.f32 %v5965, %v5968
  %vm5970 = vweird.f32 %v5793
  %vm5971 = vweird.f32 %v5965
  %vm5972 = vmor %vm5970, %vm5971
  %v5973 = vsel %vm5972, %v5965, %v5969
  %v5974 = vand.u32 2147483647, %v5793
  %vm5975 = vcmp.eq.f32.partialorder %v5974, 8.507059e+37
  %v5976 = vand.u32 %v5793, 2147483648
  %v5977 = vor.u32 1.1754944e-38, %v5976
  %v5978 = vsel %vm5975, %v5977, %v5973
  %v5979 = vmul.f32 1.0, %v5978
  %v5980 = vrcp.pop %v5794
  %v5981 = vmul.f32 %v5794, %v5980
  %v5982 = vsub.f32 1.0, %v5981
  %v5983 = vmul.f32 %v5980, %v5982
  %v5984 = vadd.f32 %v5980, %v5983
  %vm5985 = vweird.f32 %v5794
  %vm5986 = vweird.f32 %v5980
  %vm5987 = vmor %vm5985, %vm5986
  %v5988 = vsel %vm5987, %v5980, %v5984
  %v5989 = vand.u32 2147483647, %v5794
  %vm5990 = vcmp.eq.f32.partialorder %v5989, 8.507059e+37
  %v5991 = vand.u32 %v5794, 2147483648
  %v5992 = vor.u32 1.1754944e-38, %v5991
  %v5993 = vsel %vm5990, %v5992, %v5988
  %v5994 = vmul.f32 1.0, %v5993
  %v5995 = vrcp.pop %v5795
  %v5996 = vmul.f32 %v5795, %v5995
  %v5997 = vsub.f32 1.0, %v5996
  %v5998 = vmul.f32 %v5995, %v5997
  %v5999 = vadd.f32 %v5995, %v5998
  %vm6000 = vweird.f32 %v5795
  %vm6001 = vweird.f32 %v5995
  %vm6002 = vmor %vm6000, %vm6001
  %v6003 = vsel %vm6002, %v5995, %v5999
  %v6004 = vand.u32 2147483647, %v5795
  %vm6005 = vcmp.eq.f32.partialorder %v6004, 8.507059e+37
  %v6006 = vand.u32 %v5795, 2147483648
  %v6007 = vor.u32 1.1754944e-38, %v6006
  %v6008 = vsel %vm6005, %v6007, %v6003
  %v6009 = vmul.f32 1.0, %v6008
  %v6010 = vrcp.pop %v5796
  %v6011 = vmul.f32 %v5796, %v6010
  %v6012 = vsub.f32 1.0, %v6011
  %v6013 = vmul.f32 %v6010, %v6012
  %v6014 = vadd.f32 %v6010, %v6013
  %vm6015 = vweird.f32 %v5796
  %vm6016 = vweird.f32 %v6010
  %vm6017 = vmor %vm6015, %vm6016
  %v6018 = vsel %vm6017, %v6010, %v6014
  %v6019 = vand.u32 2147483647, %v5796
  %vm6020 = vcmp.eq.f32.partialorder %v6019, 8.507059e+37
  %v6021 = vand.u32 %v5796, 2147483648
  %v6022 = vor.u32 1.1754944e-38, %v6021
  %v6023 = vsel %vm6020, %v6022, %v6018
  %v6024 = vmul.f32 1.0, %v6023
  %v6025 = vrcp.pop %v5797
  %v6026 = vmul.f32 %v5797, %v6025
  %v6027 = vsub.f32 1.0, %v6026
  %v6028 = vmul.f32 %v6025, %v6027
  %v6029 = vadd.f32 %v6025, %v6028
  %vm6030 = vweird.f32 %v5797
  %vm6031 = vweird.f32 %v6025
  %vm6032 = vmor %vm6030, %vm6031
  %v6033 = vsel %vm6032, %v6025, %v6029
  %v6034 = vand.u32 2147483647, %v5797
  %vm6035 = vcmp.eq.f32.partialorder %v6034, 8.507059e+37
  %v6036 = vand.u32 %v5797, 2147483648
  %v6037 = vor.u32 1.1754944e-38, %v6036
  %v6038 = vsel %vm6035, %v6037, %v6033
  %v6039 = vmul.f32 1.0, %v6038
  %v6040 = vrcp.pop %v5798
  %v6041 = vmul.f32 %v5798, %v6040
  %v6042 = vsub.f32 1.0, %v6041
  %v6043 = vmul.f32 %v6040, %v6042
  %v6044 = vadd.f32 %v6040, %v6043
  %vm6045 = vweird.f32 %v5798
  %vm6046 = vweird.f32 %v6040
  %vm6047 = vmor %vm6045, %vm6046
  %v6048 = vsel %vm6047, %v6040, %v6044
  %v6049 = vand.u32 2147483647, %v5798
  %vm6050 = vcmp.eq.f32.partialorder %v6049, 8.507059e+37
  %v6051 = vand.u32 %v5798, 2147483648
  %v6052 = vor.u32 1.1754944e-38, %v6051
  %v6053 = vsel %vm6050, %v6052, %v6048
  %v6054 = vmul.f32 1.0, %v6053
  %v6055 = vrcp.pop %v5799
  %v6056 = vmul.f32 %v5799, %v6055
  %v6057 = vsub.f32 1.0, %v6056
  %v6058 = vmul.f32 %v6055, %v6057
  %v6059 = vadd.f32 %v6055, %v6058
  %vm6060 = vweird.f32 %v5799
  %vm6061 = vweird.f32 %v6055
  %vm6062 = vmor %vm6060, %vm6061
  %v6063 = vsel %vm6062, %v6055, %v6059
  %v6064 = vand.u32 2147483647, %v5799
  %vm6065 = vcmp.eq.f32.partialorder %v6064, 8.507059e+37
  %v6066 = vand.u32 %v5799, 2147483648
  %v6067 = vor.u32 1.1754944e-38, %v6066
  %v6068 = vsel %vm6065, %v6067, %v6063
  %v6069 = vmul.f32 1.0, %v6068
  %v6070 = vtanh.pop %v5684
  %v6071 = vtanh.pop %v5686
  %v6072 = vtanh.pop %v5689
  %v6073 = vtanh.pop %v5691
  %v6074 = vtanh.pop %v5694
  %v6075 = vtanh.pop %v5696
  %v6076 = vtanh.pop %v5699
  %v6077 = vtanh.pop %v5701
  %v6078 = vtanh.pop %v5704
  %v6079 = vtanh.pop %v5706
  %v6080 = vtanh.pop %v5709
  %v6081 = vtanh.pop %v5711
  %v6082 = vtanh.pop %v5714
  %v6083 = vtanh.pop %v5716
  %v6084 = vtanh.pop %v5719
  %v6085 = vtanh.pop %v5721
  %v6086 = vtanh.pop %v5724
  %v6087 = vtanh.pop %v5726
  %v6088 = vmul.f32 %v5814, %v5466
  %v6089 = vmul.f32 %v5829, %v5467
  %v6090 = vmul.f32 %v5844, %v5468
  %v6091 = vmul.f32 %v5859, %v5469
  %v6092 = vmul.f32 %v5874, %v5470
  %v6093 = vmul.f32 %v5889, %v5471
  %v6094 = vmul.f32 %v5904, %v5472
  %v6095 = vmul.f32 %v5919, %v5473
  %v6096 = vmul.f32 %v5934, %v5474
  %v6097 = vmul.f32 %v5949, %v5475
  %v6098 = vmul.f32 %v5964, %v5476
  %v6099 = vmul.f32 %v5979, %v5477
  %v6100 = vmul.f32 %v5994, %v5478
  %v6101 = vmul.f32 %v6009, %v5479
  %v6102 = vmul.f32 %v6024, %v5480
  %v6103 = vmul.f32 %v6039, %v5481
  %v6104 = vmul.f32 %v6054, %v5482
  %v6105 = vmul.f32 %v6069, %v5483
  %6124 = vrot.lane.b32.xlu0 %v6070, 32
  %v6125 = vpop.permute.xlu0 %6124
  %6126 = vrot.lane.b32.xlu0 %v6071, 32
  %v6127 = vpop.permute.xlu0 %6126
  %6128 = vrot.lane.b32.xlu0 %v6072, 32
  %v6129 = vpop.permute.xlu0 %6128
  %6130 = vrot.lane.b32.xlu0 %v6073, 32
  %v6131 = vpop.permute.xlu0 %6130
  %6132 = vrot.lane.b32.xlu0 %v6074, 32
  %v6133 = vpop.permute.xlu0 %6132
  %6134 = vrot.lane.b32.xlu0 %v6075, 32
  %v6135 = vpop.permute.xlu0 %6134
  %6136 = vrot.lane.b32.xlu0 %v6076, 32
  %v6137 = vpop.permute.xlu0 %6136
  %6138 = vrot.lane.b32.xlu0 %v6077, 32
  %v6139 = vpop.permute.xlu0 %6138
  %6140 = vrot.lane.b32.xlu0 %v6078, 32
  %v6141 = vpop.permute.xlu0 %6140
  %6142 = vrot.lane.b32.xlu0 %v6079, 32
  %v6143 = vpop.permute.xlu0 %6142
  %6144 = vrot.lane.b32.xlu0 %v6080, 32
  %v6145 = vpop.permute.xlu0 %6144
  %6146 = vrot.lane.b32.xlu0 %v6081, 32
  %v6147 = vpop.permute.xlu0 %6146
  %6148 = vrot.lane.b32.xlu0 %v6082, 32
  %v6149 = vpop.permute.xlu0 %6148
  %6150 = vrot.lane.b32.xlu0 %v6083, 32
  %v6151 = vpop.permute.xlu0 %6150
  %6152 = vrot.lane.b32.xlu0 %v6084, 32
  %v6153 = vpop.permute.xlu0 %6152
  %6154 = vrot.lane.b32.xlu0 %v6085, 32
  %v6155 = vpop.permute.xlu0 %6154
  %6156 = vrot.lane.b32.xlu0 %v6086, 32
  %v6157 = vpop.permute.xlu0 %6156
  %6158 = vrot.lane.b32.xlu0 %v6087, 32
  %v6159 = vpop.permute.xlu0 %6158
  %v6178 = vmul.f32 %v5814, %v6125
  %v6179 = vmul.f32 %v5829, %v6127
  %v6180 = vmul.f32 %v5844, %v6129
  %v6181 = vmul.f32 %v5859, %v6131
  %v6182 = vmul.f32 %v5874, %v6133
  %v6183 = vmul.f32 %v5889, %v6135
  %v6184 = vmul.f32 %v5904, %v6137
  %v6185 = vmul.f32 %v5919, %v6139
  %v6186 = vmul.f32 %v5934, %v6141
  %v6187 = vmul.f32 %v5949, %v6143
  %v6188 = vmul.f32 %v5964, %v6145
  %v6189 = vmul.f32 %v5979, %v6147
  %v6190 = vmul.f32 %v5994, %v6149
  %v6191 = vmul.f32 %v6009, %v6151
  %v6192 = vmul.f32 %v6024, %v6153
  %v6193 = vmul.f32 %v6039, %v6155
  %v6194 = vmul.f32 %v6054, %v6157
  %v6195 = vmul.f32 %v6069, %v6159
  %6214 = vrot.lane.b32.xlu0 %v6178, 32
  %v6215 = vpop.permute.xlu0 %6214
  %6216 = vrot.lane.b32.xlu0 %v6179, 32
  %v6217 = vpop.permute.xlu0 %6216
  %6218 = vrot.lane.b32.xlu0 %v6180, 32
  %v6219 = vpop.permute.xlu0 %6218
  %6220 = vrot.lane.b32.xlu0 %v6181, 32
  %v6221 = vpop.permute.xlu0 %6220
  %6222 = vrot.lane.b32.xlu0 %v6182, 32
  %v6223 = vpop.permute.xlu0 %6222
  %6224 = vrot.lane.b32.xlu0 %v6183, 32
  %v6225 = vpop.permute.xlu0 %6224
  %6226 = vrot.lane.b32.xlu0 %v6184, 32
  %v6227 = vpop.permute.xlu0 %6226
  %6228 = vrot.lane.b32.xlu0 %v6185, 32
  %v6229 = vpop.permute.xlu0 %6228
  %6230 = vrot.lane.b32.xlu0 %v6186, 32
  %v6231 = vpop.permute.xlu0 %6230
  %6232 = vrot.lane.b32.xlu0 %v6187, 32
  %v6233 = vpop.permute.xlu0 %6232
  %6234 = vrot.lane.b32.xlu0 %v6188, 32
  %v6235 = vpop.permute.xlu0 %6234
  %6236 = vrot.lane.b32.xlu0 %v6189, 32
  %v6237 = vpop.permute.xlu0 %6236
  %6238 = vrot.lane.b32.xlu0 %v6190, 32
  %v6239 = vpop.permute.xlu0 %6238
  %6240 = vrot.lane.b32.xlu0 %v6191, 32
  %v6241 = vpop.permute.xlu0 %6240
  %6242 = vrot.lane.b32.xlu0 %v6192, 32
  %v6243 = vpop.permute.xlu0 %6242
  %6244 = vrot.lane.b32.xlu0 %v6193, 32
  %v6245 = vpop.permute.xlu0 %6244
  %6246 = vrot.lane.b32.xlu0 %v6194, 32
  %v6247 = vpop.permute.xlu0 %6246
  %6248 = vrot.lane.b32.xlu0 %v6195, 32
  %v6249 = vpop.permute.xlu0 %6248
  %v6268 = vadd.f32 %v6088, %v6215
  %v6269 = vadd.f32 %v6089, %v6217
  %v6270 = vadd.f32 %v6090, %v6219
  %v6271 = vadd.f32 %v6091, %v6221
  %v6272 = vadd.f32 %v6092, %v6223
  %v6273 = vadd.f32 %v6093, %v6225
  %v6274 = vadd.f32 %v6094, %v6227
  %v6275 = vadd.f32 %v6095, %v6229
  %v6276 = vadd.f32 %v6096, %v6231
  %v6277 = vadd.f32 %v6097, %v6233
  %v6278 = vadd.f32 %v6098, %v6235
  %v6279 = vadd.f32 %v6099, %v6237
  %v6280 = vadd.f32 %v6100, %v6239
  %v6281 = vadd.f32 %v6101, %v6241
  %v6282 = vadd.f32 %v6102, %v6243
  %v6283 = vadd.f32 %v6103, %v6245
  %v6284 = vadd.f32 %v6104, %v6247
  %v6285 = vadd.f32 %v6105, %v6249
  %v6286 = vtanh.pop %v6268
  %v6287 = vtanh.pop %v6269
  %v6288 = vtanh.pop %v6270
  %v6289 = vtanh.pop %v6271
  %v6290 = vtanh.pop %v6272
  %v6291 = vtanh.pop %v6273
  %v6292 = vtanh.pop %v6274
  %v6293 = vtanh.pop %v6275
  %v6294 = vtanh.pop %v6276
  %v6295 = vtanh.pop %v6277
  %v6296 = vtanh.pop %v6278
  %v6297 = vtanh.pop %v6279
  %v6298 = vtanh.pop %v6280
  %v6299 = vtanh.pop %v6281
  %v6300 = vtanh.pop %v6282
  %v6301 = vtanh.pop %v6283
  %v6302 = vtanh.pop %v6284
  %v6303 = vtanh.pop %v6285
  %6322 = vrot.lane.b32.xlu0 %v6286, 32
  %v6323 = vpop.permute.xlu0 %6322
  %6324 = vrot.lane.b32.xlu0 %v6287, 32
  %v6325 = vpop.permute.xlu0 %6324
  %6326 = vrot.lane.b32.xlu0 %v6288, 32
  %v6327 = vpop.permute.xlu0 %6326
  %6328 = vrot.lane.b32.xlu0 %v6289, 32
  %v6329 = vpop.permute.xlu0 %6328
  %6330 = vrot.lane.b32.xlu0 %v6290, 32
  %v6331 = vpop.permute.xlu0 %6330
  %6332 = vrot.lane.b32.xlu0 %v6291, 32
  %v6333 = vpop.permute.xlu0 %6332
  %6334 = vrot.lane.b32.xlu0 %v6292, 32
  %v6335 = vpop.permute.xlu0 %6334
  %6336 = vrot.lane.b32.xlu0 %v6293, 32
  %v6337 = vpop.permute.xlu0 %6336
  %6338 = vrot.lane.b32.xlu0 %v6294, 32
  %v6339 = vpop.permute.xlu0 %6338
  %6340 = vrot.lane.b32.xlu0 %v6295, 32
  %v6341 = vpop.permute.xlu0 %6340
  %6342 = vrot.lane.b32.xlu0 %v6296, 32
  %v6343 = vpop.permute.xlu0 %6342
  %6344 = vrot.lane.b32.xlu0 %v6297, 32
  %v6345 = vpop.permute.xlu0 %6344
  %6346 = vrot.lane.b32.xlu0 %v6298, 32
  %v6347 = vpop.permute.xlu0 %6346
  %6348 = vrot.lane.b32.xlu0 %v6299, 32
  %v6349 = vpop.permute.xlu0 %6348
  %6350 = vrot.lane.b32.xlu0 %v6300, 32
  %v6351 = vpop.permute.xlu0 %6350
  %6352 = vrot.lane.b32.xlu0 %v6301, 32
  %v6353 = vpop.permute.xlu0 %6352
  %6354 = vrot.lane.b32.xlu0 %v6302, 32
  %v6355 = vpop.permute.xlu0 %6354
  %6356 = vrot.lane.b32.xlu0 %v6303, 32
  %v6357 = vpop.permute.xlu0 %6356
  %v6376 = vmul.f32 %v5814, %v6323
  %v6377 = vmul.f32 %v5829, %v6325
  %v6378 = vmul.f32 %v5844, %v6327
  %v6379 = vmul.f32 %v5859, %v6329
  %v6380 = vmul.f32 %v5874, %v6331
  %v6381 = vmul.f32 %v5889, %v6333
  %v6382 = vmul.f32 %v5904, %v6335
  %v6383 = vmul.f32 %v5919, %v6337
  %v6384 = vmul.f32 %v5934, %v6339
  %v6385 = vmul.f32 %v5949, %v6341
  %v6386 = vmul.f32 %v5964, %v6343
  %v6387 = vmul.f32 %v5979, %v6345
  %v6388 = vmul.f32 %v5994, %v6347
  %v6389 = vmul.f32 %v6009, %v6349
  %v6390 = vmul.f32 %v6024, %v6351
  %v6391 = vmul.f32 %v6039, %v6353
  %v6392 = vmul.f32 %v6054, %v6355
  %v6393 = vmul.f32 %v6069, %v6357
  %v6394 = vld [vmem:[%s2] sm:$0xff]
  %v6395 = vld [vmem:[%s2 + $0x8] sm:$0xff]
  %v6396 = vld [vmem:[%s2 + $0x10] sm:$0xff]
  %v6397 = vld [vmem:[%s2 + $0x18] sm:$0xff]
  %v6398 = vld [vmem:[%s2 + $0x20] sm:$0xff]
  %v6399 = vld [vmem:[%s2 + $0x28] sm:$0xff]
  %v6400 = vld [vmem:[%s2 + $0x30] sm:$0xff]
  %v6401 = vld [vmem:[%s2 + $0x38] sm:$0xff]
  %v6402 = vld [vmem:[%s2 + $0x40] sm:$0x1]
  %v6403 = vld [vmem:[%s2 + $0x41] sm:$0x1]
  %v6404 = vld [vmem:[%s2 + $0x48] sm:$0xff]
  %v6405 = vld [vmem:[%s2 + $0x50] sm:$0x1]
  %v6406 = vpack.c.bf16 %v6377, %v6376
  %v6407 = vpack.c.bf16 %v6379, %v6378
  %v6408 = vpack.c.bf16 %v6381, %v6380
  %v6409 = vpack.c.bf16 %v6383, %v6382
  %v6410 = vpack.c.bf16 %v6385, %v6384
  %v6411 = vpack.c.bf16 %v6387, %v6386
  %v6412 = vpack.c.bf16 %v6389, %v6388
  %v6413 = vpack.c.bf16 %v6391, %v6390
  %v6414 = vpack.c.bf16 %v6393, %v6392
  %v6415 = vperm.slane %v6403, 0
  %6425 = vrot.lane.b32.xlu0 %v6406, 64
  %v6426 = vpop.permute.xlu0 %6425
  %6427 = vrot.lane.b32.xlu0 %v6407, 64
  %v6428 = vpop.permute.xlu0 %6427
  %6429 = vrot.lane.b32.xlu0 %v6408, 64
  %v6430 = vpop.permute.xlu0 %6429
  %6431 = vrot.lane.b32.xlu0 %v6409, 64
  %v6432 = vpop.permute.xlu0 %6431
  %6433 = vrot.lane.b32.xlu0 %v6410, 64
  %v6434 = vpop.permute.xlu0 %6433
  %6435 = vrot.lane.b32.xlu0 %v6411, 64
  %v6436 = vpop.permute.xlu0 %6435
  %6437 = vrot.lane.b32.xlu0 %v6412, 64
  %v6438 = vpop.permute.xlu0 %6437
  %6439 = vrot.lane.b32.xlu0 %v6413, 64
  %v6440 = vpop.permute.xlu0 %6439
  %6441 = vrot.lane.b32.xlu0 %v6414, 64
  %v6442 = vpop.permute.xlu0 %6441
  %v6447 = vunpack.c.l.b16 %v22
  %v6448 = vunpack.c.l.b16 %v23
  %v6449 = vunpack.c.l.b16 %v24
  %v6450 = vunpack.c.l.b16 %v25
  %v6451 = vpack.c.b16 %v6448, %v6447
  %v6452 = vpack.c.b16 %v6450, %v6449
  %v6456 = vsel %vm56, %v6426, 0
  %v6459 = vsel %vm56, %v6428, 0
  %v6462 = vsel %vm56, %v6430, 0
  %v6465 = vsel %vm56, %v6432, 0
  %v6468 = vsel %vm56, %v6434, 0
  %v6471 = vsel %vm56, %v6436, 0
  %v6474 = vsel %vm56, %v6438, 0
  %v6477 = vsel %vm56, %v6440, 0
  %v6480 = vsel %vm56, %v6442, 0
  %6482 = vmatpush.bf16.msra.mxu0 0
  %6483 = vmatpush.bf16.msra.mxu0 0
  %6484 = vmatpush.bf16.msra.mxu0 0
  %6485 = vmatpush.bf16.msra.mxu0 0
  %6486 = vmatpush.bf16.msra.mxu0 0
  %6487 = vmatpush.bf16.msra.mxu0 0
  %6488 = vmatpush.bf16.msra.mxu0 %v6452
  %6489 = vmatpush.bf16.msra.mxu0 %v6451
  %6490 = vmatmul.bf16.gmra.mxu0 %v6456
  %v6491 = vpop.f32.mrf.mxu0
  %v6492 = vadd.f32 %v6415, %v6491
  %v6493 = vpop.f32.mrf.mxu0
  %v6494 = vadd.f32 %v6415, %v6493
  %6495 = vmatmul.bf16.gmra.mxu0 %v6459
  %v6496 = vpop.f32.mrf.mxu0
  %v6497 = vadd.f32 %v6415, %v6496
  %v6498 = vpop.f32.mrf.mxu0
  %v6499 = vadd.f32 %v6415, %v6498
  %6500 = vmatmul.bf16.gmra.mxu0 %v6462
  %v6501 = vpop.f32.mrf.mxu0
  %v6502 = vadd.f32 %v6415, %v6501
  %v6503 = vpop.f32.mrf.mxu0
  %v6504 = vadd.f32 %v6415, %v6503
  %6505 = vmatmul.bf16.gmra.mxu0 %v6465
  %v6506 = vpop.f32.mrf.mxu0
  %v6507 = vadd.f32 %v6415, %v6506
  %v6508 = vpop.f32.mrf.mxu0
  %v6509 = vadd.f32 %v6415, %v6508
  %6510 = vmatmul.bf16.gmra.mxu0 %v6468
  %v6511 = vpop.f32.mrf.mxu0
  %v6512 = vadd.f32 %v6415, %v6511
  %v6513 = vpop.f32.mrf.mxu0
  %v6514 = vadd.f32 %v6415, %v6513
  %6515 = vmatmul.bf16.gmra.mxu0 %v6471
  %v6516 = vpop.f32.mrf.mxu0
  %v6517 = vadd.f32 %v6415, %v6516
  %v6518 = vpop.f32.mrf.mxu0
  %v6519 = vadd.f32 %v6415, %v6518
  %6520 = vmatmul.bf16.gmra.mxu0 %v6474
  %v6521 = vpop.f32.mrf.mxu0
  %v6522 = vadd.f32 %v6415, %v6521
  %v6523 = vpop.f32.mrf.mxu0
  %v6524 = vadd.f32 %v6415, %v6523
  %6525 = vmatmul.bf16.gmra.mxu0 %v6477
  %v6526 = vpop.f32.mrf.mxu0
  %v6527 = vadd.f32 %v6415, %v6526
  %v6528 = vpop.f32.mrf.mxu0
  %v6529 = vadd.f32 %v6415, %v6528
  %6530 = vmatmul.bf16.gmra.mxu0 %v6480
  %v6531 = vpop.f32.mrf.mxu0
  %v6532 = vadd.f32 %v6415, %v6531
  %v6533 = vpop.f32.mrf.mxu0
  %v6534 = vadd.f32 %v6415, %v6533
  %6535 = vdwg.mxu0
  %v6536 = vtanh.pop %v6492
  %v6537 = vtanh.pop %v6494
  %v6538 = vtanh.pop %v6497
  %v6539 = vtanh.pop %v6499
  %v6540 = vtanh.pop %v6502
  %v6541 = vtanh.pop %v6504
  %v6542 = vtanh.pop %v6507
  %v6543 = vtanh.pop %v6509
  %v6544 = vtanh.pop %v6512
  %v6545 = vtanh.pop %v6514
  %v6546 = vtanh.pop %v6517
  %v6547 = vtanh.pop %v6519
  %v6548 = vtanh.pop %v6522
  %v6549 = vtanh.pop %v6524
  %v6550 = vtanh.pop %v6527
  %v6551 = vtanh.pop %v6529
  %v6552 = vtanh.pop %v6532
  %v6553 = vtanh.pop %v6534
  %v6554 = vperm.slane %v6402, 0
  %vm6555 = vcmask 523264
  %v6557 = vsel %vm6555, %v6536, 0
  %v6560 = vsel %vm6555, %v6537, 0
  %v6563 = vsel %vm6555, %v6538, 0
  %v6566 = vsel %vm6555, %v6539, 0
  %v6569 = vsel %vm6555, %v6540, 0
  %v6572 = vsel %vm6555, %v6541, 0
  %v6575 = vsel %vm6555, %v6542, 0
  %v6578 = vsel %vm6555, %v6543, 0
  %v6581 = vsel %vm6555, %v6544, 0
  %v6584 = vsel %vm6555, %v6545, 0
  %v6587 = vsel %vm6555, %v6546, 0
  %v6590 = vsel %vm6555, %v6547, 0
  %v6593 = vsel %vm6555, %v6548, 0
  %v6596 = vsel %vm6555, %v6549, 0
  %v6599 = vsel %vm6555, %v6550, 0
  %v6602 = vsel %vm6555, %v6551, 0
  %v6605 = vsel %vm6555, %v6552, 0
  %v6608 = vsel %vm6555, %v6553, 0
  %6610 = vmatpush.msra.mxu0 0.0
  %6611 = vmatpush.msra.mxu0 0.0
  %6612 = vmatpush.msra.mxu0 0.0
  %6613 = vmatpush.msra.mxu0 0.0
  %6614 = vmatpush.msra.mxu0 0.0
  %6615 = vmatpush.msra.mxu0 0.0
  %6616 = vmatpush.msra.mxu0 0.0
  %6617 = vmatpush.msra.mxu0 0.0
  %6618 = vmatpush.msra.mxu0 %v6401
  %6619 = vmatpush.msra.mxu0 %v6400
  %6620 = vmatpush.msra.mxu0 %v6399
  %6621 = vmatpush.msra.mxu0 %v6398
  %6622 = vmatpush.msra.mxu0 %v6397
  %6623 = vmatpush.msra.mxu0 %v6396
  %6624 = vmatpush.msra.mxu0 %v6395
  %6625 = vmatpush.msra.mxu0 %v6394
  %6626 = vmatmul.f32.gmra.mxu0 %v6557
  %v6627 = vpop.f32.mrf.mxu0
  %v6628 = vadd.f32 %v6554, %v6627
  %6629 = vmatmul.f32.gmra.mxu0 %v6560
  %v6630 = vpop.f32.mrf.mxu0
  %v6631 = vadd.f32 %v6554, %v6630
  %6632 = vmatmul.f32.gmra.mxu0 %v6563
  %v6633 = vpop.f32.mrf.mxu0
  %v6634 = vadd.f32 %v6554, %v6633
  %6635 = vmatmul.f32.gmra.mxu0 %v6566
  %v6636 = vpop.f32.mrf.mxu0
  %v6637 = vadd.f32 %v6554, %v6636
  %6638 = vmatmul.f32.gmra.mxu0 %v6569
  %v6639 = vpop.f32.mrf.mxu0
  %v6640 = vadd.f32 %v6554, %v6639
  %6641 = vmatmul.f32.gmra.mxu0 %v6572
  %v6642 = vpop.f32.mrf.mxu0
  %v6643 = vadd.f32 %v6554, %v6642
  %6644 = vmatmul.f32.gmra.mxu0 %v6575
  %v6645 = vpop.f32.mrf.mxu0
  %v6646 = vadd.f32 %v6554, %v6645
  %6647 = vmatmul.f32.gmra.mxu0 %v6578
  %v6648 = vpop.f32.mrf.mxu0
  %v6649 = vadd.f32 %v6554, %v6648
  %6650 = vmatmul.f32.gmra.mxu0 %v6581
  %v6651 = vpop.f32.mrf.mxu0
  %v6652 = vadd.f32 %v6554, %v6651
  %6653 = vmatmul.f32.gmra.mxu0 %v6584
  %v6654 = vpop.f32.mrf.mxu0
  %v6655 = vadd.f32 %v6554, %v6654
  %6656 = vmatmul.f32.gmra.mxu0 %v6587
  %v6657 = vpop.f32.mrf.mxu0
  %v6658 = vadd.f32 %v6554, %v6657
  %6659 = vmatmul.f32.gmra.mxu0 %v6590
  %v6660 = vpop.f32.mrf.mxu0
  %v6661 = vadd.f32 %v6554, %v6660
  %6662 = vmatmul.f32.gmra.mxu0 %v6593
  %v6663 = vpop.f32.mrf.mxu0
  %v6664 = vadd.f32 %v6554, %v6663
  %6665 = vmatmul.f32.gmra.mxu0 %v6596
  %v6666 = vpop.f32.mrf.mxu0
  %v6667 = vadd.f32 %v6554, %v6666
  %6668 = vmatmul.f32.gmra.mxu0 %v6599
  %v6669 = vpop.f32.mrf.mxu0
  %v6670 = vadd.f32 %v6554, %v6669
  %6671 = vmatmul.f32.gmra.mxu0 %v6602
  %v6672 = vpop.f32.mrf.mxu0
  %v6673 = vadd.f32 %v6554, %v6672
  %6674 = vmatmul.f32.gmra.mxu0 %v6605
  %v6675 = vpop.f32.mrf.mxu0
  %v6676 = vadd.f32 %v6554, %v6675
  %6677 = vmatmul.f32.gmra.mxu0 %v6608
  %v6678 = vpop.f32.mrf.mxu0
  %v6679 = vadd.f32 %v6554, %v6678
  %6680 = vdwg.mxu0
  %v6681 = vtanh.pop %v6628
  %v6682 = vtanh.pop %v6631
  %v6683 = vtanh.pop %v6634
  %v6684 = vtanh.pop %v6637
  %v6685 = vtanh.pop %v6640
  %v6686 = vtanh.pop %v6643
  %v6687 = vtanh.pop %v6646
  %v6688 = vtanh.pop %v6649
  %v6689 = vtanh.pop %v6652
  %v6690 = vtanh.pop %v6655
  %v6691 = vtanh.pop %v6658
  %v6692 = vtanh.pop %v6661
  %v6693 = vtanh.pop %v6664
  %v6694 = vtanh.pop %v6667
  %v6695 = vtanh.pop %v6670
  %v6696 = vtanh.pop %v6673
  %v6697 = vtanh.pop %v6676
  %v6698 = vtanh.pop %v6679
  %v6699 = vld [vmem:[%s3] sm:$0xff]
  %v6700 = vld [vmem:[%s3 + $0x8] sm:$0xff]
  %v6701 = vld [vmem:[%s3 + $0x10] sm:$0xff]
  %v6702 = vld [vmem:[%s3 + $0x18] sm:$0xff]
  %v6703 = vld [vmem:[%s3 + $0x20] sm:$0xff]
  %v6704 = vld [vmem:[%s3 + $0x28] sm:$0xff]
  %v6705 = vld [vmem:[%s3 + $0x30] sm:$0xff]
  %v6706 = vld [vmem:[%s3 + $0x38] sm:$0xff]
  %v6707 = vld [vmem:[%s3 + $0x40] sm:$0xff]
  %v6708 = vld [vmem:[%s3 + $0x48] sm:$0xff]
  %v6709 = vld [vmem:[%s3 + $0x50] sm:$0xff]
  %v6710 = vld [vmem:[%s3 + $0x58] sm:$0xff]
  %v6711 = vld [vmem:[%s3 + $0x60] sm:$0xff]
  %v6712 = vld [vmem:[%s3 + $0x68] sm:$0xff]
  %v6713 = vld [vmem:[%s3 + $0x70] sm:$0xff]
  %v6714 = vld [vmem:[%s3 + $0x78] sm:$0xff]
  %v6715 = vld [vmem:[%s3 + $0x80] sm:$0xff]
  %v6716 = vld [vmem:[%s3 + $0x88] sm:$0xff]
  %v6717 = vld [vmem:[%s3 + $0x90] sm:$0xff]
  %v6718 = vld [vmem:[%s3 + $0x98] sm:$0xff]
  %v6719 = vld [vmem:[%s3 + $0xa0] sm:$0xff]
  %v6720 = vld [vmem:[%s3 + $0xa8] sm:$0xff]
  %v6721 = vld [vmem:[%s3 + $0xb0] sm:$0xff]
  %v6722 = vld [vmem:[%s3 + $0xb8] sm:$0xff]
  %v6723 = vld [vmem:[%s3 + $0xc0] sm:$0xff]
  %v6724 = vld [vmem:[%s3 + $0xc8] sm:$0xff]
  %v6725 = vld [vmem:[%s3 + $0xd0] sm:$0xff]
  %v6726 = vld [vmem:[%s3 + $0xd8] sm:$0xff]
  %v6727 = vld [vmem:[%s3 + $0xe0] sm:$0xff]
  %v6728 = vld [vmem:[%s3 + $0xe8] sm:$0xff]
  %v6729 = vld [vmem:[%s3 + $0xf0] sm:$0xff]
  %v6730 = vld [vmem:[%s3 + $0xf8] sm:$0xff]
  %v6731 = vld [vmem:[%s3 + $0x100] sm:$0xff]
  %v6732 = vld [vmem:[%s3 + $0x108] sm:$0xff]
  %v6733 = vld [vmem:[%s3 + $0x110] sm:$0xff]
  %v6734 = vld [vmem:[%s3 + $0x118] sm:$0xff]
  %vm6735 = vcmask 130048
  %v6737 = vsel %vm6735, %v6700, 0
  %v6740 = vsel %vm6735, %v6702, 0
  %v6743 = vsel %vm6735, %v6704, 0
  %v6746 = vsel %vm6735, %v6706, 0
  %v6749 = vsel %vm6735, %v6708, 0
  %v6752 = vsel %vm6735, %v6710, 0
  %v6755 = vsel %vm6735, %v6712, 0
  %v6758 = vsel %vm6735, %v6714, 0
  %v6761 = vsel %vm6735, %v6716, 0
  %v6764 = vsel %vm6735, %v6718, 0
  %v6767 = vsel %vm6735, %v6720, 0
  %v6770 = vsel %vm6735, %v6722, 0
  %v6773 = vsel %vm6735, %v6724, 0
  %v6776 = vsel %vm6735, %v6726, 0
  %v6779 = vsel %vm6735, %v6728, 0
  %v6782 = vsel %vm6735, %v6730, 0
  %v6785 = vsel %vm6735, %v6732, 0
  %v6788 = vsel %vm6735, %v6734, 0
  %6790 = vmatpush.msra.mxu0 %v6696
  %6791 = vmatpush.msra.mxu0 %v6695
  %6792 = vmatpush.msra.mxu0 %v6694
  %6793 = vmatpush.msra.mxu0 %v6693
  %6794 = vmatpush.msra.mxu0 %v6692
  %6795 = vmatpush.msra.mxu0 %v6691
  %6796 = vmatpush.msra.mxu0 %v6690
  %6797 = vmatpush.msra.mxu0 %v6689
  %6798 = vmatpush.msra.mxu0 %v6688
  %6799 = vmatpush.msra.mxu0 %v6687
  %6800 = vmatpush.msra.mxu0 %v6686
  %6801 = vmatpush.msra.mxu0 %v6685
  %6802 = vmatpush.msra.mxu0 %v6684
  %6803 = vmatpush.msra.mxu0 %v6683
  %6804 = vmatpush.msra.mxu0 %v6682
  %6805 = vmatpush.msra.mxu0 %v6681
  %6806 = vmatmul.f32.gmra.mxu0 %v6699
  %v6807 = vpop.f32.mrf.mxu0
  %v6808 = vadd.f32 0.0, %v6807
  %6809 = vmatmul.f32.gmra.mxu0 %v6701
  %v6810 = vpop.f32.mrf.mxu0
  %v6811 = vadd.f32 0.0, %v6810
  %6812 = vmatmul.f32.gmra.mxu0 %v6703
  %v6813 = vpop.f32.mrf.mxu0
  %v6814 = vadd.f32 0.0, %v6813
  %6815 = vmatmul.f32.gmra.mxu0 %v6705
  %v6816 = vpop.f32.mrf.mxu0
  %v6817 = vadd.f32 0.0, %v6816
  %6818 = vmatmul.f32.gmra.mxu0 %v6707
  %v6819 = vpop.f32.mrf.mxu0
  %v6820 = vadd.f32 0.0, %v6819
  %6821 = vmatmul.f32.gmra.mxu0 %v6709
  %v6822 = vpop.f32.mrf.mxu0
  %v6823 = vadd.f32 0.0, %v6822
  %6824 = vmatmul.f32.gmra.mxu0 %v6711
  %v6825 = vpop.f32.mrf.mxu0
  %v6826 = vadd.f32 0.0, %v6825
  %6827 = vmatmul.f32.gmra.mxu0 %v6713
  %v6828 = vpop.f32.mrf.mxu0
  %v6829 = vadd.f32 0.0, %v6828
  %6830 = vmatmul.f32.gmra.mxu0 %v6715
  %v6831 = vpop.f32.mrf.mxu0
  %v6832 = vadd.f32 0.0, %v6831
  %6833 = vmatmul.f32.gmra.mxu0 %v6717
  %v6834 = vpop.f32.mrf.mxu0
  %v6835 = vadd.f32 0.0, %v6834
  %6836 = vmatmul.f32.gmra.mxu0 %v6719
  %v6837 = vpop.f32.mrf.mxu0
  %v6838 = vadd.f32 0.0, %v6837
  %6839 = vmatmul.f32.gmra.mxu0 %v6721
  %v6840 = vpop.f32.mrf.mxu0
  %v6841 = vadd.f32 0.0, %v6840
  %6842 = vmatmul.f32.gmra.mxu0 %v6723
  %v6843 = vpop.f32.mrf.mxu0
  %v6844 = vadd.f32 0.0, %v6843
  %6845 = vmatmul.f32.gmra.mxu0 %v6725
  %v6846 = vpop.f32.mrf.mxu0
  %v6847 = vadd.f32 0.0, %v6846
  %6848 = vmatmul.f32.gmra.mxu0 %v6727
  %v6849 = vpop.f32.mrf.mxu0
  %v6850 = vadd.f32 0.0, %v6849
  %6851 = vmatmul.f32.gmra.mxu0 %v6729
  %v6852 = vpop.f32.mrf.mxu0
  %v6853 = vadd.f32 0.0, %v6852
  %6854 = vmatmul.f32.gmra.mxu0 %v6731
  %v6855 = vpop.f32.mrf.mxu0
  %v6856 = vadd.f32 0.0, %v6855
  %6857 = vmatmul.f32.gmra.mxu0 %v6733
  %v6858 = vpop.f32.mrf.mxu0
  %v6859 = vadd.f32 0.0, %v6858
  %6860 = vdwg.mxu0
  %6861 = vmatpush.msra.mxu0 0.0
  %6862 = vmatpush.msra.mxu0 0.0
  %6863 = vmatpush.msra.mxu0 0.0
  %6864 = vmatpush.msra.mxu0 0.0
  %6865 = vmatpush.msra.mxu0 0.0
  %6866 = vmatpush.msra.mxu0 0.0
  %6867 = vmatpush.msra.mxu0 0.0
  %6868 = vmatpush.msra.mxu0 0.0
  %6869 = vmatpush.msra.mxu0 0.0
  %6870 = vmatpush.msra.mxu0 0.0
  %6871 = vmatpush.msra.mxu0 0.0
  %6872 = vmatpush.msra.mxu0 0.0
  %6873 = vmatpush.msra.mxu0 0.0
  %6874 = vmatpush.msra.mxu0 0.0
  %6875 = vmatpush.msra.mxu0 %v6698
  %6876 = vmatpush.msra.mxu0 %v6697
  %6877 = vmatmul.f32.gmra.mxu0 %v6737
  %v6878 = vpop.f32.mrf.mxu0
  %v6879 = vadd.f32 %v6808, %v6878
  %6880 = vmatmul.f32.gmra.mxu0 %v6740
  %v6881 = vpop.f32.mrf.mxu0
  %v6882 = vadd.f32 %v6811, %v6881
  %6883 = vmatmul.f32.gmra.mxu0 %v6743
  %v6884 = vpop.f32.mrf.mxu0
  %v6885 = vadd.f32 %v6814, %v6884
  %6886 = vmatmul.f32.gmra.mxu0 %v6746
  %v6887 = vpop.f32.mrf.mxu0
  %v6888 = vadd.f32 %v6817, %v6887
  %6889 = vmatmul.f32.gmra.mxu0 %v6749
  %v6890 = vpop.f32.mrf.mxu0
  %v6891 = vadd.f32 %v6820, %v6890
  %6892 = vmatmul.f32.gmra.mxu0 %v6752
  %v6893 = vpop.f32.mrf.mxu0
  %v6894 = vadd.f32 %v6823, %v6893
  %6895 = vmatmul.f32.gmra.mxu0 %v6755
  %v6896 = vpop.f32.mrf.mxu0
  %v6897 = vadd.f32 %v6826, %v6896
  %6898 = vmatmul.f32.gmra.mxu0 %v6758
  %v6899 = vpop.f32.mrf.mxu0
  %v6900 = vadd.f32 %v6829, %v6899
  %6901 = vmatmul.f32.gmra.mxu0 %v6761
  %v6902 = vpop.f32.mrf.mxu0
  %v6903 = vadd.f32 %v6832, %v6902
  %6904 = vmatmul.f32.gmra.mxu0 %v6764
  %v6905 = vpop.f32.mrf.mxu0
  %v6906 = vadd.f32 %v6835, %v6905
  %6907 = vmatmul.f32.gmra.mxu0 %v6767
  %v6908 = vpop.f32.mrf.mxu0
  %v6909 = vadd.f32 %v6838, %v6908
  %6910 = vmatmul.f32.gmra.mxu0 %v6770
  %v6911 = vpop.f32.mrf.mxu0
  %v6912 = vadd.f32 %v6841, %v6911
  %6913 = vmatmul.f32.gmra.mxu0 %v6773
  %v6914 = vpop.f32.mrf.mxu0
  %v6915 = vadd.f32 %v6844, %v6914
  %6916 = vmatmul.f32.gmra.mxu0 %v6776
  %v6917 = vpop.f32.mrf.mxu0
  %v6918 = vadd.f32 %v6847, %v6917
  %6919 = vmatmul.f32.gmra.mxu0 %v6779
  %v6920 = vpop.f32.mrf.mxu0
  %v6921 = vadd.f32 %v6850, %v6920
  %6922 = vmatmul.f32.gmra.mxu0 %v6782
  %v6923 = vpop.f32.mrf.mxu0
  %v6924 = vadd.f32 %v6853, %v6923
  %6925 = vmatmul.f32.gmra.mxu0 %v6785
  %v6926 = vpop.f32.mrf.mxu0
  %v6927 = vadd.f32 %v6856, %v6926
  %6928 = vmatmul.f32.gmra.mxu0 %v6788
  %v6929 = vpop.f32.mrf.mxu0
  %v6930 = vadd.f32 %v6859, %v6929
  %6931 = vdwg.mxu0
  %6950 = vrot.lane.b32.xlu0 %v6879, 8
  %v6951 = vpop.permute.xlu0 %6950
  %6952 = vrot.lane.b32.xlu0 %v6882, 8
  %v6953 = vpop.permute.xlu0 %6952
  %6954 = vrot.lane.b32.xlu0 %v6885, 8
  %v6955 = vpop.permute.xlu0 %6954
  %6956 = vrot.lane.b32.xlu0 %v6888, 8
  %v6957 = vpop.permute.xlu0 %6956
  %6958 = vrot.lane.b32.xlu0 %v6891, 8
  %v6959 = vpop.permute.xlu0 %6958
  %6960 = vrot.lane.b32.xlu0 %v6894, 8
  %v6961 = vpop.permute.xlu0 %6960
  %6962 = vrot.lane.b32.xlu0 %v6897, 8
  %v6963 = vpop.permute.xlu0 %6962
  %6964 = vrot.lane.b32.xlu0 %v6900, 8
  %v6965 = vpop.permute.xlu0 %6964
  %6966 = vrot.lane.b32.xlu0 %v6903, 8
  %v6967 = vpop.permute.xlu0 %6966
  %6968 = vrot.lane.b32.xlu0 %v6906, 8
  %v6969 = vpop.permute.xlu0 %6968
  %6970 = vrot.lane.b32.xlu0 %v6909, 8
  %v6971 = vpop.permute.xlu0 %6970
  %6972 = vrot.lane.b32.xlu0 %v6912, 8
  %v6973 = vpop.permute.xlu0 %6972
  %6974 = vrot.lane.b32.xlu0 %v6915, 8
  %v6975 = vpop.permute.xlu0 %6974
  %6976 = vrot.lane.b32.xlu0 %v6918, 8
  %v6977 = vpop.permute.xlu0 %6976
  %6978 = vrot.lane.b32.xlu0 %v6921, 8
  %v6979 = vpop.permute.xlu0 %6978
  %6980 = vrot.lane.b32.xlu0 %v6924, 8
  %v6981 = vpop.permute.xlu0 %6980
  %6982 = vrot.lane.b32.xlu0 %v6927, 8
  %v6983 = vpop.permute.xlu0 %6982
  %6984 = vrot.lane.b32.xlu0 %v6930, 8
  %v6985 = vpop.permute.xlu0 %6984
  %v7004 = vmul.f32 %v6681, %v6951
  %v7005 = vmul.f32 %v6682, %v6953
  %v7006 = vmul.f32 %v6683, %v6955
  %v7007 = vmul.f32 %v6684, %v6957
  %v7008 = vmul.f32 %v6685, %v6959
  %v7009 = vmul.f32 %v6686, %v6961
  %v7010 = vmul.f32 %v6687, %v6963
  %v7011 = vmul.f32 %v6688, %v6965
  %v7012 = vmul.f32 %v6689, %v6967
  %v7013 = vmul.f32 %v6690, %v6969
  %v7014 = vmul.f32 %v6691, %v6971
  %v7015 = vmul.f32 %v6692, %v6973
  %v7016 = vmul.f32 %v6693, %v6975
  %v7017 = vmul.f32 %v6694, %v6977
  %v7018 = vmul.f32 %v6695, %v6979
  %v7019 = vmul.f32 %v6696, %v6981
  %v7020 = vmul.f32 %v6697, %v6983
  %v7021 = vmul.f32 %v6698, %v6985
  %v7022 = vperm.slane %v6405, 0
  %7041 = vrot.lane.b32.xlu0 %v7004, 120
  %v7042 = vpop.permute.xlu0 %7041
  %7043 = vrot.lane.b32.xlu0 %v7005, 120
  %v7044 = vpop.permute.xlu0 %7043
  %7045 = vrot.lane.b32.xlu0 %v7006, 120
  %v7046 = vpop.permute.xlu0 %7045
  %7047 = vrot.lane.b32.xlu0 %v7007, 120
  %v7048 = vpop.permute.xlu0 %7047
  %7049 = vrot.lane.b32.xlu0 %v7008, 120
  %v7050 = vpop.permute.xlu0 %7049
  %7051 = vrot.lane.b32.xlu0 %v7009, 120
  %v7052 = vpop.permute.xlu0 %7051
  %7053 = vrot.lane.b32.xlu0 %v7010, 120
  %v7054 = vpop.permute.xlu0 %7053
  %7055 = vrot.lane.b32.xlu0 %v7011, 120
  %v7056 = vpop.permute.xlu0 %7055
  %7057 = vrot.lane.b32.xlu0 %v7012, 120
  %v7058 = vpop.permute.xlu0 %7057
  %7059 = vrot.lane.b32.xlu0 %v7013, 120
  %v7060 = vpop.permute.xlu0 %7059
  %7061 = vrot.lane.b32.xlu0 %v7014, 120
  %v7062 = vpop.permute.xlu0 %7061
  %7063 = vrot.lane.b32.xlu0 %v7015, 120
  %v7064 = vpop.permute.xlu0 %7063
  %7065 = vrot.lane.b32.xlu0 %v7016, 120
  %v7066 = vpop.permute.xlu0 %7065
  %7067 = vrot.lane.b32.xlu0 %v7017, 120
  %v7068 = vpop.permute.xlu0 %7067
  %7069 = vrot.lane.b32.xlu0 %v7018, 120
  %v7070 = vpop.permute.xlu0 %7069
  %7071 = vrot.lane.b32.xlu0 %v7019, 120
  %v7072 = vpop.permute.xlu0 %7071
  %7073 = vrot.lane.b32.xlu0 %v7020, 120
  %v7074 = vpop.permute.xlu0 %7073
  %7075 = vrot.lane.b32.xlu0 %v7021, 120
  %v7076 = vpop.permute.xlu0 %7075
  %vm7077 = vcmask 64512
  %v7078 = vsel %vm7077, %v7042, 0
  %v7080 = vsel %vm7077, %v7044, 0
  %v7082 = vsel %vm7077, %v7046, 0
  %v7084 = vsel %vm7077, %v7048, 0
  %v7086 = vsel %vm7077, %v7050, 0
  %v7088 = vsel %vm7077, %v7052, 0
  %v7090 = vsel %vm7077, %v7054, 0
  %v7092 = vsel %vm7077, %v7056, 0
  %v7094 = vsel %vm7077, %v7058, 0
  %v7096 = vsel %vm7077, %v7060, 0
  %v7098 = vsel %vm7077, %v7062, 0
  %v7100 = vsel %vm7077, %v7064, 0
  %v7102 = vsel %vm7077, %v7066, 0
  %v7104 = vsel %vm7077, %v7068, 0
  %v7106 = vsel %vm7077, %v7070, 0
  %v7108 = vsel %vm7077, %v7072, 0
  %v7110 = vsel %vm7077, %v7074, 0
  %v7112 = vsel %vm7077, %v7076, 0
  %7114 = vmatpush.msra.mxu0 0.0
  %7115 = vmatpush.msra.mxu0 0.0
  %7116 = vmatpush.msra.mxu0 0.0
  %7117 = vmatpush.msra.mxu0 0.0
  %7118 = vmatpush.msra.mxu0 0.0
  %7119 = vmatpush.msra.mxu0 0.0
  %7120 = vmatpush.msra.mxu0 0.0
  %7121 = vmatpush.msra.mxu0 0.0
  %7122 = vmatpush.msra.mxu0 0.0
  %7123 = vmatpush.msra.mxu0 0.0
  %7124 = vmatpush.msra.mxu0 0.0
  %7125 = vmatpush.msra.mxu0 0.0
  %7126 = vmatpush.msra.mxu0 0.0
  %7127 = vmatpush.msra.mxu0 0.0
  %7128 = vmatpush.msra.mxu0 0.0
  %7129 = vmatpush.msra.mxu0 %v6404
  %7130 = vmatmul.f32.gmra.mxu0 %v7078
  %v7131 = vpop.f32.mrf.mxu0
  %v7132 = vadd.f32 %v7022, %v7131
  %7133 = vmatmul.f32.gmra.mxu0 %v7080
  %v7134 = vpop.f32.mrf.mxu0
  %v7135 = vadd.f32 %v7022, %v7134
  %7136 = vmatmul.f32.gmra.mxu0 %v7082
  %v7137 = vpop.f32.mrf.mxu0
  %v7138 = vadd.f32 %v7022, %v7137
  %7139 = vmatmul.f32.gmra.mxu0 %v7084
  %v7140 = vpop.f32.mrf.mxu0
  %v7141 = vadd.f32 %v7022, %v7140
  %7142 = vmatmul.f32.gmra.mxu0 %v7086
  %v7143 = vpop.f32.mrf.mxu0
  %v7144 = vadd.f32 %v7022, %v7143
  %7145 = vmatmul.f32.gmra.mxu0 %v7088
  %v7146 = vpop.f32.mrf.mxu0
  %v7147 = vadd.f32 %v7022, %v7146
  %7148 = vmatmul.f32.gmra.mxu0 %v7090
  %v7149 = vpop.f32.mrf.mxu0
  %v7150 = vadd.f32 %v7022, %v7149
  %7151 = vmatmul.f32.gmra.mxu0 %v7092
  %v7152 = vpop.f32.mrf.mxu0
  %v7153 = vadd.f32 %v7022, %v7152
  %7154 = vmatmul.f32.gmra.mxu0 %v7094
  %v7155 = vpop.f32.mrf.mxu0
  %v7156 = vadd.f32 %v7022, %v7155
  %7157 = vmatmul.f32.gmra.mxu0 %v7096
  %v7158 = vpop.f32.mrf.mxu0
  %v7159 = vadd.f32 %v7022, %v7158
  %7160 = vmatmul.f32.gmra.mxu0 %v7098
  %v7161 = vpop.f32.mrf.mxu0
  %v7162 = vadd.f32 %v7022, %v7161
  %7163 = vmatmul.f32.gmra.mxu0 %v7100
  %v7164 = vpop.f32.mrf.mxu0
  %v7165 = vadd.f32 %v7022, %v7164
  %7166 = vmatmul.f32.gmra.mxu0 %v7102
  %v7167 = vpop.f32.mrf.mxu0
  %v7168 = vadd.f32 %v7022, %v7167
  %7169 = vmatmul.f32.gmra.mxu0 %v7104
  %v7170 = vpop.f32.mrf.mxu0
  %v7171 = vadd.f32 %v7022, %v7170
  %7172 = vmatmul.f32.gmra.mxu0 %v7106
  %v7173 = vpop.f32.mrf.mxu0
  %v7174 = vadd.f32 %v7022, %v7173
  %7175 = vmatmul.f32.gmra.mxu0 %v7108
  %v7176 = vpop.f32.mrf.mxu0
  %v7177 = vadd.f32 %v7022, %v7176
  %7178 = vmatmul.f32.gmra.mxu0 %v7110
  %v7179 = vpop.f32.mrf.mxu0
  %v7180 = vadd.f32 %v7022, %v7179
  %7181 = vmatmul.f32.gmra.mxu0 %v7112
  %v7182 = vpop.f32.mrf.mxu0
  %v7183 = vadd.f32 %v7022, %v7182
  %7184 = vdwg.mxu0
  %7185 = vst [vmem:[%s4] sm:$0xff] %v7132
  %7186 = vst [vmem:[%s4 + $0x8] sm:$0xff] %v7135
  %7187 = vst [vmem:[%s4 + $0x10] sm:$0xff] %v7138
  %7188 = vst [vmem:[%s4 + $0x18] sm:$0xff] %v7141
  %7189 = vst [vmem:[%s4 + $0x20] sm:$0xff] %v7144
  %7190 = vst [vmem:[%s4 + $0x28] sm:$0xff] %v7147
  %7191 = vst [vmem:[%s4 + $0x30] sm:$0xff] %v7150
  %7192 = vst [vmem:[%s4 + $0x38] sm:$0xff] %v7153
  %7193 = vst [vmem:[%s4 + $0x40] sm:$0xff] %v7156
  %7194 = vst [vmem:[%s4 + $0x48] sm:$0xff] %v7159
  %7195 = vst [vmem:[%s4 + $0x50] sm:$0xff] %v7162
  %7196 = vst [vmem:[%s4 + $0x58] sm:$0xff] %v7165
  %7197 = vst [vmem:[%s4 + $0x60] sm:$0xff] %v7168
  %7198 = vst [vmem:[%s4 + $0x68] sm:$0xff] %v7171
  %7199 = vst [vmem:[%s4 + $0x70] sm:$0xff] %v7174
  %7200 = vst [vmem:[%s4 + $0x78] sm:$0xff] %v7177
  %7201 = vst [vmem:[%s4 + $0x80] sm:$0xff] %v7180
  %7202 = vst [vmem:[%s4 + $0x88] sm:$0xff] %v7183
  // Predicated region
  $region18: #{recon_eac_kggat_forward.1} parent=0 // pred_check
    _
  $region19: #{recon_eac_kggat_forward.1} parent=0 // pred_check_branch
    %7204 = sbr.rel (0) target = $region21
  $region20: #{recon_eac_kggat_forward.1} parent=0 // pred_region
    _
  $region21: #{recon_eac_kggat_forward.1} parent=0 // pred_fallthru
    _
  // Predicated region
  $region22: #{recon_eac_kggat_forward.1} parent=0 // pred_check
    _
  $region23: #{recon_eac_kggat_forward.1} parent=0 // pred_check_branch
    %7206 = sbr.rel (0) target = $region25
  $region24: #{recon_eac_kggat_forward.1} parent=0 // pred_region
    _
  $region25: #{recon_eac_kggat_forward.1} parent=0 // pred_fallthru
    _

</llo_original>
